<compile_context>
chip_gen: v7x
topology: tpu7x:2x2x1
jax: 0.10.0
libtpu: 0.0.40
codegen_flags: <defaults>
</compile_context>

<pallas_src>
import functools
import numpy as np
import jax
import jax.numpy as jnp
from jax.experimental import pallas as pl
from jax.experimental.pallas import tpu as pltpu

MAX_TOKENS = 128
LN_EPS = 1e-6


# ----------------------------- host-side helpers -----------------------------
def positional_encoding(position, d_model):
    # mirrors get_angles / positional_encoding from the reference module
    pos = np.arange(position, dtype=np.float32)[:, None]
    i = np.arange(d_model)[None, :]
    angle_rates = 1.0 / np.power(
        10000.0, (2 * (i // 2)).astype(np.float32) / np.float32(d_model)
    )
    angle_rads = (pos * angle_rates).astype(np.float32)
    angle_rads[:, 0::2] = np.sin(angle_rads[:, 0::2])
    angle_rads[:, 1::2] = np.cos(angle_rads[:, 1::2])
    return jnp.asarray(angle_rads[None, ...], dtype=jnp.float32)  # (1, pos, d_model)


# --------------------------------- kernels -----------------------------------
def _layernorm(h, gamma, beta):
    mu = jnp.mean(h, axis=-1, keepdims=True)
    var = jnp.mean(jnp.square(h - mu), axis=-1, keepdims=True)
    return (h - mu) * jax.lax.rsqrt(var + LN_EPS) * gamma + beta


def _qkv_proj_kernel(x_ref, w_ref, o_ref):
    # x: (B*S, D), w: (D, 3D) -> o: (B*S, 3D)   fused Q|K|V projection
    o_ref[...] = jnp.dot(x_ref[...], w_ref[...], preferred_element_type=jnp.float32)


def qkv_proj(x2d, wqkv):
    rows = x2d.shape[0]
    dout = wqkv.shape[1]
    return pl.pallas_call(
        _qkv_proj_kernel,
        out_shape=jax.ShapeDtypeStruct((rows, dout), jnp.float32),
    )(x2d, wqkv)


def _attention_body(q_ref, k_ref, v_ref, m_ref):
    # one batch element, all heads:  q: (H,Sq,dep)  k,v: (H,Sk,dep)  m: (Sq|1, Sk)
    q = q_ref[0]
    k = k_ref[0]
    v = v_ref[0]
    m = m_ref[0]
    qk = jnp.einsum("hqd,hkd->hqk", q, k, preferred_element_type=jnp.float32)
    att = jnp.sqrt(qk)  # == torch.pow(qk, 0.5); NaN for qk < 0 in both frameworks
    att = att + m[None, :, :] * (-1000000000.0)
    mx = jnp.max(att, axis=-1, keepdims=True)
    e = jnp.exp(att - mx)
    denom = jnp.sum(e, axis=-1, keepdims=True)
    att = e * pl.reciprocal(denom, approx=True)   # EUP slot instead of VPU divide
    out = jnp.einsum("hqk,hkd->hqd", att, v, preferred_element_type=jnp.float32)
    return out, att


def _attn_kernel(q_ref, k_ref, v_ref, m_ref, o_ref):
    out, _ = _attention_body(q_ref, k_ref, v_ref, m_ref)
    o_ref[0] = out


def _attn_kernel_with_weights(q_ref, k_ref, v_ref, m_ref, o_ref, w_ref):
    out, att = _attention_body(q_ref, k_ref, v_ref, m_ref)
    o_ref[0] = out
    w_ref[0] = att


def sdp_attention(qh, kh, vh, mask, return_weights):
    """qh/kh/vh: (B, H, S, dep). mask: (1,1,Sq,Sk) or (B,1,1,Sk) or None."""
    B, H, Sq, dep = qh.shape
    Sk = kh.shape[2]
    if mask is None:
        mask = jnp.zeros((1, 1, Sk), jnp.float32)
    else:
        # (1,1,Sq,Sk) -> (1,Sq,Sk)  /  (B,1,1,Sk) -> (B,1,Sk); never materialize
        # the (B,H,Sq,Sk) broadcast.
        mask = mask.astype(jnp.float32).reshape(mask.shape[0], -1, mask.shape[-1])
    Bm, Sqm, _ = mask.shape
    mask_index = (lambda b: (b, 0, 0)) if Bm == B else (lambda b: (0, 0, 0))

    in_specs = [
        pl.BlockSpec((1, H, Sq, dep), lambda b: (b, 0, 0, 0)),
        pl.BlockSpec((1, H, Sk, dep), lambda b: (b, 0, 0, 0)),
        pl.BlockSpec((1, H, Sk, dep), lambda b: (b, 0, 0, 0)),
        pl.BlockSpec((1, Sqm, Sk), mask_index),
    ]
    out_spec_o = pl.BlockSpec((1, H, Sq, dep), lambda b: (b, 0, 0, 0))
    if return_weights:
        out_shape = (jax.ShapeDtypeStruct((B, H, Sq, dep), jnp.float32),
                     jax.ShapeDtypeStruct((B, H, Sq, Sk), jnp.float32))
        out_specs = (out_spec_o,
                     pl.BlockSpec((1, H, Sq, Sk), lambda b: (b, 0, 0, 0)))
        kernel = _attn_kernel_with_weights
    else:
        out_shape = jax.ShapeDtypeStruct((B, H, Sq, dep), jnp.float32)
        out_specs = out_spec_o
        kernel = _attn_kernel

    return pl.pallas_call(
        kernel,
        out_shape=out_shape,
        grid=(B,),
        in_specs=in_specs,
        out_specs=out_specs,
        compiler_params=pltpu.CompilerParams(dimension_semantics=("parallel",)),
    )(qh, kh, vh, mask)


def _post_self_attn_kernel(concat_ref, x_ref, enc_ref, wo_ref, g_ref, b_ref,
                           wq_ref, wkv_ref, out1_ref, q2_ref, kv2_ref):
    # Fused: Wo projection + residual + LayerNorm, then cross-attention Q
    # projection (from out1) and fused K|V projection (from enc_output).
    attn1 = jnp.dot(concat_ref[...], wo_ref[...], preferred_element_type=jnp.float32)
    out1 = _layernorm(x_ref[...] + attn1, g_ref[...], b_ref[...])
    out1_ref[...] = out1
    q2_ref[...] = jnp.dot(out1, wq_ref[...], preferred_element_type=jnp.float32)
    kv2_ref[...] = jnp.dot(enc_ref[...], wkv_ref[...], preferred_element_type=jnp.float32)


def post_self_attn(concat1, x2d, enc2d, wo, gamma, beta, wq, wkv):
    rows, d_model = x2d.shape
    enc_rows = enc2d.shape[0]
    return pl.pallas_call(
        _post_self_attn_kernel,
        out_shape=(jax.ShapeDtypeStruct((rows, d_model), jnp.float32),
                   jax.ShapeDtypeStruct((rows, d_model), jnp.float32),
                   jax.ShapeDtypeStruct((enc_rows, wkv.shape[1]), jnp.float32)),
    )(concat1, x2d, enc2d, wo, gamma, beta, wq, wkv)


def _post_cross_ffn_kernel(concat_ref, out1_ref, wo_ref, g_ref, b_ref,
                           w1_ref, b1_ref, w2_ref, b2_ref, out3_ref):
    # Fused: Wo projection + residual + LN + FFN (Linear/ReLU/Linear) + residual + LN.
    attn2 = jnp.dot(concat_ref[...], wo_ref[...], preferred_element_type=jnp.float32)
    out2 = _layernorm(out1_ref[...] + attn2, g_ref[...], b_ref[...])
    h = jnp.dot(out2, w1_ref[...], preferred_element_type=jnp.float32) + b1_ref[...]
    h = jnp.maximum(h, 0.0)  # ReLU
    ffn = jnp.dot(h, w2_ref[...], preferred_element_type=jnp.float32) + b2_ref[...]
    out3_ref[...] = _layernorm(out2 + ffn, g_ref[...], b_ref[...])


def post_cross_ffn(concat2, out1, wo, gamma, beta, w1, b1, w2, b2):
    rows, d_model = out1.shape
    return pl.pallas_call(
        _post_cross_ffn_kernel,
        out_shape=jax.ShapeDtypeStruct((rows, d_model), jnp.float32),
    )(concat2, out1, wo, gamma, beta, w1, b1, w2, b2)


# ------------------------------- model (glue) ---------------------------------
def decoder_layer(lp, x, enc_output, look_ahead_mask, padding_mask, n_heads,
                  return_weights):
    B, S, D = x.shape
    Se = enc_output.shape[1]
    dep = D // n_heads
    x2 = x.reshape(B * S, D)
    enc2 = enc_output.reshape(B * Se, D)

    # --- block 1: self attention (fused QKV projection) ----------------------
    qkv = qkv_proj(x2, lp["wqkv"]).reshape(B, S, 3 * D)
    # reference split_head = consecutive flat view()s (NOT a transpose); these
    # XLA reshapes reproduce the same row-major reinterpretation.
    qh = qkv[..., 0 * D:1 * D].reshape(B, n_heads, S, dep)
    kh = qkv[..., 1 * D:2 * D].reshape(B, n_heads, S, dep)
    vh = qkv[..., 2 * D:3 * D].reshape(B, n_heads, S, dep)
    if return_weights:
        oh1, aw1 = sdp_attention(qh, kh, vh, look_ahead_mask, True)
    else:
        oh1 = sdp_attention(qh, kh, vh, look_ahead_mask, False)
        aw1 = None
    concat1 = oh1.reshape(B * S, D)          # flat "concat heads" view

    # --- Wo + add&norm (+ cross-attention projections), fused ----------------
    out1, q2, kv2 = post_self_attn(concat1, x2, enc2, lp["wo"], lp["gamma"],
                                   lp["beta"], lp["wq"], lp["wkv"])

    # --- block 2: cross attention --------------------------------------------
    qh2 = q2.reshape(B, n_heads, S, dep)
    kv2 = kv2.reshape(B, Se, 2 * D)
    kh2 = kv2[..., :D].reshape(B, n_heads, Se, dep)
    vh2 = kv2[..., D:].reshape(B, n_heads, Se, dep)
    if return_weights:
        oh2, aw2 = sdp_attention(qh2, kh2, vh2, padding_mask, True)
    else:
        oh2 = sdp_attention(qh2, kh2, vh2, padding_mask, False)
        aw2 = None
    concat2 = oh2.reshape(B * S, D)

    # --- Wo + add&norm + FFN + add&norm, fused --------------------------------
    out3 = post_cross_ffn(concat2, out1, lp["wo"], lp["gamma"], lp["beta"],
                          lp["w1"], lp["b1"], lp["w2"], lp["b2"])
    return out3.reshape(B, S, D), aw1, aw2


def decoder_forward(params, tokens, enc_output, look_ahead_mask, padding_mask,
                    d_model, n_heads):
    seq_len = tokens.shape[1]
    x = jnp.take(params["embedding"], tokens, axis=0)  # embedding gather (glue)
    x = x * (d_model ** 0.5)
    x = x + params["pos_encoding"][:, :seq_len, :]
    # decoder-level dropout: eval-mode identity
    n = len(params["layers"])
    block1 = block2 = None
    for i, lp in enumerate(params["layers"]):
        last = (i == n - 1)
        x, aw1, aw2 = decoder_layer(lp, x, enc_output, look_ahead_mask,
                                    padding_mask, n_heads, return_weights=last)
        if last:
            block1, block2 = aw1, aw2
    # reference module only records the last layer's attention weights
    attn_wts = {
        f"decoder_layer{n}_block1": block1,
        f"decoder_layer{n}_block2": block2,
    }
    return x, attn_wts


# ----------------------------- deterministic init -----------------------------
def init_params(key, n_layers, d_model, n_heads, dff, vocab):
    keys = jax.random.split(key, 1 + n_layers)
    emb = jax.random.normal(keys[0], (vocab, d_model), jnp.float32)
    s = 1.0 / (d_model ** 0.5)
    layers = []
    for l in range(n_layers):
        ks = jax.random.split(keys[1 + l], 8)
        wq = jax.random.normal(ks[0], (d_model, d_model), jnp.float32) * s
        wk = jax.random.normal(ks[1], (d_model, d_model), jnp.float32) * s
        wv = jax.random.normal(ks[2], (d_model, d_model), jnp.float32) * s
        wo = jax.random.normal(ks[3], (d_model, d_model), jnp.float32) * s
        layers.append(dict(
            wqkv=jnp.concatenate([wq, wk, wv], axis=1),  # fused self-attn QKV
            wq=wq,                                       # cross-attn Q (shared mha)
            wkv=jnp.concatenate([wk, wv], axis=1),       # fused cross-attn K|V
            wo=wo,
            w1=jax.random.normal(ks[4], (d_model, dff), jnp.float32) * s,
            b1=jax.random.normal(ks[5], (1, dff), jnp.float32) * 0.01,
            w2=jax.random.normal(ks[6], (dff, d_model), jnp.float32) * (1.0 / dff ** 0.5),
            b2=jax.random.normal(ks[7], (1, d_model), jnp.float32) * 0.01,
            gamma=jnp.ones((1, d_model), jnp.float32),   # LayerNorm default init
            beta=jnp.zeros((1, d_model), jnp.float32),
        ))
    return {
        "embedding": emb,
        "pos_encoding": positional_encoding(MAX_TOKENS, d_model),
        "layers": layers,
    }


# ------------------------------------ main ------------------------------------
if __name__ == "__main__":
    n_layers, d_model, n_heads, dff, vocab = 2, 32, 4, 64, 50
    B, S, Se = 2, 8, 8  # batch, decoder seq len, encoder seq len

    key = jax.random.PRNGKey(0)
    kp, kt, ke = jax.random.split(key, 3)
    params = init_params(kp, n_layers, d_model, n_heads, dff, vocab)

    tokens = jax.random.randint(kt, (B, S), 0, vocab, dtype=jnp.int32)
    enc_output = jax.random.normal(ke, (B, Se, d_model), jnp.float32)

    # look-ahead (causal) mask: 1 where a future position must be masked
    look_ahead_mask = jnp.asarray(
        np.triu(np.ones((S, S), np.float32), k=1)[None, None]
    )  # (1,1,S,S)
    padding_mask = jnp.zeros((B, 1, 1, Se), jnp.float32)  # no padded encoder tokens

    fwd = jax.jit(functools.partial(decoder_forward, d_model=d_model, n_heads=n_heads))
    out, attn_wts = fwd(params, tokens, enc_output, look_ahead_mask, padding_mask)
    jax.block_until_ready((out, attn_wts))
    # NOTE: like the PyTorch module, torch.pow(qk, 0.5) on negative logits yields
    # NaN, which propagates; values may be NaN by construction of the reference.
    print("KERNEL_OK")
</pallas_src>

<mosaic_0001>
module attributes {stable_mosaic.version = 11 : i64} {
  func.func @_qkv_proj_kernel(%arg0: memref<16x32xf32, #tpu.memory_space<vmem>>, %arg1: memref<32x96xf32, #tpu.memory_space<vmem>>, %arg2: memref<16x96xf32, #tpu.memory_space<vmem>>) attributes {dimension_semantics = [], scalar_prefetch = 0 : i64, scratch_operands = 0 : i64, tpu.core_type = #tpu.core_type<tc>} {
    %c0 = arith.constant 0 : index
    %c0_0 = arith.constant 0 : index
    %0 = vector.load %arg0[%c0, %c0_0] : memref<16x32xf32, #tpu.memory_space<vmem>>, vector<16x32xf32>
    %c0_1 = arith.constant 0 : index
    %c0_2 = arith.constant 0 : index
    %1 = vector.load %arg1[%c0_1, %c0_2] : memref<32x96xf32, #tpu.memory_space<vmem>>, vector<32x96xf32>
    %cst = arith.constant dense<0.000000e+00> : vector<16x96xf32>
    %2 = tpu.matmul %0, %1, %cst {dimension_numbers = #tpu.dot_dimension_numbers<[1], [0], [0], [1], [0, 0, 1, 1], [], []>} : vector<16x32xf32>, vector<32x96xf32>, vector<16x96xf32> -> vector<16x96xf32>
    %c0_3 = arith.constant 0 : index
    %c0_4 = arith.constant 0 : index
    %3 = vector.load %arg2[%c0_3, %c0_4] : memref<16x96xf32, #tpu.memory_space<vmem>>, vector<16x96xf32>
    tpu.vector_store %arg2[%c0_3, %c0_4], %2 {strides = array<i32>} : memref<16x96xf32, #tpu.memory_space<vmem>>, vector<16x96xf32>,
    return
  }
}

module attributes {stable_mosaic.version = 11 : i64} {
  func.func @_attn_kernel(%arg0: i32, %arg1: memref<1x4x8x8xf32, #tpu.memory_space<vmem>>, %arg2: memref<1x4x8x8xf32, #tpu.memory_space<vmem>>, %arg3: memref<1x4x8x8xf32, #tpu.memory_space<vmem>>, %arg4: memref<1x8x8xf32, #tpu.memory_space<vmem>>, %arg5: memref<1x4x8x8xf32, #tpu.memory_space<vmem>>) attributes {dimension_semantics = [#tpu.dimension_semantics<parallel>], iteration_bounds = array<i64: 2>, scalar_prefetch = 0 : i64, scratch_operands = 0 : i64, tpu.core_type = #tpu.core_type<tc>, window_params = [{transform_indices = @transform_0, window_bounds = array<i64: 1, 4, 8, 8>}, {transform_indices = @transform_1, window_bounds = array<i64: 1, 4, 8, 8>}, {transform_indices = @transform_2, window_bounds = array<i64: 1, 4, 8, 8>}, {pipeline_mode = #tpu.pipeline_mode<synchronous>, transform_indices = @transform_3, window_bounds = array<i64: 1, 8, 8>}, {transform_indices = @transform_4, window_bounds = array<i64: 1, 4, 8, 8>}]} {
    %c0 = arith.constant 0 : index
    %c0_0 = arith.constant 0 : index
    %c0_1 = arith.constant 0 : index
    %c0_2 = arith.constant 0 : index
    %0 = vector.load %arg1[%c0, %c0_0, %c0_1, %c0_2] : memref<1x4x8x8xf32, #tpu.memory_space<vmem>>, vector<1x4x8x8xf32>
    %1 = vector.shape_cast %0 : vector<1x4x8x8xf32> to vector<4x8x8xf32>
    %c0_3 = arith.constant 0 : index
    %c0_4 = arith.constant 0 : index
    %c0_5 = arith.constant 0 : index
    %c0_6 = arith.constant 0 : index
    %2 = vector.load %arg2[%c0_3, %c0_4, %c0_5, %c0_6] : memref<1x4x8x8xf32, #tpu.memory_space<vmem>>, vector<1x4x8x8xf32>
    %3 = vector.shape_cast %2 : vector<1x4x8x8xf32> to vector<4x8x8xf32>
    %c0_7 = arith.constant 0 : index
    %c0_8 = arith.constant 0 : index
    %c0_9 = arith.constant 0 : index
    %c0_10 = arith.constant 0 : index
    %4 = vector.load %arg3[%c0_7, %c0_8, %c0_9, %c0_10] : memref<1x4x8x8xf32, #tpu.memory_space<vmem>>, vector<1x4x8x8xf32>
    %5 = vector.shape_cast %4 : vector<1x4x8x8xf32> to vector<4x8x8xf32>
    %c0_11 = arith.constant 0 : index
    %c0_12 = arith.constant 0 : index
    %c0_13 = arith.constant 0 : index
    %6 = vector.load %arg4[%c0_11, %c0_12, %c0_13] : memref<1x8x8xf32, #tpu.memory_space<vmem>>, vector<1x8x8xf32>
    %7 = vector.shape_cast %6 : vector<1x8x8xf32> to vector<8x8xf32>
    "tpu.trace_start"() <{level = 10 : i32, message = "hqd,hkd->hqk"}> : () -> ()
    %cst = arith.constant dense<0.000000e+00> : vector<4x8x8xf32>
    %8 = tpu.matmul %1, %3, %cst {dimension_numbers = #tpu.dot_dimension_numbers<[2], [2], [1], [1], [0, 0, 0, 1, 1, 1], [0], [0]>} : vector<4x8x8xf32>, vector<4x8x8xf32>, vector<4x8x8xf32> -> vector<4x8x8xf32>
    "tpu.trace_stop"() : () -> ()
    %9 = math.sqrt %8 : vector<4x8x8xf32>
    %10 = vector.shape_cast %7 : vector<8x8xf32> to vector<1x8x8xf32>
    %cst_14 = arith.constant -1.000000e+09 : f32
    %11 = vector.broadcast %cst_14 : f32 to vector<1x8x8xf32>
    %12 = arith.mulf %10, %11 : vector<1x8x8xf32>
    %13 = vector.broadcast %12 : vector<1x8x8xf32> to vector<4x8x8xf32>
    %14 = arith.addf %9, %13 : vector<4x8x8xf32>
    %cst_15 = arith.constant dense<0xFF800000> : vector<4x8xf32>
    %15 = vector.multi_reduction <maximumf>, %14, %cst_15 [2] : vector<4x8x8xf32> to vector<4x8xf32>
    %16 = vector.shape_cast %15 : vector<4x8xf32> to vector<4x8x1xf32>
    %17 = vector.broadcast %16 : vector<4x8x1xf32> to vector<4x8x8xf32>
    %18 = arith.subf %14, %17 : vector<4x8x8xf32>
    %19 = math.exp %18 : vector<4x8x8xf32>
    %cst_16 = arith.constant dense<0.000000e+00> : vector<4x8xf32>
    %20 = vector.multi_reduction <add>, %19, %cst_16 [2] : vector<4x8x8xf32> to vector<4x8xf32>
    %21 = vector.shape_cast %20 : vector<4x8xf32> to vector<4x8x1xf32>
    %22 = tpu.reciprocal %21 {approx = true} : vector<4x8x1xf32> -> vector<4x8x1xf32>
    %23 = vector.broadcast %22 : vector<4x8x1xf32> to vector<4x8x8xf32>
    %24 = arith.mulf %19, %23 : vector<4x8x8xf32>
    "tpu.trace_start"() <{level = 10 : i32, message = "hqk,hkd->hqd"}> : () -> ()
    %cst_17 = arith.constant dense<0.000000e+00> : vector<4x8x8xf32>
    %25 = tpu.matmul %24, %5, %cst_17 {dimension_numbers = #tpu.dot_dimension_numbers<[2], [1], [1], [2], [0, 0, 0, 1, 1, 2], [0], [0]>} : vector<4x8x8xf32>, vector<4x8x8xf32>, vector<4x8x8xf32> -> vector<4x8x8xf32>
    "tpu.trace_stop"() : () -> ()
    %c0_18 = arith.constant 0 : index
    %c0_19 = arith.constant 0 : index
    %c0_20 = arith.constant 0 : index
    %c0_21 = arith.constant 0 : index
    %26 = vector.load %arg5[%c0_18, %c0_19, %c0_20, %c0_21] : memref<1x4x8x8xf32, #tpu.memory_space<vmem>>, vector<1x4x8x8xf32>
    %27 = vector.shape_cast %26 : vector<1x4x8x8xf32> to vector<4x8x8xf32>
    %28 = vector.shape_cast %25 : vector<4x8x8xf32> to vector<1x4x8x8xf32>
    tpu.vector_store %arg5[%c0_18, %c0_19, %c0_20, %c0_21], %28 {strides = array<i32>} : memref<1x4x8x8xf32, #tpu.memory_space<vmem>>, vector<1x4x8x8xf32>,
    return
  }
  func.func @transform_0(%arg0: i32) -> (i32, i32, i32, i32) {
    %c0_i32 = arith.constant 0 : i32
    %c0_i32_0 = arith.constant 0 : i32
    %c0_i32_1 = arith.constant 0 : i32
    %c0_i32_2 = arith.constant 0 : i32
    return %arg0, %c0_i32, %c0_i32_0, %c0_i32_1 : i32, i32, i32, i32
  }
  func.func @transform_1(%arg0: i32) -> (i32, i32, i32, i32) {
    %c0_i32 = arith.constant 0 : i32
    %c0_i32_0 = arith.constant 0 : i32
    %c0_i32_1 = arith.constant 0 : i32
    %c0_i32_2 = arith.constant 0 : i32
    return %arg0, %c0_i32, %c0_i32_0, %c0_i32_1 : i32, i32, i32, i32
  }
  func.func @transform_2(%arg0: i32) -> (i32, i32, i32, i32) {
    %c0_i32 = arith.constant 0 : i32
    %c0_i32_0 = arith.constant 0 : i32
    %c0_i32_1 = arith.constant 0 : i32
    %c0_i32_2 = arith.constant 0 : i32
    return %arg0, %c0_i32, %c0_i32_0, %c0_i32_1 : i32, i32, i32, i32
  }
  func.func @transform_3(%arg0: i32) -> (i32, i32, i32) {
    %c0_i32 = arith.constant 0 : i32
    %c0_i32_0 = arith.constant 0 : i32
    %c0_i32_1 = arith.constant 0 : i32
    %c0_i32_2 = arith.constant 0 : i32
    return %c0_i32, %c0_i32_0, %c0_i32_1 : i32, i32, i32
  }
  func.func @transform_4(%arg0: i32) -> (i32, i32, i32, i32) {
    %c0_i32 = arith.constant 0 : i32
    %c0_i32_0 = arith.constant 0 : i32
    %c0_i32_1 = arith.constant 0 : i32
    %c0_i32_2 = arith.constant 0 : i32
    return %arg0, %c0_i32, %c0_i32_0, %c0_i32_1 : i32, i32, i32, i32
  }
}

module attributes {stable_mosaic.version = 11 : i64} {
  func.func @_post_self_attn_kernel(%arg0: memref<16x32xf32, #tpu.memory_space<vmem>>, %arg1: memref<16x32xf32, #tpu.memory_space<vmem>>, %arg2: memref<16x32xf32, #tpu.memory_space<vmem>>, %arg3: memref<32x32xf32, #tpu.memory_space<vmem>>, %arg4: memref<1x32xf32, #tpu.memory_space<vmem>>, %arg5: memref<1x32xf32, #tpu.memory_space<vmem>>, %arg6: memref<32x32xf32, #tpu.memory_space<vmem>>, %arg7: memref<32x64xf32, #tpu.memory_space<vmem>>, %arg8: memref<16x32xf32, #tpu.memory_space<vmem>>, %arg9: memref<16x32xf32, #tpu.memory_space<vmem>>, %arg10: memref<16x64xf32, #tpu.memory_space<vmem>>) attributes {dimension_semantics = [], scalar_prefetch = 0 : i64, scratch_operands = 0 : i64, tpu.core_type = #tpu.core_type<tc>} {
    %c0 = arith.constant 0 : index
    %c0_0 = arith.constant 0 : index
    %0 = vector.load %arg0[%c0, %c0_0] : memref<16x32xf32, #tpu.memory_space<vmem>>, vector<16x32xf32>
    %c0_1 = arith.constant 0 : index
    %c0_2 = arith.constant 0 : index
    %1 = vector.load %arg3[%c0_1, %c0_2] : memref<32x32xf32, #tpu.memory_space<vmem>>, vector<32x32xf32>
    %cst = arith.constant dense<0.000000e+00> : vector<16x32xf32>
    %2 = tpu.matmul %0, %1, %cst {dimension_numbers = #tpu.dot_dimension_numbers<[1], [0], [0], [1], [0, 0, 1, 1], [], []>} : vector<16x32xf32>, vector<32x32xf32>, vector<16x32xf32> -> vector<16x32xf32>
    %c0_3 = arith.constant 0 : index
    %c0_4 = arith.constant 0 : index
    %3 = vector.load %arg1[%c0_3, %c0_4] : memref<16x32xf32, #tpu.memory_space<vmem>>, vector<16x32xf32>
    %4 = arith.addf %3, %2 : vector<16x32xf32>
    %c0_5 = arith.constant 0 : index
    %c0_6 = arith.constant 0 : index
    %5 = vector.load %arg4[%c0_5, %c0_6] : memref<1x32xf32, #tpu.memory_space<vmem>>, vector<1x32xf32>
    %c0_7 = arith.constant 0 : index
    %c0_8 = arith.constant 0 : index
    %6 = vector.load %arg5[%c0_7, %c0_8] : memref<1x32xf32, #tpu.memory_space<vmem>>, vector<1x32xf32>
    %cst_9 = arith.constant dense<0.000000e+00> : vector<16xf32>
    %7 = vector.multi_reduction <add>, %4, %cst_9 [1] : vector<16x32xf32> to vector<16xf32>
    %8 = vector.shape_cast %7 : vector<16xf32> to vector<16x1xf32>
    %cst_10 = arith.constant 3.200000e+01 : f32
    %9 = vector.broadcast %cst_10 : f32 to vector<16x1xf32>
    %10 = arith.divf %8, %9 : vector<16x1xf32>
    %11 = vector.broadcast %10 : vector<16x1xf32> to vector<16x32xf32>
    %12 = arith.subf %4, %11 : vector<16x32xf32>
    %13 = arith.mulf %12, %12 : vector<16x32xf32>
    %cst_11 = arith.constant dense<0.000000e+00> : vector<16xf32>
    %14 = vector.multi_reduction <add>, %13, %cst_11 [1] : vector<16x32xf32> to vector<16xf32>
    %15 = vector.shape_cast %14 : vector<16xf32> to vector<16x1xf32>
    %cst_12 = arith.constant 3.200000e+01 : f32
    %16 = vector.broadcast %cst_12 : f32 to vector<16x1xf32>
    %17 = arith.divf %15, %16 : vector<16x1xf32>
    %18 = vector.broadcast %10 : vector<16x1xf32> to vector<16x32xf32>
    %19 = arith.subf %4, %18 : vector<16x32xf32>
    %cst_13 = arith.constant 9.99999997E-7 : f32
    %20 = vector.broadcast %cst_13 : f32 to vector<16x1xf32>
    %21 = arith.addf %17, %20 : vector<16x1xf32>
    %22 = math.rsqrt %21 : vector<16x1xf32>
    %23 = vector.broadcast %22 : vector<16x1xf32> to vector<16x32xf32>
    %24 = arith.mulf %19, %23 : vector<16x32xf32>
    %25 = vector.broadcast %5 : vector<1x32xf32> to vector<16x32xf32>
    %26 = arith.mulf %24, %25 : vector<16x32xf32>
    %27 = vector.broadcast %6 : vector<1x32xf32> to vector<16x32xf32>
    %28 = arith.addf %26, %27 : vector<16x32xf32>
    %c0_14 = arith.constant 0 : index
    %c0_15 = arith.constant 0 : index
    %29 = vector.load %arg8[%c0_14, %c0_15] : memref<16x32xf32, #tpu.memory_space<vmem>>, vector<16x32xf32>
    tpu.vector_store %arg8[%c0_14, %c0_15], %28 {strides = array<i32>} : memref<16x32xf32, #tpu.memory_space<vmem>>, vector<16x32xf32>,
    %c0_16 = arith.constant 0 : index
    %c0_17 = arith.constant 0 : index
    %30 = vector.load %arg6[%c0_16, %c0_17] : memref<32x32xf32, #tpu.memory_space<vmem>>, vector<32x32xf32>
    %cst_18 = arith.constant dense<0.000000e+00> : vector<16x32xf32>
    %31 = tpu.matmul %28, %30, %cst_18 {dimension_numbers = #tpu.dot_dimension_numbers<[1], [0], [0], [1], [0, 0, 1, 1], [], []>} : vector<16x32xf32>, vector<32x32xf32>, vector<16x32xf32> -> vector<16x32xf32>
    %c0_19 = arith.constant 0 : index
    %c0_20 = arith.constant 0 : index
    %32 = vector.load %arg9[%c0_19, %c0_20] : memref<16x32xf32, #tpu.memory_space<vmem>>, vector<16x32xf32>
    tpu.vector_store %arg9[%c0_19, %c0_20], %31 {strides = array<i32>} : memref<16x32xf32, #tpu.memory_space<vmem>>, vector<16x32xf32>,
    %c0_21 = arith.constant 0 : index
    %c0_22 = arith.constant 0 : index
    %33 = vector.load %arg2[%c0_21, %c0_22] : memref<16x32xf32, #tpu.memory_space<vmem>>, vector<16x32xf32>
    %c0_23 = arith.constant 0 : index
    %c0_24 = arith.constant 0 : index
    %34 = vector.load %arg7[%c0_23, %c0_24] : memref<32x64xf32, #tpu.memory_space<vmem>>, vector<32x64xf32>
    %cst_25 = arith.constant dense<0.000000e+00> : vector<16x64xf32>
    %35 = tpu.matmul %33, %34, %cst_25 {dimension_numbers = #tpu.dot_dimension_numbers<[1], [0], [0], [1], [0, 0, 1, 1], [], []>} : vector<16x32xf32>, vector<32x64xf32>, vector<16x64xf32> -> vector<16x64xf32>
    %c0_26 = arith.constant 0 : index
    %c0_27 = arith.constant 0 : index
    %36 = vector.load %arg10[%c0_26, %c0_27] : memref<16x64xf32, #tpu.memory_space<vmem>>, vector<16x64xf32>
    tpu.vector_store %arg10[%c0_26, %c0_27], %35 {strides = array<i32>} : memref<16x64xf32, #tpu.memory_space<vmem>>, vector<16x64xf32>,
    return
  }
}

module attributes {stable_mosaic.version = 11 : i64} {
  func.func @_attn_kernel(%arg0: i32, %arg1: memref<1x4x8x8xf32, #tpu.memory_space<vmem>>, %arg2: memref<1x4x8x8xf32, #tpu.memory_space<vmem>>, %arg3: memref<1x4x8x8xf32, #tpu.memory_space<vmem>>, %arg4: memref<1x1x8xf32, #tpu.memory_space<vmem>>, %arg5: memref<1x4x8x8xf32, #tpu.memory_space<vmem>>) attributes {dimension_semantics = [#tpu.dimension_semantics<parallel>], iteration_bounds = array<i64: 2>, scalar_prefetch = 0 : i64, scratch_operands = 0 : i64, tpu.core_type = #tpu.core_type<tc>, window_params = [{transform_indices = @transform_0, window_bounds = array<i64: 1, 4, 8, 8>}, {transform_indices = @transform_1, window_bounds = array<i64: 1, 4, 8, 8>}, {transform_indices = @transform_2, window_bounds = array<i64: 1, 4, 8, 8>}, {transform_indices = @transform_3, window_bounds = array<i64: 1, 1, 8>}, {transform_indices = @transform_4, window_bounds = array<i64: 1, 4, 8, 8>}]} {
    %c0 = arith.constant 0 : index
    %c0_0 = arith.constant 0 : index
    %c0_1 = arith.constant 0 : index
    %c0_2 = arith.constant 0 : index
    %0 = vector.load %arg1[%c0, %c0_0, %c0_1, %c0_2] : memref<1x4x8x8xf32, #tpu.memory_space<vmem>>, vector<1x4x8x8xf32>
    %1 = vector.shape_cast %0 : vector<1x4x8x8xf32> to vector<4x8x8xf32>
    %c0_3 = arith.constant 0 : index
    %c0_4 = arith.constant 0 : index
    %c0_5 = arith.constant 0 : index
    %c0_6 = arith.constant 0 : index
    %2 = vector.load %arg2[%c0_3, %c0_4, %c0_5, %c0_6] : memref<1x4x8x8xf32, #tpu.memory_space<vmem>>, vector<1x4x8x8xf32>
    %3 = vector.shape_cast %2 : vector<1x4x8x8xf32> to vector<4x8x8xf32>
    %c0_7 = arith.constant 0 : index
    %c0_8 = arith.constant 0 : index
    %c0_9 = arith.constant 0 : index
    %c0_10 = arith.constant 0 : index
    %4 = vector.load %arg3[%c0_7, %c0_8, %c0_9, %c0_10] : memref<1x4x8x8xf32, #tpu.memory_space<vmem>>, vector<1x4x8x8xf32>
    %5 = vector.shape_cast %4 : vector<1x4x8x8xf32> to vector<4x8x8xf32>
    %c0_11 = arith.constant 0 : index
    %c0_12 = arith.constant 0 : index
    %c0_13 = arith.constant 0 : index
    %6 = vector.load %arg4[%c0_11, %c0_12, %c0_13] : memref<1x1x8xf32, #tpu.memory_space<vmem>>, vector<1x1x8xf32>
    %7 = vector.shape_cast %6 : vector<1x1x8xf32> to vector<1x8xf32>
    "tpu.trace_start"() <{level = 10 : i32, message = "hqd,hkd->hqk"}> : () -> ()
    %cst = arith.constant dense<0.000000e+00> : vector<4x8x8xf32>
    %8 = tpu.matmul %1, %3, %cst {dimension_numbers = #tpu.dot_dimension_numbers<[2], [2], [1], [1], [0, 0, 0, 1, 1, 1], [0], [0]>} : vector<4x8x8xf32>, vector<4x8x8xf32>, vector<4x8x8xf32> -> vector<4x8x8xf32>
    "tpu.trace_stop"() : () -> ()
    %9 = math.sqrt %8 : vector<4x8x8xf32>
    %10 = vector.shape_cast %7 : vector<1x8xf32> to vector<1x1x8xf32>
    %cst_14 = arith.constant -1.000000e+09 : f32
    %11 = vector.broadcast %cst_14 : f32 to vector<1x1x8xf32>
    %12 = arith.mulf %10, %11 : vector<1x1x8xf32>
    %13 = vector.broadcast %12 : vector<1x1x8xf32> to vector<4x8x8xf32>
    %14 = arith.addf %9, %13 : vector<4x8x8xf32>
    %cst_15 = arith.constant dense<0xFF800000> : vector<4x8xf32>
    %15 = vector.multi_reduction <maximumf>, %14, %cst_15 [2] : vector<4x8x8xf32> to vector<4x8xf32>
    %16 = vector.shape_cast %15 : vector<4x8xf32> to vector<4x8x1xf32>
    %17 = vector.broadcast %16 : vector<4x8x1xf32> to vector<4x8x8xf32>
    %18 = arith.subf %14, %17 : vector<4x8x8xf32>
    %19 = math.exp %18 : vector<4x8x8xf32>
    %cst_16 = arith.constant dense<0.000000e+00> : vector<4x8xf32>
    %20 = vector.multi_reduction <add>, %19, %cst_16 [2] : vector<4x8x8xf32> to vector<4x8xf32>
    %21 = vector.shape_cast %20 : vector<4x8xf32> to vector<4x8x1xf32>
    %22 = tpu.reciprocal %21 {approx = true} : vector<4x8x1xf32> -> vector<4x8x1xf32>
    %23 = vector.broadcast %22 : vector<4x8x1xf32> to vector<4x8x8xf32>
    %24 = arith.mulf %19, %23 : vector<4x8x8xf32>
    "tpu.trace_start"() <{level = 10 : i32, message = "hqk,hkd->hqd"}> : () -> ()
    %cst_17 = arith.constant dense<0.000000e+00> : vector<4x8x8xf32>
    %25 = tpu.matmul %24, %5, %cst_17 {dimension_numbers = #tpu.dot_dimension_numbers<[2], [1], [1], [2], [0, 0, 0, 1, 1, 2], [0], [0]>} : vector<4x8x8xf32>, vector<4x8x8xf32>, vector<4x8x8xf32> -> vector<4x8x8xf32>
    "tpu.trace_stop"() : () -> ()
    %c0_18 = arith.constant 0 : index
    %c0_19 = arith.constant 0 : index
    %c0_20 = arith.constant 0 : index
    %c0_21 = arith.constant 0 : index
    %26 = vector.load %arg5[%c0_18, %c0_19, %c0_20, %c0_21] : memref<1x4x8x8xf32, #tpu.memory_space<vmem>>, vector<1x4x8x8xf32>
    %27 = vector.shape_cast %26 : vector<1x4x8x8xf32> to vector<4x8x8xf32>
    %28 = vector.shape_cast %25 : vector<4x8x8xf32> to vector<1x4x8x8xf32>
    tpu.vector_store %arg5[%c0_18, %c0_19, %c0_20, %c0_21], %28 {strides = array<i32>} : memref<1x4x8x8xf32, #tpu.memory_space<vmem>>, vector<1x4x8x8xf32>,
    return
  }
  func.func @transform_0(%arg0: i32) -> (i32, i32, i32, i32) {
    %c0_i32 = arith.constant 0 : i32
    %c0_i32_0 = arith.constant 0 : i32
    %c0_i32_1 = arith.constant 0 : i32
    %c0_i32_2 = arith.constant 0 : i32
    return %arg0, %c0_i32, %c0_i32_0, %c0_i32_1 : i32, i32, i32, i32
  }
  func.func @transform_1(%arg0: i32) -> (i32, i32, i32, i32) {
    %c0_i32 = arith.constant 0 : i32
    %c0_i32_0 = arith.constant 0 : i32
    %c0_i32_1 = arith.constant 0 : i32
    %c0_i32_2 = arith.constant 0 : i32
    return %arg0, %c0_i32, %c0_i32_0, %c0_i32_1 : i32, i32, i32, i32
  }
  func.func @transform_2(%arg0: i32) -> (i32, i32, i32, i32) {
    %c0_i32 = arith.constant 0 : i32
    %c0_i32_0 = arith.constant 0 : i32
    %c0_i32_1 = arith.constant 0 : i32
    %c0_i32_2 = arith.constant 0 : i32
    return %arg0, %c0_i32, %c0_i32_0, %c0_i32_1 : i32, i32, i32, i32
  }
  func.func @transform_3(%arg0: i32) -> (i32, i32, i32) {
    %c0_i32 = arith.constant 0 : i32
    %c0_i32_0 = arith.constant 0 : i32
    %c0_i32_1 = arith.constant 0 : i32
    return %arg0, %c0_i32, %c0_i32_0 : i32, i32, i32
  }
  func.func @transform_4(%arg0: i32) -> (i32, i32, i32, i32) {
    %c0_i32 = arith.constant 0 : i32
    %c0_i32_0 = arith.constant 0 : i32
    %c0_i32_1 = arith.constant 0 : i32
    %c0_i32_2 = arith.constant 0 : i32
    return %arg0, %c0_i32, %c0_i32_0, %c0_i32_1 : i32, i32, i32, i32
  }
}

module attributes {stable_mosaic.version = 11 : i64} {
  func.func @_attn_kernel_with_weights(%arg0: i32, %arg1: memref<1x4x8x8xf32, #tpu.memory_space<vmem>>, %arg2: memref<1x4x8x8xf32, #tpu.memory_space<vmem>>, %arg3: memref<1x4x8x8xf32, #tpu.memory_space<vmem>>, %arg4: memref<1x8x8xf32, #tpu.memory_space<vmem>>, %arg5: memref<1x4x8x8xf32, #tpu.memory_space<vmem>>, %arg6: memref<1x4x8x8xf32, #tpu.memory_space<vmem>>) attributes {dimension_semantics = [#tpu.dimension_semantics<parallel>], iteration_bounds = array<i64: 2>, scalar_prefetch = 0 : i64, scratch_operands = 0 : i64, tpu.core_type = #tpu.core_type<tc>, window_params = [{transform_indices = @transform_0, window_bounds = array<i64: 1, 4, 8, 8>}, {transform_indices = @transform_1, window_bounds = array<i64: 1, 4, 8, 8>}, {transform_indices = @transform_2, window_bounds = array<i64: 1, 4, 8, 8>}, {pipeline_mode = #tpu.pipeline_mode<synchronous>, transform_indices = @transform_3, window_bounds = array<i64: 1, 8, 8>}, {transform_indices = @transform_4, window_bounds = array<i64: 1, 4, 8, 8>}, {transform_indices = @transform_5, window_bounds = array<i64: 1, 4, 8, 8>}]} {
    %c0 = arith.constant 0 : index
    %c0_0 = arith.constant 0 : index
    %c0_1 = arith.constant 0 : index
    %c0_2 = arith.constant 0 : index
    %0 = vector.load %arg1[%c0, %c0_0, %c0_1, %c0_2] : memref<1x4x8x8xf32, #tpu.memory_space<vmem>>, vector<1x4x8x8xf32>
    %1 = vector.shape_cast %0 : vector<1x4x8x8xf32> to vector<4x8x8xf32>
    %c0_3 = arith.constant 0 : index
    %c0_4 = arith.constant 0 : index
    %c0_5 = arith.constant 0 : index
    %c0_6 = arith.constant 0 : index
    %2 = vector.load %arg2[%c0_3, %c0_4, %c0_5, %c0_6] : memref<1x4x8x8xf32, #tpu.memory_space<vmem>>, vector<1x4x8x8xf32>
    %3 = vector.shape_cast %2 : vector<1x4x8x8xf32> to vector<4x8x8xf32>
    %c0_7 = arith.constant 0 : index
    %c0_8 = arith.constant 0 : index
    %c0_9 = arith.constant 0 : index
    %c0_10 = arith.constant 0 : index
    %4 = vector.load %arg3[%c0_7, %c0_8, %c0_9, %c0_10] : memref<1x4x8x8xf32, #tpu.memory_space<vmem>>, vector<1x4x8x8xf32>
    %5 = vector.shape_cast %4 : vector<1x4x8x8xf32> to vector<4x8x8xf32>
    %c0_11 = arith.constant 0 : index
    %c0_12 = arith.constant 0 : index
    %c0_13 = arith.constant 0 : index
    %6 = vector.load %arg4[%c0_11, %c0_12, %c0_13] : memref<1x8x8xf32, #tpu.memory_space<vmem>>, vector<1x8x8xf32>
    %7 = vector.shape_cast %6 : vector<1x8x8xf32> to vector<8x8xf32>
    "tpu.trace_start"() <{level = 10 : i32, message = "hqd,hkd->hqk"}> : () -> ()
    %cst = arith.constant dense<0.000000e+00> : vector<4x8x8xf32>
    %8 = tpu.matmul %1, %3, %cst {dimension_numbers = #tpu.dot_dimension_numbers<[2], [2], [1], [1], [0, 0, 0, 1, 1, 1], [0], [0]>} : vector<4x8x8xf32>, vector<4x8x8xf32>, vector<4x8x8xf32> -> vector<4x8x8xf32>
    "tpu.trace_stop"() : () -> ()
    %9 = math.sqrt %8 : vector<4x8x8xf32>
    %10 = vector.shape_cast %7 : vector<8x8xf32> to vector<1x8x8xf32>
    %cst_14 = arith.constant -1.000000e+09 : f32
    %11 = vector.broadcast %cst_14 : f32 to vector<1x8x8xf32>
    %12 = arith.mulf %10, %11 : vector<1x8x8xf32>
    %13 = vector.broadcast %12 : vector<1x8x8xf32> to vector<4x8x8xf32>
    %14 = arith.addf %9, %13 : vector<4x8x8xf32>
    %cst_15 = arith.constant dense<0xFF800000> : vector<4x8xf32>
    %15 = vector.multi_reduction <maximumf>, %14, %cst_15 [2] : vector<4x8x8xf32> to vector<4x8xf32>
    %16 = vector.shape_cast %15 : vector<4x8xf32> to vector<4x8x1xf32>
    %17 = vector.broadcast %16 : vector<4x8x1xf32> to vector<4x8x8xf32>
    %18 = arith.subf %14, %17 : vector<4x8x8xf32>
    %19 = math.exp %18 : vector<4x8x8xf32>
    %cst_16 = arith.constant dense<0.000000e+00> : vector<4x8xf32>
    %20 = vector.multi_reduction <add>, %19, %cst_16 [2] : vector<4x8x8xf32> to vector<4x8xf32>
    %21 = vector.shape_cast %20 : vector<4x8xf32> to vector<4x8x1xf32>
    %22 = tpu.reciprocal %21 {approx = true} : vector<4x8x1xf32> -> vector<4x8x1xf32>
    %23 = vector.broadcast %22 : vector<4x8x1xf32> to vector<4x8x8xf32>
    %24 = arith.mulf %19, %23 : vector<4x8x8xf32>
    "tpu.trace_start"() <{level = 10 : i32, message = "hqk,hkd->hqd"}> : () -> ()
    %cst_17 = arith.constant dense<0.000000e+00> : vector<4x8x8xf32>
    %25 = tpu.matmul %24, %5, %cst_17 {dimension_numbers = #tpu.dot_dimension_numbers<[2], [1], [1], [2], [0, 0, 0, 1, 1, 2], [0], [0]>} : vector<4x8x8xf32>, vector<4x8x8xf32>, vector<4x8x8xf32> -> vector<4x8x8xf32>
    "tpu.trace_stop"() : () -> ()
    %c0_18 = arith.constant 0 : index
    %c0_19 = arith.constant 0 : index
    %c0_20 = arith.constant 0 : index
    %c0_21 = arith.constant 0 : index
    %26 = vector.load %arg5[%c0_18, %c0_19, %c0_20, %c0_21] : memref<1x4x8x8xf32, #tpu.memory_space<vmem>>, vector<1x4x8x8xf32>
    %27 = vector.shape_cast %26 : vector<1x4x8x8xf32> to vector<4x8x8xf32>
    %28 = vector.shape_cast %25 : vector<4x8x8xf32> to vector<1x4x8x8xf32>
    tpu.vector_store %arg5[%c0_18, %c0_19, %c0_20, %c0_21], %28 {strides = array<i32>} : memref<1x4x8x8xf32, #tpu.memory_space<vmem>>, vector<1x4x8x8xf32>,
    %c0_22 = arith.constant 0 : index
    %c0_23 = arith.constant 0 : index
    %c0_24 = arith.constant 0 : index
    %c0_25 = arith.constant 0 : index
    %29 = vector.load %arg6[%c0_22, %c0_23, %c0_24, %c0_25] : memref<1x4x8x8xf32, #tpu.memory_space<vmem>>, vector<1x4x8x8xf32>
    %30 = vector.shape_cast %29 : vector<1x4x8x8xf32> to vector<4x8x8xf32>
    %31 = vector.shape_cast %24 : vector<4x8x8xf32> to vector<1x4x8x8xf32>
    tpu.vector_store %arg6[%c0_22, %c0_23, %c0_24, %c0_25], %31 {strides = array<i32>} : memref<1x4x8x8xf32, #tpu.memory_space<vmem>>, vector<1x4x8x8xf32>,
    return
  }
  func.func @transform_0(%arg0: i32) -> (i32, i32, i32, i32) {
    %c0_i32 = arith.constant 0 : i32
    %c0_i32_0 = arith.constant 0 : i32
    %c0_i32_1 = arith.constant 0 : i32
    %c0_i32_2 = arith.constant 0 : i32
    return %arg0, %c0_i32, %c0_i32_0, %c0_i32_1 : i32, i32, i32, i32
  }
  func.func @transform_1(%arg0: i32) -> (i32, i32, i32, i32) {
    %c0_i32 = arith.constant 0 : i32
    %c0_i32_0 = arith.constant 0 : i32
    %c0_i32_1 = arith.constant 0 : i32
    %c0_i32_2 = arith.constant 0 : i32
    return %arg0, %c0_i32, %c0_i32_0, %c0_i32_1 : i32, i32, i32, i32
  }
  func.func @transform_2(%arg0: i32) -> (i32, i32, i32, i32) {
    %c0_i32 = arith.constant 0 : i32
    %c0_i32_0 = arith.constant 0 : i32
    %c0_i32_1 = arith.constant 0 : i32
    %c0_i32_2 = arith.constant 0 : i32
    return %arg0, %c0_i32, %c0_i32_0, %c0_i32_1 : i32, i32, i32, i32
  }
  func.func @transform_3(%arg0: i32) -> (i32, i32, i32) {
    %c0_i32 = arith.constant 0 : i32
    %c0_i32_0 = arith.constant 0 : i32
    %c0_i32_1 = arith.constant 0 : i32
    %c0_i32_2 = arith.constant 0 : i32
    return %c0_i32, %c0_i32_0, %c0_i32_1 : i32, i32, i32
  }
  func.func @transform_4(%arg0: i32) -> (i32, i32, i32, i32) {
    %c0_i32 = arith.constant 0 : i32
    %c0_i32_0 = arith.constant 0 : i32
    %c0_i32_1 = arith.constant 0 : i32
    %c0_i32_2 = arith.constant 0 : i32
    return %arg0, %c0_i32, %c0_i32_0, %c0_i32_1 : i32, i32, i32, i32
  }
  func.func @transform_5(%arg0: i32) -> (i32, i32, i32, i32) {
    %c0_i32 = arith.constant 0 : i32
    %c0_i32_0 = arith.constant 0 : i32
    %c0_i32_1 = arith.constant 0 : i32
    %c0_i32_2 = arith.constant 0 : i32
    return %arg0, %c0_i32, %c0_i32_0, %c0_i32_1 : i32, i32, i32, i32
  }
}

module attributes {stable_mosaic.version = 11 : i64} {
  func.func @_attn_kernel_with_weights(%arg0: i32, %arg1: memref<1x4x8x8xf32, #tpu.memory_space<vmem>>, %arg2: memref<1x4x8x8xf32, #tpu.memory_space<vmem>>, %arg3: memref<1x4x8x8xf32, #tpu.memory_space<vmem>>, %arg4: memref<1x1x8xf32, #tpu.memory_space<vmem>>, %arg5: memref<1x4x8x8xf32, #tpu.memory_space<vmem>>, %arg6: memref<1x4x8x8xf32, #tpu.memory_space<vmem>>) attributes {dimension_semantics = [#tpu.dimension_semantics<parallel>], iteration_bounds = array<i64: 2>, scalar_prefetch = 0 : i64, scratch_operands = 0 : i64, tpu.core_type = #tpu.core_type<tc>, window_params = [{transform_indices = @transform_0, window_bounds = array<i64: 1, 4, 8, 8>}, {transform_indices = @transform_1, window_bounds = array<i64: 1, 4, 8, 8>}, {transform_indices = @transform_2, window_bounds = array<i64: 1, 4, 8, 8>}, {transform_indices = @transform_3, window_bounds = array<i64: 1, 1, 8>}, {transform_indices = @transform_4, window_bounds = array<i64: 1, 4, 8, 8>}, {transform_indices = @transform_5, window_bounds = array<i64: 1, 4, 8, 8>}]} {
    %c0 = arith.constant 0 : index
    %c0_0 = arith.constant 0 : index
    %c0_1 = arith.constant 0 : index
    %c0_2 = arith.constant 0 : index
    %0 = vector.load %arg1[%c0, %c0_0, %c0_1, %c0_2] : memref<1x4x8x8xf32, #tpu.memory_space<vmem>>, vector<1x4x8x8xf32>
    %1 = vector.shape_cast %0 : vector<1x4x8x8xf32> to vector<4x8x8xf32>
    %c0_3 = arith.constant 0 : index
    %c0_4 = arith.constant 0 : index
    %c0_5 = arith.constant 0 : index
    %c0_6 = arith.constant 0 : index
    %2 = vector.load %arg2[%c0_3, %c0_4, %c0_5, %c0_6] : memref<1x4x8x8xf32, #tpu.memory_space<vmem>>, vector<1x4x8x8xf32>
    %3 = vector.shape_cast %2 : vector<1x4x8x8xf32> to vector<4x8x8xf32>
    %c0_7 = arith.constant 0 : index
    %c0_8 = arith.constant 0 : index
    %c0_9 = arith.constant 0 : index
    %c0_10 = arith.constant 0 : index
    %4 = vector.load %arg3[%c0_7, %c0_8, %c0_9, %c0_10] : memref<1x4x8x8xf32, #tpu.memory_space<vmem>>, vector<1x4x8x8xf32>
    %5 = vector.shape_cast %4 : vector<1x4x8x8xf32> to vector<4x8x8xf32>
    %c0_11 = arith.constant 0 : index
    %c0_12 = arith.constant 0 : index
    %c0_13 = arith.constant 0 : index
    %6 = vector.load %arg4[%c0_11, %c0_12, %c0_13] : memref<1x1x8xf32, #tpu.memory_space<vmem>>, vector<1x1x8xf32>
    %7 = vector.shape_cast %6 : vector<1x1x8xf32> to vector<1x8xf32>
    "tpu.trace_start"() <{level = 10 : i32, message = "hqd,hkd->hqk"}> : () -> ()
    %cst = arith.constant dense<0.000000e+00> : vector<4x8x8xf32>
    %8 = tpu.matmul %1, %3, %cst {dimension_numbers = #tpu.dot_dimension_numbers<[2], [2], [1], [1], [0, 0, 0, 1, 1, 1], [0], [0]>} : vector<4x8x8xf32>, vector<4x8x8xf32>, vector<4x8x8xf32> -> vector<4x8x8xf32>
    "tpu.trace_stop"() : () -> ()
    %9 = math.sqrt %8 : vector<4x8x8xf32>
    %10 = vector.shape_cast %7 : vector<1x8xf32> to vector<1x1x8xf32>
    %cst_14 = arith.constant -1.000000e+09 : f32
    %11 = vector.broadcast %cst_14 : f32 to vector<1x1x8xf32>
    %12 = arith.mulf %10, %11 : vector<1x1x8xf32>
    %13 = vector.broadcast %12 : vector<1x1x8xf32> to vector<4x8x8xf32>
    %14 = arith.addf %9, %13 : vector<4x8x8xf32>
    %cst_15 = arith.constant dense<0xFF800000> : vector<4x8xf32>
    %15 = vector.multi_reduction <maximumf>, %14, %cst_15 [2] : vector<4x8x8xf32> to vector<4x8xf32>
    %16 = vector.shape_cast %15 : vector<4x8xf32> to vector<4x8x1xf32>
    %17 = vector.broadcast %16 : vector<4x8x1xf32> to vector<4x8x8xf32>
    %18 = arith.subf %14, %17 : vector<4x8x8xf32>
    %19 = math.exp %18 : vector<4x8x8xf32>
    %cst_16 = arith.constant dense<0.000000e+00> : vector<4x8xf32>
    %20 = vector.multi_reduction <add>, %19, %cst_16 [2] : vector<4x8x8xf32> to vector<4x8xf32>
    %21 = vector.shape_cast %20 : vector<4x8xf32> to vector<4x8x1xf32>
    %22 = tpu.reciprocal %21 {approx = true} : vector<4x8x1xf32> -> vector<4x8x1xf32>
    %23 = vector.broadcast %22 : vector<4x8x1xf32> to vector<4x8x8xf32>
    %24 = arith.mulf %19, %23 : vector<4x8x8xf32>
    "tpu.trace_start"() <{level = 10 : i32, message = "hqk,hkd->hqd"}> : () -> ()
    %cst_17 = arith.constant dense<0.000000e+00> : vector<4x8x8xf32>
    %25 = tpu.matmul %24, %5, %cst_17 {dimension_numbers = #tpu.dot_dimension_numbers<[2], [1], [1], [2], [0, 0, 0, 1, 1, 2], [0], [0]>} : vector<4x8x8xf32>, vector<4x8x8xf32>, vector<4x8x8xf32> -> vector<4x8x8xf32>
    "tpu.trace_stop"() : () -> ()
    %c0_18 = arith.constant 0 : index
    %c0_19 = arith.constant 0 : index
    %c0_20 = arith.constant 0 : index
    %c0_21 = arith.constant 0 : index
    %26 = vector.load %arg5[%c0_18, %c0_19, %c0_20, %c0_21] : memref<1x4x8x8xf32, #tpu.memory_space<vmem>>, vector<1x4x8x8xf32>
    %27 = vector.shape_cast %26 : vector<1x4x8x8xf32> to vector<4x8x8xf32>
    %28 = vector.shape_cast %25 : vector<4x8x8xf32> to vector<1x4x8x8xf32>
    tpu.vector_store %arg5[%c0_18, %c0_19, %c0_20, %c0_21], %28 {strides = array<i32>} : memref<1x4x8x8xf32, #tpu.memory_space<vmem>>, vector<1x4x8x8xf32>,
    %c0_22 = arith.constant 0 : index
    %c0_23 = arith.constant 0 : index
    %c0_24 = arith.constant 0 : index
    %c0_25 = arith.constant 0 : index
    %29 = vector.load %arg6[%c0_22, %c0_23, %c0_24, %c0_25] : memref<1x4x8x8xf32, #tpu.memory_space<vmem>>, vector<1x4x8x8xf32>
    %30 = vector.shape_cast %29 : vector<1x4x8x8xf32> to vector<4x8x8xf32>
    %31 = vector.shape_cast %24 : vector<4x8x8xf32> to vector<1x4x8x8xf32>
    tpu.vector_store %arg6[%c0_22, %c0_23, %c0_24, %c0_25], %31 {strides = array<i32>} : memref<1x4x8x8xf32, #tpu.memory_space<vmem>>, vector<1x4x8x8xf32>,
    return
  }
  func.func @transform_0(%arg0: i32) -> (i32, i32, i32, i32) {
    %c0_i32 = arith.constant 0 : i32
    %c0_i32_0 = arith.constant 0 : i32
    %c0_i32_1 = arith.constant 0 : i32
    %c0_i32_2 = arith.constant 0 : i32
    return %arg0, %c0_i32, %c0_i32_0, %c0_i32_1 : i32, i32, i32, i32
  }
  func.func @transform_1(%arg0: i32) -> (i32, i32, i32, i32) {
    %c0_i32 = arith.constant 0 : i32
    %c0_i32_0 = arith.constant 0 : i32
    %c0_i32_1 = arith.constant 0 : i32
    %c0_i32_2 = arith.constant 0 : i32
    return %arg0, %c0_i32, %c0_i32_0, %c0_i32_1 : i32, i32, i32, i32
  }
  func.func @transform_2(%arg0: i32) -> (i32, i32, i32, i32) {
    %c0_i32 = arith.constant 0 : i32
    %c0_i32_0 = arith.constant 0 : i32
    %c0_i32_1 = arith.constant 0 : i32
    %c0_i32_2 = arith.constant 0 : i32
    return %arg0, %c0_i32, %c0_i32_0, %c0_i32_1 : i32, i32, i32, i32
  }
  func.func @transform_3(%arg0: i32) -> (i32, i32, i32) {
    %c0_i32 = arith.constant 0 : i32
    %c0_i32_0 = arith.constant 0 : i32
    %c0_i32_1 = arith.constant 0 : i32
    return %arg0, %c0_i32, %c0_i32_0 : i32, i32, i32
  }
  func.func @transform_4(%arg0: i32) -> (i32, i32, i32, i32) {
    %c0_i32 = arith.constant 0 : i32
    %c0_i32_0 = arith.constant 0 : i32
    %c0_i32_1 = arith.constant 0 : i32
    %c0_i32_2 = arith.constant 0 : i32
    return %arg0, %c0_i32, %c0_i32_0, %c0_i32_1 : i32, i32, i32, i32
  }
  func.func @transform_5(%arg0: i32) -> (i32, i32, i32, i32) {
    %c0_i32 = arith.constant 0 : i32
    %c0_i32_0 = arith.constant 0 : i32
    %c0_i32_1 = arith.constant 0 : i32
    %c0_i32_2 = arith.constant 0 : i32
    return %arg0, %c0_i32, %c0_i32_0, %c0_i32_1 : i32, i32, i32, i32
  }
}

module attributes {stable_mosaic.version = 11 : i64} {
  func.func @_post_cross_ffn_kernel(%arg0: memref<16x32xf32, #tpu.memory_space<vmem>>, %arg1: memref<16x32xf32, #tpu.memory_space<vmem>>, %arg2: memref<32x32xf32, #tpu.memory_space<vmem>>, %arg3: memref<1x32xf32, #tpu.memory_space<vmem>>, %arg4: memref<1x32xf32, #tpu.memory_space<vmem>>, %arg5: memref<32x64xf32, #tpu.memory_space<vmem>>, %arg6: memref<1x64xf32, #tpu.memory_space<vmem>>, %arg7: memref<64x32xf32, #tpu.memory_space<vmem>>, %arg8: memref<1x32xf32, #tpu.memory_space<vmem>>, %arg9: memref<16x32xf32, #tpu.memory_space<vmem>>) attributes {dimension_semantics = [], scalar_prefetch = 0 : i64, scratch_operands = 0 : i64, tpu.core_type = #tpu.core_type<tc>} {
    %c0 = arith.constant 0 : index
    %c0_0 = arith.constant 0 : index
    %0 = vector.load %arg0[%c0, %c0_0] : memref<16x32xf32, #tpu.memory_space<vmem>>, vector<16x32xf32>
    %c0_1 = arith.constant 0 : index
    %c0_2 = arith.constant 0 : index
    %1 = vector.load %arg2[%c0_1, %c0_2] : memref<32x32xf32, #tpu.memory_space<vmem>>, vector<32x32xf32>
    %cst = arith.constant dense<0.000000e+00> : vector<16x32xf32>
    %2 = tpu.matmul %0, %1, %cst {dimension_numbers = #tpu.dot_dimension_numbers<[1], [0], [0], [1], [0, 0, 1, 1], [], []>} : vector<16x32xf32>, vector<32x32xf32>, vector<16x32xf32> -> vector<16x32xf32>
    %c0_3 = arith.constant 0 : index
    %c0_4 = arith.constant 0 : index
    %3 = vector.load %arg1[%c0_3, %c0_4] : memref<16x32xf32, #tpu.memory_space<vmem>>, vector<16x32xf32>
    %4 = arith.addf %3, %2 : vector<16x32xf32>
    %c0_5 = arith.constant 0 : index
    %c0_6 = arith.constant 0 : index
    %5 = vector.load %arg3[%c0_5, %c0_6] : memref<1x32xf32, #tpu.memory_space<vmem>>, vector<1x32xf32>
    %c0_7 = arith.constant 0 : index
    %c0_8 = arith.constant 0 : index
    %6 = vector.load %arg4[%c0_7, %c0_8] : memref<1x32xf32, #tpu.memory_space<vmem>>, vector<1x32xf32>
    %cst_9 = arith.constant dense<0.000000e+00> : vector<16xf32>
    %7 = vector.multi_reduction <add>, %4, %cst_9 [1] : vector<16x32xf32> to vector<16xf32>
    %8 = vector.shape_cast %7 : vector<16xf32> to vector<16x1xf32>
    %cst_10 = arith.constant 3.200000e+01 : f32
    %9 = vector.broadcast %cst_10 : f32 to vector<16x1xf32>
    %10 = arith.divf %8, %9 : vector<16x1xf32>
    %11 = vector.broadcast %10 : vector<16x1xf32> to vector<16x32xf32>
    %12 = arith.subf %4, %11 : vector<16x32xf32>
    %13 = arith.mulf %12, %12 : vector<16x32xf32>
    %cst_11 = arith.constant dense<0.000000e+00> : vector<16xf32>
    %14 = vector.multi_reduction <add>, %13, %cst_11 [1] : vector<16x32xf32> to vector<16xf32>
    %15 = vector.shape_cast %14 : vector<16xf32> to vector<16x1xf32>
    %cst_12 = arith.constant 3.200000e+01 : f32
    %16 = vector.broadcast %cst_12 : f32 to vector<16x1xf32>
    %17 = arith.divf %15, %16 : vector<16x1xf32>
    %18 = vector.broadcast %10 : vector<16x1xf32> to vector<16x32xf32>
    %19 = arith.subf %4, %18 : vector<16x32xf32>
    %cst_13 = arith.constant 9.99999997E-7 : f32
    %20 = vector.broadcast %cst_13 : f32 to vector<16x1xf32>
    %21 = arith.addf %17, %20 : vector<16x1xf32>
    %22 = math.rsqrt %21 : vector<16x1xf32>
    %23 = vector.broadcast %22 : vector<16x1xf32> to vector<16x32xf32>
    %24 = arith.mulf %19, %23 : vector<16x32xf32>
    %25 = vector.broadcast %5 : vector<1x32xf32> to vector<16x32xf32>
    %26 = arith.mulf %24, %25 : vector<16x32xf32>
    %27 = vector.broadcast %6 : vector<1x32xf32> to vector<16x32xf32>
    %28 = arith.addf %26, %27 : vector<16x32xf32>
    %c0_14 = arith.constant 0 : index
    %c0_15 = arith.constant 0 : index
    %29 = vector.load %arg5[%c0_14, %c0_15] : memref<32x64xf32, #tpu.memory_space<vmem>>, vector<32x64xf32>
    %cst_16 = arith.constant dense<0.000000e+00> : vector<16x64xf32>
    %30 = tpu.matmul %28, %29, %cst_16 {dimension_numbers = #tpu.dot_dimension_numbers<[1], [0], [0], [1], [0, 0, 1, 1], [], []>} : vector<16x32xf32>, vector<32x64xf32>, vector<16x64xf32> -> vector<16x64xf32>
    %c0_17 = arith.constant 0 : index
    %c0_18 = arith.constant 0 : index
    %31 = vector.load %arg6[%c0_17, %c0_18] : memref<1x64xf32, #tpu.memory_space<vmem>>, vector<1x64xf32>
    %32 = vector.broadcast %31 : vector<1x64xf32> to vector<16x64xf32>
    %33 = arith.addf %30, %32 : vector<16x64xf32>
    %cst_19 = arith.constant 0.000000e+00 : f32
    %34 = vector.broadcast %cst_19 : f32 to vector<16x64xf32>
    %35 = arith.maximumf %33, %34 : vector<16x64xf32>
    %c0_20 = arith.constant 0 : index
    %c0_21 = arith.constant 0 : index
    %36 = vector.load %arg7[%c0_20, %c0_21] : memref<64x32xf32, #tpu.memory_space<vmem>>, vector<64x32xf32>
    %cst_22 = arith.constant dense<0.000000e+00> : vector<16x32xf32>
    %37 = tpu.matmul %35, %36, %cst_22 {dimension_numbers = #tpu.dot_dimension_numbers<[1], [0], [0], [1], [0, 0, 1, 1], [], []>} : vector<16x64xf32>, vector<64x32xf32>, vector<16x32xf32> -> vector<16x32xf32>
    %c0_23 = arith.constant 0 : index
    %c0_24 = arith.constant 0 : index
    %38 = vector.load %arg8[%c0_23, %c0_24] : memref<1x32xf32, #tpu.memory_space<vmem>>, vector<1x32xf32>
    %39 = vector.broadcast %38 : vector<1x32xf32> to vector<16x32xf32>
    %40 = arith.addf %37, %39 : vector<16x32xf32>
    %41 = arith.addf %28, %40 : vector<16x32xf32>
    %c0_25 = arith.constant 0 : index
    %c0_26 = arith.constant 0 : index
    %42 = vector.load %arg3[%c0_25, %c0_26] : memref<1x32xf32, #tpu.memory_space<vmem>>, vector<1x32xf32>
    %c0_27 = arith.constant 0 : index
    %c0_28 = arith.constant 0 : index
    %43 = vector.load %arg4[%c0_27, %c0_28] : memref<1x32xf32, #tpu.memory_space<vmem>>, vector<1x32xf32>
    %cst_29 = arith.constant dense<0.000000e+00> : vector<16xf32>
    %44 = vector.multi_reduction <add>, %41, %cst_29 [1] : vector<16x32xf32> to vector<16xf32>
    %45 = vector.shape_cast %44 : vector<16xf32> to vector<16x1xf32>
    %cst_30 = arith.constant 3.200000e+01 : f32
    %46 = vector.broadcast %cst_30 : f32 to vector<16x1xf32>
    %47 = arith.divf %45, %46 : vector<16x1xf32>
    %48 = vector.broadcast %47 : vector<16x1xf32> to vector<16x32xf32>
    %49 = arith.subf %41, %48 : vector<16x32xf32>
    %50 = arith.mulf %49, %49 : vector<16x32xf32>
    %cst_31 = arith.constant dense<0.000000e+00> : vector<16xf32>
    %51 = vector.multi_reduction <add>, %50, %cst_31 [1] : vector<16x32xf32> to vector<16xf32>
    %52 = vector.shape_cast %51 : vector<16xf32> to vector<16x1xf32>
    %cst_32 = arith.constant 3.200000e+01 : f32
    %53 = vector.broadcast %cst_32 : f32 to vector<16x1xf32>
    %54 = arith.divf %52, %53 : vector<16x1xf32>
    %55 = vector.broadcast %47 : vector<16x1xf32> to vector<16x32xf32>
    %56 = arith.subf %41, %55 : vector<16x32xf32>
    %cst_33 = arith.constant 9.99999997E-7 : f32
    %57 = vector.broadcast %cst_33 : f32 to vector<16x1xf32>
    %58 = arith.addf %54, %57 : vector<16x1xf32>
    %59 = math.rsqrt %58 : vector<16x1xf32>
    %60 = vector.broadcast %59 : vector<16x1xf32> to vector<16x32xf32>
    %61 = arith.mulf %56, %60 : vector<16x32xf32>
    %62 = vector.broadcast %42 : vector<1x32xf32> to vector<16x32xf32>
    %63 = arith.mulf %61, %62 : vector<16x32xf32>
    %64 = vector.broadcast %43 : vector<1x32xf32> to vector<16x32xf32>
    %65 = arith.addf %63, %64 : vector<16x32xf32>
    %c0_34 = arith.constant 0 : index
    %c0_35 = arith.constant 0 : index
    %66 = vector.load %arg9[%c0_34, %c0_35] : memref<16x32xf32, #tpu.memory_space<vmem>>, vector<16x32xf32>
    tpu.vector_store %arg9[%c0_34, %c0_35], %65 {strides = array<i32>} : memref<16x32xf32, #tpu.memory_space<vmem>>, vector<16x32xf32>,
    return
  }
}

module attributes {stable_mosaic.version = 11 : i64} {
  func.func @_post_cross_ffn_kernel(%arg0: memref<16x32xf32, #tpu.memory_space<vmem>>, %arg1: memref<16x32xf32, #tpu.memory_space<vmem>>, %arg2: memref<32x32xf32, #tpu.memory_space<vmem>>, %arg3: memref<1x32xf32, #tpu.memory_space<vmem>>, %arg4: memref<1x32xf32, #tpu.memory_space<vmem>>, %arg5: memref<32x64xf32, #tpu.memory_space<vmem>>, %arg6: memref<1x64xf32, #tpu.memory_space<vmem>>, %arg7: memref<64x32xf32, #tpu.memory_space<vmem>>, %arg8: memref<1x32xf32, #tpu.memory_space<vmem>>, %arg9: memref<16x32xf32, #tpu.memory_space<vmem>>) attributes {dimension_semantics = [], scalar_prefetch = 0 : i64, scratch_operands = 0 : i64, tpu.core_type = #tpu.core_type<tc>} {
    %c0 = arith.constant 0 : index
    %c0_0 = arith.constant 0 : index
    %0 = vector.load %arg0[%c0, %c0_0] : memref<16x32xf32, #tpu.memory_space<vmem>>, vector<16x32xf32>
    %c0_1 = arith.constant 0 : index
    %c0_2 = arith.constant 0 : index
    %1 = vector.load %arg2[%c0_1, %c0_2] : memref<32x32xf32, #tpu.memory_space<vmem>>, vector<32x32xf32>
    %cst = arith.constant dense<0.000000e+00> : vector<16x32xf32>
    %2 = tpu.matmul %0, %1, %cst {dimension_numbers = #tpu.dot_dimension_numbers<[1], [0], [0], [1], [0, 0, 1, 1], [], []>} : vector<16x32xf32>, vector<32x32xf32>, vector<16x32xf32> -> vector<16x32xf32>
    %c0_3 = arith.constant 0 : index
    %c0_4 = arith.constant 0 : index
    %3 = vector.load %arg1[%c0_3, %c0_4] : memref<16x32xf32, #tpu.memory_space<vmem>>, vector<16x32xf32>
    %4 = arith.addf %3, %2 : vector<16x32xf32>
    %c0_5 = arith.constant 0 : index
    %c0_6 = arith.constant 0 : index
    %5 = vector.load %arg3[%c0_5, %c0_6] : memref<1x32xf32, #tpu.memory_space<vmem>>, vector<1x32xf32>
    %c0_7 = arith.constant 0 : index
    %c0_8 = arith.constant 0 : index
    %6 = vector.load %arg4[%c0_7, %c0_8] : memref<1x32xf32, #tpu.memory_space<vmem>>, vector<1x32xf32>
    %cst_9 = arith.constant dense<0.000000e+00> : vector<16xf32>
    %7 = vector.multi_reduction <add>, %4, %cst_9 [1] : vector<16x32xf32> to vector<16xf32>
    %8 = vector.shape_cast %7 : vector<16xf32> to vector<16x1xf32>
    %cst_10 = arith.constant 3.200000e+01 : f32
    %9 = vector.broadcast %cst_10 : f32 to vector<16x1xf32>
    %10 = arith.divf %8, %9 : vector<16x1xf32>
    %11 = vector.broadcast %10 : vector<16x1xf32> to vector<16x32xf32>
    %12 = arith.subf %4, %11 : vector<16x32xf32>
    %13 = arith.mulf %12, %12 : vector<16x32xf32>
    %cst_11 = arith.constant dense<0.000000e+00> : vector<16xf32>
    %14 = vector.multi_reduction <add>, %13, %cst_11 [1] : vector<16x32xf32> to vector<16xf32>
    %15 = vector.shape_cast %14 : vector<16xf32> to vector<16x1xf32>
    %cst_12 = arith.constant 3.200000e+01 : f32
    %16 = vector.broadcast %cst_12 : f32 to vector<16x1xf32>
    %17 = arith.divf %15, %16 : vector<16x1xf32>
    %18 = vector.broadcast %10 : vector<16x1xf32> to vector<16x32xf32>
    %19 = arith.subf %4, %18 : vector<16x32xf32>
    %cst_13 = arith.constant 9.99999997E-7 : f32
    %20 = vector.broadcast %cst_13 : f32 to vector<16x1xf32>
    %21 = arith.addf %17, %20 : vector<16x1xf32>
    %22 = math.rsqrt %21 : vector<16x1xf32>
    %23 = vector.broadcast %22 : vector<16x1xf32> to vector<16x32xf32>
    %24 = arith.mulf %19, %23 : vector<16x32xf32>
    %25 = vector.broadcast %5 : vector<1x32xf32> to vector<16x32xf32>
    %26 = arith.mulf %24, %25 : vector<16x32xf32>
    %27 = vector.broadcast %6 : vector<1x32xf32> to vector<16x32xf32>
    %28 = arith.addf %26, %27 : vector<16x32xf32>
    %c0_14 = arith.constant 0 : index
    %c0_15 = arith.constant 0 : index
    %29 = vector.load %arg5[%c0_14, %c0_15] : memref<32x64xf32, #tpu.memory_space<vmem>>, vector<32x64xf32>
    %cst_16 = arith.constant dense<0.000000e+00> : vector<16x64xf32>
    %30 = tpu.matmul %28, %29, %cst_16 {dimension_numbers = #tpu.dot_dimension_numbers<[1], [0], [0], [1], [0, 0, 1, 1], [], []>} : vector<16x32xf32>, vector<32x64xf32>, vector<16x64xf32> -> vector<16x64xf32>
    %c0_17 = arith.constant 0 : index
    %c0_18 = arith.constant 0 : index
    %31 = vector.load %arg6[%c0_17, %c0_18] : memref<1x64xf32, #tpu.memory_space<vmem>>, vector<1x64xf32>
    %32 = vector.broadcast %31 : vector<1x64xf32> to vector<16x64xf32>
    %33 = arith.addf %30, %32 : vector<16x64xf32>
    %cst_19 = arith.constant 0.000000e+00 : f32
    %34 = vector.broadcast %cst_19 : f32 to vector<16x64xf32>
    %35 = arith.maximumf %33, %34 : vector<16x64xf32>
    %c0_20 = arith.constant 0 : index
    %c0_21 = arith.constant 0 : index
    %36 = vector.load %arg7[%c0_20, %c0_21] : memref<64x32xf32, #tpu.memory_space<vmem>>, vector<64x32xf32>
    %cst_22 = arith.constant dense<0.000000e+00> : vector<16x32xf32>
    %37 = tpu.matmul %35, %36, %cst_22 {dimension_numbers = #tpu.dot_dimension_numbers<[1], [0], [0], [1], [0, 0, 1, 1], [], []>} : vector<16x64xf32>, vector<64x32xf32>, vector<16x32xf32> -> vector<16x32xf32>
    %c0_23 = arith.constant 0 : index
    %c0_24 = arith.constant 0 : index
    %38 = vector.load %arg8[%c0_23, %c0_24] : memref<1x32xf32, #tpu.memory_space<vmem>>, vector<1x32xf32>
    %39 = vector.broadcast %38 : vector<1x32xf32> to vector<16x32xf32>
    %40 = arith.addf %37, %39 : vector<16x32xf32>
    %41 = arith.addf %28, %40 : vector<16x32xf32>
    %c0_25 = arith.constant 0 : index
    %c0_26 = arith.constant 0 : index
    %42 = vector.load %arg3[%c0_25, %c0_26] : memref<1x32xf32, #tpu.memory_space<vmem>>, vector<1x32xf32>
    %c0_27 = arith.constant 0 : index
    %c0_28 = arith.constant 0 : index
    %43 = vector.load %arg4[%c0_27, %c0_28] : memref<1x32xf32, #tpu.memory_space<vmem>>, vector<1x32xf32>
    %cst_29 = arith.constant dense<0.000000e+00> : vector<16xf32>
    %44 = vector.multi_reduction <add>, %41, %cst_29 [1] : vector<16x32xf32> to vector<16xf32>
    %45 = vector.shape_cast %44 : vector<16xf32> to vector<16x1xf32>
    %cst_30 = arith.constant 3.200000e+01 : f32
    %46 = vector.broadcast %cst_30 : f32 to vector<16x1xf32>
    %47 = arith.divf %45, %46 : vector<16x1xf32>
    %48 = vector.broadcast %47 : vector<16x1xf32> to vector<16x32xf32>
    %49 = arith.subf %41, %48 : vector<16x32xf32>
    %50 = arith.mulf %49, %49 : vector<16x32xf32>
    %cst_31 = arith.constant dense<0.000000e+00> : vector<16xf32>
    %51 = vector.multi_reduction <add>, %50, %cst_31 [1] : vector<16x32xf32> to vector<16xf32>
    %52 = vector.shape_cast %51 : vector<16xf32> to vector<16x1xf32>
    %cst_32 = arith.constant 3.200000e+01 : f32
    %53 = vector.broadcast %cst_32 : f32 to vector<16x1xf32>
    %54 = arith.divf %52, %53 : vector<16x1xf32>
    %55 = vector.broadcast %47 : vector<16x1xf32> to vector<16x32xf32>
    %56 = arith.subf %41, %55 : vector<16x32xf32>
    %cst_33 = arith.constant 9.99999997E-7 : f32
    %57 = vector.broadcast %cst_33 : f32 to vector<16x1xf32>
    %58 = arith.addf %54, %57 : vector<16x1xf32>
    %59 = math.rsqrt %58 : vector<16x1xf32>
    %60 = vector.broadcast %59 : vector<16x1xf32> to vector<16x32xf32>
    %61 = arith.mulf %56, %60 : vector<16x32xf32>
    %62 = vector.broadcast %42 : vector<1x32xf32> to vector<16x32xf32>
    %63 = arith.mulf %61, %62 : vector<16x32xf32>
    %64 = vector.broadcast %43 : vector<1x32xf32> to vector<16x32xf32>
    %65 = arith.addf %63, %64 : vector<16x32xf32>
    %c0_34 = arith.constant 0 : index
    %c0_35 = arith.constant 0 : index
    %66 = vector.load %arg9[%c0_34, %c0_35] : memref<16x32xf32, #tpu.memory_space<vmem>>, vector<16x32xf32>
    tpu.vector_store %arg9[%c0_34, %c0_35], %65 {strides = array<i32>} : memref<16x32xf32, #tpu.memory_space<vmem>>, vector<16x32xf32>,
    return
  }
}

</mosaic_0001>

<llo_original>
// kernel: decoder_forward.10
$region0: #{decoder_forward.10}
  #allocation0 [shape = 'u32[]', space=smem, size = 0x4, offset = 0x4, fixed_abs, tag = 'smem constant byte address 0x4 - core index']
  #allocation1 [shape = 'u32[144,128]{1,0:T(1,128)}', space=vmem, size = 0x12000, scoped, tag = 'internal scratch']
  %s0 = inlined_call_operand.vmem [shape: f32[16,32], index: 0, kind: input, shape index: {}]
  %s1 = inlined_call_operand.vmem [shape: f32[32,96], index: 1, kind: input, shape index: {}]
  %s2 = inlined_call_operand.vmem [shape: f32[16,96], index: 2, kind: output, shape index: {}]
  %s3 = sld [smem:[#allocation0]]
  $region18: #{decoder_forward.10} parent=0
    _
  %s5 = ssub.s32 1, %s3
  %s6 = scalar_select 0, %s5, %s3
  // Predicated region
  $region2: #{decoder_forward.10} parent=0 // pred_check
    _
  $region3: #{decoder_forward.10} parent=0 // pred_check_branch
    %8 = sbr.rel (0) target = $region5
  $region4: #{decoder_forward.10} parent=0 // pred_region
    _
  $region5: #{decoder_forward.10} parent=0 // pred_fallthru
    _
  // Predicated region
  $region6: #{decoder_forward.10} parent=0 // pred_check
    _
  $region7: #{decoder_forward.10} parent=0 // pred_check_branch
    %10 = sbr.rel (0) target = $region9
  $region8: #{decoder_forward.10} parent=0 // pred_region
    _
  $region9: #{decoder_forward.10} parent=0 // pred_fallthru
    _
  %v11 = vld [vmem:[%s0] sm:$0xff]
  %v12 = vld [vmem:[%s0 + $0x8] sm:$0xff]
  %v13 = vld [vmem:[%s1] sm:$0xff]
  %v14 = vld [vmem:[%s1 + $0x8] sm:$0xff]
  %v15 = vld [vmem:[%s1 + $0x10] sm:$0xff]
  %v16 = vld [vmem:[%s1 + $0x18] sm:$0xff]
  %vm17 = vcmask 261120
  %v19 = vsel %vm17, %v11, 0
  %v22 = vsel %vm17, %v12, 0
  %24 = vmatprep.subr.mxu0 0.0
  %25 = vmatpush1.msra.mxu0 %v13
  %26 = vmatprep.subr.mxu0 0.0
  %27 = vmatpush1.msra.mxu0 %v14
  %28 = vmatprep.subr.mxu0 0.0
  %29 = vmatpush1.msra.mxu0 %v15
  %30 = vmatprep.subr.mxu0 0.0
  %31 = vmatpush1.msra.mxu0 %v16
  %32 = vmatprep.subr.mxu0 0.0
  %33 = vmatpush1.msra.mxu0 0.0
  %34 = vmatprep.subr.mxu0 0.0
  %35 = vmatpush1.msra.mxu0 0.0
  %36 = vmatprep.subr.mxu0 0.0
  %37 = vmatpush1.msra.mxu0 0.0
  %38 = vmatprep.subr.mxu0 0.0
  %39 = vmatpush1.msra.mxu0 0.0
  %40 = vmatprep.subr.mxu0 0.0
  %41 = vmatpush1.msra.mxu0 0.0
  %42 = vmatprep.subr.mxu0 0.0
  %43 = vmatpush1.msra.mxu0 0.0
  %44 = vmatprep.subr.mxu0 0.0
  %45 = vmatpush1.msra.mxu0 0.0
  %46 = vmatprep.subr.mxu0 0.0
  %47 = vmatpush1.msra.mxu0 0.0
  %48 = vmatprep.subr.mxu0 0.0
  %49 = vmatpush1.msra.mxu0 0.0
  %50 = vmatprep.subr.mxu0 0.0
  %51 = vmatpush1.msra.mxu0 0.0
  %52 = vmatprep.subr.mxu0 0.0
  %53 = vmatpush1.msra.mxu0 0.0
  %54 = vmatprep.subr.mxu0 0.0
  %55 = vmatpush1.msra.mxu0 0.0
  %56 = vmatprep.subr.mxu0 0.0
  %57 = vmatpush1.msra.mxu0 0.0
  %58 = vmatprep.subr.mxu0 0.0
  %59 = vmatpush1.msra.mxu0 0.0
  %60 = vmatprep.subr.mxu0 0.0
  %61 = vmatpush1.msra.mxu0 0.0
  %62 = vmatprep.subr.mxu0 0.0
  %63 = vmatpush1.msra.mxu0 0.0
  %64 = vmatprep.subr.mxu0 0.0
  %65 = vmatpush1.msra.mxu0 0.0
  %66 = vmatprep.subr.mxu0 0.0
  %67 = vmatpush1.msra.mxu0 0.0
  %68 = vmatprep.subr.mxu0 0.0
  %69 = vmatpush1.msra.mxu0 0.0
  %70 = vmatprep.subr.mxu0 0.0
  %71 = vmatpush1.msra.mxu0 0.0
  %72 = vmatprep.subr.mxu0 0.0
  %73 = vmatpush1.msra.mxu0 0.0
  %74 = vmatprep.subr.mxu0 0.0
  %75 = vmatpush1.msra.mxu0 0.0
  %76 = vmatprep.subr.mxu0 0.0
  %77 = vmatpush1.msra.mxu0 0.0
  %78 = vmatprep.subr.mxu0 0.0
  %79 = vmatpush1.msra.mxu0 0.0
  %80 = vmatprep.subr.mxu0 0.0
  %81 = vmatpush1.msra.mxu0 0.0
  %82 = vmatprep.subr.mxu0 0.0
  %83 = vmatpush1.msra.mxu0 0.0
  %84 = vmatprep.subr.mxu0 0.0
  %85 = vmatpush1.msra.mxu0 0.0
  %86 = vmatprep.subr.mxu0 0.0
  %87 = vmatpush1.msra.mxu0 0.0
  %88 = vmatprep.mubr.f32.mxu0 0.0
  %89 = vmatmul.mubr.f32.gmra.mrb[0].mxu0 %v19
  %v90 = vpop.f32.mrb[0].mxu0
  %v91 = vadd.f32 0.0, %v90
  %v92 = vpop.f32.mrb[0].mxu0
  %93 = vmatprep.mubr.f32.mxu0 0.0
  %94 = vmatmul.mubr.f32.gmra.mrb[0].mxu0 %v22
  %v95 = vpop.f32.mrb[0].mxu0
  %v96 = vadd.f32 0.0, %v95
  %v97 = vpop.f32.mrb[0].mxu0
  %98 = vdwg.mxu0
  %vm99 = vcmask 785408
  %100 = vst.msk [vmem:[%s2] sm:$0xff] %vm99, %v91
  %101 = vst.msk [vmem:[%s2 + $0x8] sm:$0xff] %vm99, %v96
  // Predicated region
  $region10: #{decoder_forward.10} parent=0 // pred_check
    _
  $region11: #{decoder_forward.10} parent=0 // pred_check_branch
    %103 = sbr.rel (0) target = $region13
  $region12: #{decoder_forward.10} parent=0 // pred_region
    _
  $region13: #{decoder_forward.10} parent=0 // pred_fallthru
    _
  // Predicated region
  $region14: #{decoder_forward.10} parent=0 // pred_check
    _
  $region15: #{decoder_forward.10} parent=0 // pred_check_branch
    %105 = sbr.rel (0) target = $region17
  $region16: #{decoder_forward.10} parent=0 // pred_region
    _
  $region17: #{decoder_forward.10} parent=0 // pred_fallthru
    _

// kernel: decoder_forward.12
$region0: #{decoder_forward.12}
  #allocation0 [shape = 'u32[]', space=smem, size = 0x4, offset = 0x4, fixed_abs, tag = 'smem constant byte address 0x4 - core index']
  #allocation1 [shape = 'u32[144,128]{1,0:T(1,128)}', space=vmem, size = 0x12000, scoped, tag = 'internal scratch']
  %s0 = inlined_call_operand.vmem [shape: f32[16,32], index: 0, kind: input, shape index: {}]
  %s1 = inlined_call_operand.vmem [shape: f32[16,32], index: 1, kind: input, shape index: {}]
  %s2 = inlined_call_operand.vmem [shape: f32[16,32], index: 2, kind: input, shape index: {}]
  %s3 = inlined_call_operand.vmem [shape: f32[32,32], index: 3, kind: input, shape index: {}]
  %s4 = inlined_call_operand.vmem [shape: f32[1,32], index: 4, kind: input, shape index: {}]
  %s5 = inlined_call_operand.vmem [shape: f32[1,32], index: 5, kind: input, shape index: {}]
  %s6 = inlined_call_operand.vmem [shape: f32[32,32], index: 6, kind: input, shape index: {}]
  %s7 = inlined_call_operand.vmem [shape: f32[32,64], index: 7, kind: input, shape index: {}]
  %s8 = inlined_call_operand.vmem [shape: f32[16,32], index: 8, kind: output, shape index: {0}]
  %s9 = inlined_call_operand.vmem [shape: f32[16,32], index: 9, kind: output, shape index: {1}]
  %s10 = inlined_call_operand.vmem [shape: f32[16,64], index: 10, kind: output, shape index: {2}]
  %11 = xla_tuple %s8, %s9, %s10
  %s12 = sld [smem:[#allocation0]]
  $region58: #{decoder_forward.12} parent=0
    _
  %s14 = ssub.s32 1, %s12
  %s15 = scalar_select 0, %s14, %s12
  // Predicated region
  $region2: #{decoder_forward.12} parent=0 // pred_check
    _
  $region3: #{decoder_forward.12} parent=0 // pred_check_branch
    %17 = sbr.rel (0) target = $region5
  $region4: #{decoder_forward.12} parent=0 // pred_region
    _
  $region5: #{decoder_forward.12} parent=0 // pred_fallthru
    _
  // Predicated region
  $region6: #{decoder_forward.12} parent=0 // pred_check
    _
  $region7: #{decoder_forward.12} parent=0 // pred_check_branch
    %19 = sbr.rel (0) target = $region9
  $region8: #{decoder_forward.12} parent=0 // pred_region
    _
  $region9: #{decoder_forward.12} parent=0 // pred_fallthru
    _
  // Predicated region
  $region10: #{decoder_forward.12} parent=0 // pred_check
    _
  $region11: #{decoder_forward.12} parent=0 // pred_check_branch
    %21 = sbr.rel (0) target = $region13
  $region12: #{decoder_forward.12} parent=0 // pred_region
    _
  $region13: #{decoder_forward.12} parent=0 // pred_fallthru
    _
  // Predicated region
  $region14: #{decoder_forward.12} parent=0 // pred_check
    _
  $region15: #{decoder_forward.12} parent=0 // pred_check_branch
    %23 = sbr.rel (0) target = $region17
  $region16: #{decoder_forward.12} parent=0 // pred_region
    _
  $region17: #{decoder_forward.12} parent=0 // pred_fallthru
    _
  // Predicated region
  $region18: #{decoder_forward.12} parent=0 // pred_check
    _
  $region19: #{decoder_forward.12} parent=0 // pred_check_branch
    %25 = sbr.rel (0) target = $region21
  $region20: #{decoder_forward.12} parent=0 // pred_region
    _
  $region21: #{decoder_forward.12} parent=0 // pred_fallthru
    _
  // Predicated region
  $region22: #{decoder_forward.12} parent=0 // pred_check
    _
  $region23: #{decoder_forward.12} parent=0 // pred_check_branch
    %27 = sbr.rel (0) target = $region25
  $region24: #{decoder_forward.12} parent=0 // pred_region
    _
  $region25: #{decoder_forward.12} parent=0 // pred_fallthru
    _
  // Predicated region
  $region26: #{decoder_forward.12} parent=0 // pred_check
    _
  $region27: #{decoder_forward.12} parent=0 // pred_check_branch
    %29 = sbr.rel (0) target = $region29
  $region28: #{decoder_forward.12} parent=0 // pred_region
    _
  $region29: #{decoder_forward.12} parent=0 // pred_fallthru
    _
  // Predicated region
  $region30: #{decoder_forward.12} parent=0 // pred_check
    _
  $region31: #{decoder_forward.12} parent=0 // pred_check_branch
    %31 = sbr.rel (0) target = $region33
  $region32: #{decoder_forward.12} parent=0 // pred_region
    _
  $region33: #{decoder_forward.12} parent=0 // pred_fallthru
    _
  %v32 = vld [vmem:[%s0] sm:$0xff]
  %v33 = vld [vmem:[%s0 + $0x8] sm:$0xff]
  %v34 = vld [vmem:[%s3] sm:$0xff]
  %v35 = vld [vmem:[%s3 + $0x8] sm:$0xff]
  %v36 = vld [vmem:[%s3 + $0x10] sm:$0xff]
  %v37 = vld [vmem:[%s3 + $0x18] sm:$0xff]
  %vm38 = vcmask 261120
  %v40 = vsel %vm38, %v32, 0
  %v43 = vsel %vm38, %v33, 0
  %45 = vmatprep.subr.mxu0 0.0
  %46 = vmatpush1.msra.mxu0 %v34
  %47 = vmatprep.subr.mxu0 0.0
  %48 = vmatpush1.msra.mxu0 %v35
  %49 = vmatprep.subr.mxu0 0.0
  %50 = vmatpush1.msra.mxu0 %v36
  %51 = vmatprep.subr.mxu0 0.0
  %52 = vmatpush1.msra.mxu0 %v37
  %53 = vmatprep.subr.mxu0 0.0
  %54 = vmatpush1.msra.mxu0 0.0
  %55 = vmatprep.subr.mxu0 0.0
  %56 = vmatpush1.msra.mxu0 0.0
  %57 = vmatprep.subr.mxu0 0.0
  %58 = vmatpush1.msra.mxu0 0.0
  %59 = vmatprep.subr.mxu0 0.0
  %60 = vmatpush1.msra.mxu0 0.0
  %61 = vmatprep.subr.mxu0 0.0
  %62 = vmatpush1.msra.mxu0 0.0
  %63 = vmatprep.subr.mxu0 0.0
  %64 = vmatpush1.msra.mxu0 0.0
  %65 = vmatprep.subr.mxu0 0.0
  %66 = vmatpush1.msra.mxu0 0.0
  %67 = vmatprep.subr.mxu0 0.0
  %68 = vmatpush1.msra.mxu0 0.0
  %69 = vmatprep.subr.mxu0 0.0
  %70 = vmatpush1.msra.mxu0 0.0
  %71 = vmatprep.subr.mxu0 0.0
  %72 = vmatpush1.msra.mxu0 0.0
  %73 = vmatprep.subr.mxu0 0.0
  %74 = vmatpush1.msra.mxu0 0.0
  %75 = vmatprep.subr.mxu0 0.0
  %76 = vmatpush1.msra.mxu0 0.0
  %77 = vmatprep.subr.mxu0 0.0
  %78 = vmatpush1.msra.mxu0 0.0
  %79 = vmatprep.subr.mxu0 0.0
  %80 = vmatpush1.msra.mxu0 0.0
  %81 = vmatprep.subr.mxu0 0.0
  %82 = vmatpush1.msra.mxu0 0.0
  %83 = vmatprep.subr.mxu0 0.0
  %84 = vmatpush1.msra.mxu0 0.0
  %85 = vmatprep.subr.mxu0 0.0
  %86 = vmatpush1.msra.mxu0 0.0
  %87 = vmatprep.subr.mxu0 0.0
  %88 = vmatpush1.msra.mxu0 0.0
  %89 = vmatprep.subr.mxu0 0.0
  %90 = vmatpush1.msra.mxu0 0.0
  %91 = vmatprep.subr.mxu0 0.0
  %92 = vmatpush1.msra.mxu0 0.0
  %93 = vmatprep.subr.mxu0 0.0
  %94 = vmatpush1.msra.mxu0 0.0
  %95 = vmatprep.subr.mxu0 0.0
  %96 = vmatpush1.msra.mxu0 0.0
  %97 = vmatprep.subr.mxu0 0.0
  %98 = vmatpush1.msra.mxu0 0.0
  %99 = vmatprep.subr.mxu0 0.0
  %100 = vmatpush1.msra.mxu0 0.0
  %101 = vmatprep.subr.mxu0 0.0
  %102 = vmatpush1.msra.mxu0 0.0
  %103 = vmatprep.subr.mxu0 0.0
  %104 = vmatpush1.msra.mxu0 0.0
  %105 = vmatprep.subr.mxu0 0.0
  %106 = vmatpush1.msra.mxu0 0.0
  %107 = vmatprep.subr.mxu0 0.0
  %108 = vmatpush1.msra.mxu0 0.0
  %109 = vmatprep.mubr.f32.mxu0 0.0
  %110 = vmatmul.mubr.f32.gmra.mrb[0].mxu0 %v40
  %v111 = vpop.f32.mrb[0].mxu0
  %v112 = vadd.f32 0.0, %v111
  %v113 = vpop.f32.mrb[0].mxu0
  %114 = vmatprep.mubr.f32.mxu0 0.0
  %115 = vmatmul.mubr.f32.gmra.mrb[0].mxu0 %v43
  %v116 = vpop.f32.mrb[0].mxu0
  %v117 = vadd.f32 0.0, %v116
  %v118 = vpop.f32.mrb[0].mxu0
  %119 = vdwg.mxu0
  %v120 = vld [vmem:[%s1] sm:$0xff]
  %v121 = vld [vmem:[%s1 + $0x8] sm:$0xff]
  %v122 = vadd.f32 %v120, %v112
  %v123 = vadd.f32 %v121, %v117
  %v124 = vld [vmem:[%s4] sm:$0x1]
  %v125 = vld [vmem:[%s5] sm:$0x1]
  %v126 = vsel %vm38, %v122, 0.0
  %127 = vadd.xlane.f32.xlu0 %v126
  %v128 = vpop.xlane.xlu0 %127
  %v129 = vsel %vm38, %v123, 0.0
  %130 = vadd.xlane.f32.xlu0 %v129
  %v131 = vpop.xlane.xlu0 %130
  %v132 = vrcp.pop 32.0
  %v133 = vmul.f32 %v128, %v132
  %v134 = vmul.f32 %v131, %v132
  %v135 = vsub.f32 %v122, %v133
  %v136 = vsub.f32 %v123, %v134
  %v137 = vmul.f32 %v135, %v135
  %v138 = vmul.f32 %v136, %v136
  %v139 = vsel %vm38, %v137, 0.0
  %140 = vadd.xlane.f32.xlu0 %v139
  %v141 = vpop.xlane.xlu0 %140
  %v142 = vsel %vm38, %v138, 0.0
  %143 = vadd.xlane.f32.xlu0 %v142
  %v144 = vpop.xlane.xlu0 %143
  %v145 = vmul.f32 %v141, %v132
  %v146 = vmul.f32 %v144, %v132
  %v147 = vadd.f32 %v145, 1e-06
  %v148 = vadd.f32 %v146, 1e-06
  %v149 = vrsqrt.pop %v147
  %v150 = vrsqrt.pop %v148
  %v151 = vmul.f32 %v135, %v149
  %v152 = vmul.f32 %v136, %v150
  %v154 = vlaneseq
  %v155 = vshrl.u32 %v154, 7
  %v156 = vsub.s32 0, %v155
  %v157 = vrot.slane %v124, %v156
  %v159 = vmul.f32 %v151, %v157
  %v160 = vmul.f32 %v152, %v157
  %v162 = vlaneseq
  %v163 = vshrl.u32 %v162, 7
  %v164 = vsub.s32 0, %v163
  %v165 = vrot.slane %v125, %v164
  %v167 = vadd.f32 %v159, %v165
  %v168 = vadd.f32 %v160, %v165
  %169 = vst.msk [vmem:[%s8] sm:$0xff] %vm38, %v167
  %170 = vst.msk [vmem:[%s8 + $0x8] sm:$0xff] %vm38, %v168
  %v171 = vld [vmem:[%s6] sm:$0xff]
  %v172 = vld [vmem:[%s6 + $0x8] sm:$0xff]
  %v173 = vld [vmem:[%s6 + $0x10] sm:$0xff]
  %v174 = vld [vmem:[%s6 + $0x18] sm:$0xff]
  %v176 = vsel %vm38, %v167, 0
  %v179 = vsel %vm38, %v168, 0
  %181 = vmatprep.subr.mxu0 0.0
  %182 = vmatpush1.msra.mxu0 %v171
  %183 = vmatprep.subr.mxu0 0.0
  %184 = vmatpush1.msra.mxu0 %v172
  %185 = vmatprep.subr.mxu0 0.0
  %186 = vmatpush1.msra.mxu0 %v173
  %187 = vmatprep.subr.mxu0 0.0
  %188 = vmatpush1.msra.mxu0 %v174
  %189 = vmatprep.subr.mxu0 0.0
  %190 = vmatpush1.msra.mxu0 0.0
  %191 = vmatprep.subr.mxu0 0.0
  %192 = vmatpush1.msra.mxu0 0.0
  %193 = vmatprep.subr.mxu0 0.0
  %194 = vmatpush1.msra.mxu0 0.0
  %195 = vmatprep.subr.mxu0 0.0
  %196 = vmatpush1.msra.mxu0 0.0
  %197 = vmatprep.subr.mxu0 0.0
  %198 = vmatpush1.msra.mxu0 0.0
  %199 = vmatprep.subr.mxu0 0.0
  %200 = vmatpush1.msra.mxu0 0.0
  %201 = vmatprep.subr.mxu0 0.0
  %202 = vmatpush1.msra.mxu0 0.0
  %203 = vmatprep.subr.mxu0 0.0
  %204 = vmatpush1.msra.mxu0 0.0
  %205 = vmatprep.subr.mxu0 0.0
  %206 = vmatpush1.msra.mxu0 0.0
  %207 = vmatprep.subr.mxu0 0.0
  %208 = vmatpush1.msra.mxu0 0.0
  %209 = vmatprep.subr.mxu0 0.0
  %210 = vmatpush1.msra.mxu0 0.0
  %211 = vmatprep.subr.mxu0 0.0
  %212 = vmatpush1.msra.mxu0 0.0
  %213 = vmatprep.subr.mxu0 0.0
  %214 = vmatpush1.msra.mxu0 0.0
  %215 = vmatprep.subr.mxu0 0.0
  %216 = vmatpush1.msra.mxu0 0.0
  %217 = vmatprep.subr.mxu0 0.0
  %218 = vmatpush1.msra.mxu0 0.0
  %219 = vmatprep.subr.mxu0 0.0
  %220 = vmatpush1.msra.mxu0 0.0
  %221 = vmatprep.subr.mxu0 0.0
  %222 = vmatpush1.msra.mxu0 0.0
  %223 = vmatprep.subr.mxu0 0.0
  %224 = vmatpush1.msra.mxu0 0.0
  %225 = vmatprep.subr.mxu0 0.0
  %226 = vmatpush1.msra.mxu0 0.0
  %227 = vmatprep.subr.mxu0 0.0
  %228 = vmatpush1.msra.mxu0 0.0
  %229 = vmatprep.subr.mxu0 0.0
  %230 = vmatpush1.msra.mxu0 0.0
  %231 = vmatprep.subr.mxu0 0.0
  %232 = vmatpush1.msra.mxu0 0.0
  %233 = vmatprep.subr.mxu0 0.0
  %234 = vmatpush1.msra.mxu0 0.0
  %235 = vmatprep.subr.mxu0 0.0
  %236 = vmatpush1.msra.mxu0 0.0
  %237 = vmatprep.subr.mxu0 0.0
  %238 = vmatpush1.msra.mxu0 0.0
  %239 = vmatprep.subr.mxu0 0.0
  %240 = vmatpush1.msra.mxu0 0.0
  %241 = vmatprep.subr.mxu0 0.0
  %242 = vmatpush1.msra.mxu0 0.0
  %243 = vmatprep.subr.mxu0 0.0
  %244 = vmatpush1.msra.mxu0 0.0
  %245 = vmatprep.mubr.f32.mxu0 0.0
  %246 = vmatmul.mubr.f32.gmra.mrb[0].mxu0 %v176
  %v247 = vpop.f32.mrb[0].mxu0
  %v248 = vadd.f32 0.0, %v247
  %v249 = vpop.f32.mrb[0].mxu0
  %250 = vmatprep.mubr.f32.mxu0 0.0
  %251 = vmatmul.mubr.f32.gmra.mrb[0].mxu0 %v179
  %v252 = vpop.f32.mrb[0].mxu0
  %v253 = vadd.f32 0.0, %v252
  %v254 = vpop.f32.mrb[0].mxu0
  %255 = vdwg.mxu0
  %256 = vst.msk [vmem:[%s9] sm:$0xff] %vm38, %v248
  %257 = vst.msk [vmem:[%s9 + $0x8] sm:$0xff] %vm38, %v253
  %v258 = vld [vmem:[%s2] sm:$0xff]
  %v259 = vld [vmem:[%s2 + $0x8] sm:$0xff]
  %v260 = vld [vmem:[%s7] sm:$0xff]
  %v261 = vld [vmem:[%s7 + $0x8] sm:$0xff]
  %v262 = vld [vmem:[%s7 + $0x10] sm:$0xff]
  %v263 = vld [vmem:[%s7 + $0x18] sm:$0xff]
  %v265 = vsel %vm38, %v258, 0
  %v268 = vsel %vm38, %v259, 0
  %270 = vmatprep.subr.mxu0 0.0
  %271 = vmatpush1.msra.mxu0 %v260
  %272 = vmatprep.subr.mxu0 0.0
  %273 = vmatpush1.msra.mxu0 %v261
  %274 = vmatprep.subr.mxu0 0.0
  %275 = vmatpush1.msra.mxu0 %v262
  %276 = vmatprep.subr.mxu0 0.0
  %277 = vmatpush1.msra.mxu0 %v263
  %278 = vmatprep.subr.mxu0 0.0
  %279 = vmatpush1.msra.mxu0 0.0
  %280 = vmatprep.subr.mxu0 0.0
  %281 = vmatpush1.msra.mxu0 0.0
  %282 = vmatprep.subr.mxu0 0.0
  %283 = vmatpush1.msra.mxu0 0.0
  %284 = vmatprep.subr.mxu0 0.0
  %285 = vmatpush1.msra.mxu0 0.0
  %286 = vmatprep.subr.mxu0 0.0
  %287 = vmatpush1.msra.mxu0 0.0
  %288 = vmatprep.subr.mxu0 0.0
  %289 = vmatpush1.msra.mxu0 0.0
  %290 = vmatprep.subr.mxu0 0.0
  %291 = vmatpush1.msra.mxu0 0.0
  %292 = vmatprep.subr.mxu0 0.0
  %293 = vmatpush1.msra.mxu0 0.0
  %294 = vmatprep.subr.mxu0 0.0
  %295 = vmatpush1.msra.mxu0 0.0
  %296 = vmatprep.subr.mxu0 0.0
  %297 = vmatpush1.msra.mxu0 0.0
  %298 = vmatprep.subr.mxu0 0.0
  %299 = vmatpush1.msra.mxu0 0.0
  %300 = vmatprep.subr.mxu0 0.0
  %301 = vmatpush1.msra.mxu0 0.0
  %302 = vmatprep.subr.mxu0 0.0
  %303 = vmatpush1.msra.mxu0 0.0
  %304 = vmatprep.subr.mxu0 0.0
  %305 = vmatpush1.msra.mxu0 0.0
  %306 = vmatprep.subr.mxu0 0.0
  %307 = vmatpush1.msra.mxu0 0.0
  %308 = vmatprep.subr.mxu0 0.0
  %309 = vmatpush1.msra.mxu0 0.0
  %310 = vmatprep.subr.mxu0 0.0
  %311 = vmatpush1.msra.mxu0 0.0
  %312 = vmatprep.subr.mxu0 0.0
  %313 = vmatpush1.msra.mxu0 0.0
  %314 = vmatprep.subr.mxu0 0.0
  %315 = vmatpush1.msra.mxu0 0.0
  %316 = vmatprep.subr.mxu0 0.0
  %317 = vmatpush1.msra.mxu0 0.0
  %318 = vmatprep.subr.mxu0 0.0
  %319 = vmatpush1.msra.mxu0 0.0
  %320 = vmatprep.subr.mxu0 0.0
  %321 = vmatpush1.msra.mxu0 0.0
  %322 = vmatprep.subr.mxu0 0.0
  %323 = vmatpush1.msra.mxu0 0.0
  %324 = vmatprep.subr.mxu0 0.0
  %325 = vmatpush1.msra.mxu0 0.0
  %326 = vmatprep.subr.mxu0 0.0
  %327 = vmatpush1.msra.mxu0 0.0
  %328 = vmatprep.subr.mxu0 0.0
  %329 = vmatpush1.msra.mxu0 0.0
  %330 = vmatprep.subr.mxu0 0.0
  %331 = vmatpush1.msra.mxu0 0.0
  %332 = vmatprep.subr.mxu0 0.0
  %333 = vmatpush1.msra.mxu0 0.0
  %334 = vmatprep.mubr.f32.mxu0 0.0
  %335 = vmatmul.mubr.f32.gmra.mrb[0].mxu0 %v265
  %v336 = vpop.f32.mrb[0].mxu0
  %v337 = vadd.f32 0.0, %v336
  %v338 = vpop.f32.mrb[0].mxu0
  %339 = vmatprep.mubr.f32.mxu0 0.0
  %340 = vmatmul.mubr.f32.gmra.mrb[0].mxu0 %v268
  %v341 = vpop.f32.mrb[0].mxu0
  %v342 = vadd.f32 0.0, %v341
  %v343 = vpop.f32.mrb[0].mxu0
  %344 = vdwg.mxu0
  %vm345 = vcmask 523264
  %346 = vst.msk [vmem:[%s10] sm:$0xff] %vm345, %v337
  %347 = vst.msk [vmem:[%s10 + $0x8] sm:$0xff] %vm345, %v342
  // Predicated region
  $region34: #{decoder_forward.12} parent=0 // pred_check
    _
  $region35: #{decoder_forward.12} parent=0 // pred_check_branch
    %349 = sbr.rel (0) target = $region37
  $region36: #{decoder_forward.12} parent=0 // pred_region
    _
  $region37: #{decoder_forward.12} parent=0 // pred_fallthru
    _
  // Predicated region
  $region38: #{decoder_forward.12} parent=0 // pred_check
    _
  $region39: #{decoder_forward.12} parent=0 // pred_check_branch
    %351 = sbr.rel (0) target = $region41
  $region40: #{decoder_forward.12} parent=0 // pred_region
    _
  $region41: #{decoder_forward.12} parent=0 // pred_fallthru
    _
  // Predicated region
  $region42: #{decoder_forward.12} parent=0 // pred_check
    _
  $region43: #{decoder_forward.12} parent=0 // pred_check_branch
    %353 = sbr.rel (0) target = $region45
  $region44: #{decoder_forward.12} parent=0 // pred_region
    _
  $region45: #{decoder_forward.12} parent=0 // pred_fallthru
    _
  // Predicated region
  $region46: #{decoder_forward.12} parent=0 // pred_check
    _
  $region47: #{decoder_forward.12} parent=0 // pred_check_branch
    %355 = sbr.rel (0) target = $region49
  $region48: #{decoder_forward.12} parent=0 // pred_region
    _
  $region49: #{decoder_forward.12} parent=0 // pred_fallthru
    _
  // Predicated region
  $region50: #{decoder_forward.12} parent=0 // pred_check
    _
  $region51: #{decoder_forward.12} parent=0 // pred_check_branch
    %357 = sbr.rel (0) target = $region53
  $region52: #{decoder_forward.12} parent=0 // pred_region
    _
  $region53: #{decoder_forward.12} parent=0 // pred_fallthru
    _
  // Predicated region
  $region54: #{decoder_forward.12} parent=0 // pred_check
    _
  $region55: #{decoder_forward.12} parent=0 // pred_check_branch
    %359 = sbr.rel (0) target = $region57
  $region56: #{decoder_forward.12} parent=0 // pred_region
    _
  $region57: #{decoder_forward.12} parent=0 // pred_fallthru
    _

// kernel: decoder_forward.13
$region0: #{decoder_forward.13}
  #allocation0 [shape = 'u32[]', space=smem, size = 0x4, offset = 0x4, fixed_abs, tag = 'smem constant byte address 0x4 - core index']
  #allocation1 [shape = 'u32[144,128]{1,0:T(1,128)}', space=vmem, size = 0x12000, scoped, tag = 'internal scratch']
  %s0 = inlined_call_operand.vmem [shape: f32[2,4,8,8], index: 0, kind: input, shape index: {}]
  %s1 = inlined_call_operand.vmem [shape: f32[2,4,8,8], index: 1, kind: input, shape index: {}]
  %s2 = inlined_call_operand.vmem [shape: f32[2,4,8,8], index: 2, kind: input, shape index: {}]
  %s3 = inlined_call_operand.vmem [shape: f32[2,1,8], index: 3, kind: input, shape index: {}]
  %s4 = inlined_call_operand.vmem [shape: f32[2,4,8,8], index: 4, kind: output, shape index: {}]
  %s5 = sld [smem:[#allocation0]]
  $region49: #{decoder_forward.13} parent=0
    _
  %s7 = ssub.s32 1, %s5
  %s8 = scalar_select 0, %s7, %s5
  loop: start=0, step=1, limit=4
  $region2: #{decoder_forward.13} parent=0 // loop_pre_header
    _
  $region3: #{decoder_forward.13} parent=0 // loop_header
    %s10 = sphi 0, %s14
    %p11 = scmp.ge.s32.totalorder %s10, 4
    %s20 = sphi 0, %s22
    %s23 = sphi 0, %s20
    %s24 = sphi 0, %s23
    %s40 = sphi 0, %s24
    %s46 = sphi 0, %s48
    %s49 = sphi 0, %s46
    %s50 = sphi 0, %s49
    %s66 = sphi 0, %s50
    %s72 = sphi 0, %s74
    %s75 = sphi 0, %s72
    %s76 = sphi 0, %s75
    %s92 = sphi 0, %s76
    %s98 = sphi 0, %s100
    %s101 = sphi 0, %s98
    %s102 = sphi 0, %s101
    %s118 = sphi 0, %s102
    %s124 = sphi 0, %s126
    %s127 = sphi 0, %s124
    %s128 = sphi 0, %s127
    %s144 = sphi 0, %s128
  $region4: #{decoder_forward.13} parent=0 // loop_header_branch
    %13 = sbr.rel (%p11) target = $region8
  $region5: #{decoder_forward.13} parent=0 // loop_body
    %s15 = ssub.s32 %s10, 1
    %s16 = ssub.s32 %s10, 2
    %s17 = sadd.s32 %s10, 1
    %s18 = ssub.s32 %s10, %s17
    %p19 = scmp.eq.s32.totalorder %s18, 0
    %s21 = sadd.s32 %s20, 1
    %s22 = scalar_select %p19, %s20, %s21
    %p25 = pneg %p19
    %p26 = scmp.eq.s32.totalorder %s10, 1
    %p27 = por %p25, %p26
    %p28 = scmp.ne.s32.totalorder %s20, %s23
    %p29 = scmp.eq.s32.totalorder %s10, 0
    %p30 = por %p28, %p29
    %p31 = scmp.ne.s32.totalorder %s20, %s23
    %p32 = scmp.eq.s32.totalorder %s15, 1
    %p33 = por %p31, %p32
    %p34 = scmp.ne.s32.totalorder %s23, %s24
    %p35 = scmp.eq.s32.totalorder %s15, 0
    %p36 = por %p34, %p35
    %p37 = scmp.ne.s32.totalorder %s23, %s24
    %p38 = scmp.eq.s32.totalorder %s16, 1
    %p39 = por %p37, %p38
    %p41 = scmp.ne.s32.totalorder %s24, %s40
    %p42 = scmp.eq.s32.totalorder %s16, 0
    %p43 = por %p41, %p42
    %s44 = ssub.s32 %s10, %s17
    %p45 = scmp.eq.s32.totalorder %s44, 0
    %s47 = sadd.s32 %s46, 1
    %s48 = scalar_select %p45, %s46, %s47
    %p51 = pneg %p45
    %p52 = scmp.eq.s32.totalorder %s10, 1
    %p53 = por %p51, %p52
    %p54 = scmp.ne.s32.totalorder %s46, %s49
    %p55 = scmp.eq.s32.totalorder %s10, 0
    %p56 = por %p54, %p55
    %p57 = scmp.ne.s32.totalorder %s46, %s49
    %p58 = scmp.eq.s32.totalorder %s15, 1
    %p59 = por %p57, %p58
    %p60 = scmp.ne.s32.totalorder %s49, %s50
    %p61 = scmp.eq.s32.totalorder %s15, 0
    %p62 = por %p60, %p61
    %p63 = scmp.ne.s32.totalorder %s49, %s50
    %p64 = scmp.eq.s32.totalorder %s16, 1
    %p65 = por %p63, %p64
    %p67 = scmp.ne.s32.totalorder %s50, %s66
    %p68 = scmp.eq.s32.totalorder %s16, 0
    %p69 = por %p67, %p68
    %s70 = ssub.s32 %s10, %s17
    %p71 = scmp.eq.s32.totalorder %s70, 0
    %s73 = sadd.s32 %s72, 1
    %s74 = scalar_select %p71, %s72, %s73
    %p77 = pneg %p71
    %p78 = scmp.eq.s32.totalorder %s10, 1
    %p79 = por %p77, %p78
    %p80 = scmp.ne.s32.totalorder %s72, %s75
    %p81 = scmp.eq.s32.totalorder %s10, 0
    %p82 = por %p80, %p81
    %p83 = scmp.ne.s32.totalorder %s72, %s75
    %p84 = scmp.eq.s32.totalorder %s15, 1
    %p85 = por %p83, %p84
    %p86 = scmp.ne.s32.totalorder %s75, %s76
    %p87 = scmp.eq.s32.totalorder %s15, 0
    %p88 = por %p86, %p87
    %p89 = scmp.ne.s32.totalorder %s75, %s76
    %p90 = scmp.eq.s32.totalorder %s16, 1
    %p91 = por %p89, %p90
    %p93 = scmp.ne.s32.totalorder %s76, %s92
    %p94 = scmp.eq.s32.totalorder %s16, 0
    %p95 = por %p93, %p94
    %s96 = ssub.s32 %s10, %s17
    %p97 = scmp.eq.s32.totalorder %s96, 0
    %s99 = sadd.s32 %s98, 1
    %s100 = scalar_select %p97, %s98, %s99
    %p103 = pneg %p97
    %p104 = scmp.eq.s32.totalorder %s10, 1
    %p105 = por %p103, %p104
    %p106 = scmp.ne.s32.totalorder %s98, %s101
    %p107 = scmp.eq.s32.totalorder %s10, 0
    %p108 = por %p106, %p107
    %p109 = scmp.ne.s32.totalorder %s98, %s101
    %p110 = scmp.eq.s32.totalorder %s15, 1
    %p111 = por %p109, %p110
    %p112 = scmp.ne.s32.totalorder %s101, %s102
    %p113 = scmp.eq.s32.totalorder %s15, 0
    %p114 = por %p112, %p113
    %p115 = scmp.ne.s32.totalorder %s101, %s102
    %p116 = scmp.eq.s32.totalorder %s16, 1
    %p117 = por %p115, %p116
    %p119 = scmp.ne.s32.totalorder %s102, %s118
    %p120 = scmp.eq.s32.totalorder %s16, 0
    %p121 = por %p119, %p120
    %s122 = ssub.s32 %s10, %s17
    %p123 = scmp.eq.s32.totalorder %s122, 0
    %s125 = sadd.s32 %s124, 1
    %s126 = scalar_select %p123, %s124, %s125
    %p129 = pneg %p123
    %p130 = scmp.eq.s32.totalorder %s10, 1
    %p131 = por %p129, %p130
    %p132 = scmp.ne.s32.totalorder %s124, %s127
    %p133 = scmp.eq.s32.totalorder %s10, 0
    %p134 = por %p132, %p133
    %p135 = scmp.ne.s32.totalorder %s124, %s127
    %p136 = scmp.eq.s32.totalorder %s15, 1
    %p137 = por %p135, %p136
    %p138 = scmp.ne.s32.totalorder %s127, %s128
    %p139 = scmp.eq.s32.totalorder %s15, 0
    %p140 = por %p138, %p139
    %p141 = scmp.ne.s32.totalorder %s127, %s128
    %p142 = scmp.eq.s32.totalorder %s16, 1
    %p143 = por %p141, %p142
    %p145 = scmp.ne.s32.totalorder %s128, %s144
    %p146 = scmp.eq.s32.totalorder %s16, 0
    %p147 = por %p145, %p146
    %p148 = scmp.le.s32.totalorder 1, %s10
    %p149 = scmp.lt.s32.totalorder %s10, 3
    %p150 = pnand %p148, %p149
    %p151 = pneg %p150
    // Predicated region
    $region9: #{decoder_forward.13} parent=5 // pred_check
      _
    $region10: #{decoder_forward.13} parent=5 // pred_check_branch
      %153 = sbr.rel (%p150) target = $region12
    $region11: #{decoder_forward.13} parent=5 // pred_region
      %s154 = ssub.s32 %s10, 1
    $region12: #{decoder_forward.13} parent=5 // pred_fallthru
      _
    %p155 = scmp.lt.s32.totalorder %s10, 2
    // Predicated region
    $region13: #{decoder_forward.13} parent=5 // pred_check
      %p156 = pneg %p155
    $region14: #{decoder_forward.13} parent=5 // pred_check_branch
      %158 = sbr.rel (%p156) target = $region16
    $region15: #{decoder_forward.13} parent=5 // pred_region
      // Predicated region
      $region17: #{decoder_forward.13} parent=15 // pred_check
        %p159 = pneg %p30
      $region18: #{decoder_forward.13} parent=15 // pred_check_branch
        %161 = sbr.rel (%p159) target = $region20
      $region19: #{decoder_forward.13} parent=15 // pred_region
        %p162 = scmp.lt.s32.totalorder %s10, 1
        %s163 = scalar_select %p162, %s10, 1
        %s164 = smul.addr %s163, 4
        %s165 = smul.addr %s164, 8
        %s166 = scalar_lea.vmem %s0, %s165
      $region20: #{decoder_forward.13} parent=15 // pred_fallthru
        _
      // Predicated region
      $region21: #{decoder_forward.13} parent=15 // pred_check
        %p167 = pneg %p56
      $region22: #{decoder_forward.13} parent=15 // pred_check_branch
        %169 = sbr.rel (%p167) target = $region24
      $region23: #{decoder_forward.13} parent=15 // pred_region
        %p170 = scmp.lt.s32.totalorder %s10, 1
        %s171 = scalar_select %p170, %s10, 1
        %s172 = smul.addr %s171, 4
        %s173 = smul.addr %s172, 8
        %s174 = scalar_lea.vmem %s1, %s173
      $region24: #{decoder_forward.13} parent=15 // pred_fallthru
        _
      // Predicated region
      $region25: #{decoder_forward.13} parent=15 // pred_check
        %p175 = pneg %p82
      $region26: #{decoder_forward.13} parent=15 // pred_check_branch
        %177 = sbr.rel (%p175) target = $region28
      $region27: #{decoder_forward.13} parent=15 // pred_region
        %p178 = scmp.lt.s32.totalorder %s10, 1
        %s179 = scalar_select %p178, %s10, 1
        %s180 = smul.addr %s179, 4
        %s181 = smul.addr %s180, 8
        %s182 = scalar_lea.vmem %s2, %s181
      $region28: #{decoder_forward.13} parent=15 // pred_fallthru
        _
      // Predicated region
      $region29: #{decoder_forward.13} parent=15 // pred_check
        %p183 = pneg %p108
      $region30: #{decoder_forward.13} parent=15 // pred_check_branch
        %185 = sbr.rel (%p183) target = $region32
      $region31: #{decoder_forward.13} parent=15 // pred_region
        %p186 = scmp.lt.s32.totalorder %s10, 1
        %s187 = scalar_select %p186, %s10, 1
        %s188 = scalar_lea.vmem %s3, %s187
      $region32: #{decoder_forward.13} parent=15 // pred_fallthru
        _
    $region16: #{decoder_forward.13} parent=5 // pred_fallthru
      _
    %p189 = scmp.le.s32.totalorder 1, %s10
    %p190 = scmp.lt.s32.totalorder %s10, 3
    %p191 = pnand %p189, %p190
    %p192 = pneg %p191
    // Predicated region
    $region33: #{decoder_forward.13} parent=5 // pred_check
      _
    $region34: #{decoder_forward.13} parent=5 // pred_check_branch
      %194 = sbr.rel (%p191) target = $region36
    $region35: #{decoder_forward.13} parent=5 // pred_region
      %s195 = ssub.s32 %s10, 1
      %p196 = scmp.lt.s32.totalorder %s15, 1
      %s197 = scalar_select %p196, %s15, 1
      %s198 = smul.addr %s197, 4
      %s199 = smul.addr %s198, 8
      %s200 = scalar_lea.vmem %s0, %s199
      %p201 = pneg %p36
      %p202 = pneg %p33
      %p203 = scmp.lt.s32.totalorder %s15, 1
      %s204 = scalar_select %p203, %s15, 1
      %s205 = smul.addr %s204, 4
      %s206 = smul.addr %s205, 8
      %s207 = scalar_lea.vmem %s1, %s206
      %p208 = pneg %p62
      %p209 = pneg %p59
      %p210 = scmp.lt.s32.totalorder %s15, 1
      %s211 = scalar_select %p210, %s15, 1
      %s212 = smul.addr %s211, 4
      %s213 = smul.addr %s212, 8
      %s214 = scalar_lea.vmem %s2, %s213
      %p215 = pneg %p88
      %p216 = pneg %p85
      %p217 = scmp.lt.s32.totalorder %s15, 1
      %s218 = scalar_select %p217, %s15, 1
      %s219 = scalar_lea.vmem %s3, %s218
      %p220 = pneg %p114
      %p221 = pneg %p111
      %p222 = pneg %p140
      %p223 = pneg %p137
      %p224 = scmp.lt.s32.totalorder %s15, 1
      %s225 = scalar_select %p224, %s15, 1
      %s226 = smul.addr %s225, 4
      %s227 = smul.addr %s226, 8
      %s228 = scalar_lea.vmem %s4, %s227
      %p229 = scmp.lt.s32.totalorder %s15, 1
      %s230 = scalar_select %p229, %s15, 1
      %s231 = smul.addr %s230, 4
      %s232 = smul.addr %s231, 8
      %s233 = scalar_lea.vmem %s0, %s232
      %p234 = scmp.lt.s32.totalorder %s15, 1
      %s235 = scalar_select %p234, %s15, 1
      %s236 = smul.addr %s235, 4
      %s237 = smul.addr %s236, 8
      %s238 = scalar_lea.vmem %s1, %s237
      %p239 = scmp.lt.s32.totalorder %s15, 1
      %s240 = scalar_select %p239, %s15, 1
      %s241 = smul.addr %s240, 4
      %s242 = smul.addr %s241, 8
      %s243 = scalar_lea.vmem %s2, %s242
      %p244 = scmp.lt.s32.totalorder %s15, 1
      %s245 = scalar_select %p244, %s15, 1
      %s246 = scalar_lea.vmem %s3, %s245
      %p247 = scmp.lt.s32.totalorder %s15, 1
      %s248 = scalar_select %p247, %s15, 1
      %s249 = smul.addr %s248, 4
      %s250 = smul.addr %s249, 8
      %s251 = scalar_lea.vmem %s4, %s250
      %v252 = vld [vmem:[%s233] sm:$0xff]
      %v253 = vld [vmem:[%s233 + $0x8] sm:$0xff]
      %v254 = vld [vmem:[%s233 + $0x10] sm:$0xff]
      %v255 = vld [vmem:[%s233 + $0x18] sm:$0xff]
      %v256 = vld [vmem:[%s238] sm:$0xff]
      %v257 = vld [vmem:[%s238 + $0x8] sm:$0xff]
      %v258 = vld [vmem:[%s238 + $0x10] sm:$0xff]
      %v259 = vld [vmem:[%s238 + $0x18] sm:$0xff]
      %v260 = vld [vmem:[%s243] sm:$0xff]
      %v261 = vld [vmem:[%s243 + $0x8] sm:$0xff]
      %v262 = vld [vmem:[%s243 + $0x10] sm:$0xff]
      %v263 = vld [vmem:[%s243 + $0x18] sm:$0xff]
      %v264 = vld [vmem:[%s246] sm:$0x1]
      %vm265 = vcmask 64512
      %v267 = vsel %vm265, %v252, 0
      %v270 = vsel %vm265, %v256, 0
      %272 = vmatprep.subr.mxu0 0.0
      %273 = vmatpush1.xpose.msra.mxu0 %v270
      %274 = vmatprep.subr.mxu0 0.0
      %275 = vmatpush1.xpose.msra.mxu0 0.0
      %276 = vmatprep.subr.mxu0 0.0
      %277 = vmatpush1.xpose.msra.mxu0 0.0
      %278 = vmatprep.subr.mxu0 0.0
      %279 = vmatpush1.xpose.msra.mxu0 0.0
      %280 = vmatprep.subr.mxu0 0.0
      %281 = vmatpush1.xpose.msra.mxu0 0.0
      %282 = vmatprep.subr.mxu0 0.0
      %283 = vmatpush1.xpose.msra.mxu0 0.0
      %284 = vmatprep.subr.mxu0 0.0
      %285 = vmatpush1.xpose.msra.mxu0 0.0
      %286 = vmatprep.subr.mxu0 0.0
      %287 = vmatpush1.xpose.msra.mxu0 0.0
      %288 = vmatprep.subr.mxu0 0.0
      %289 = vmatpush1.xpose.msra.mxu0 0.0
      %290 = vmatprep.subr.mxu0 0.0
      %291 = vmatpush1.xpose.msra.mxu0 0.0
      %292 = vmatprep.subr.mxu0 0.0
      %293 = vmatpush1.xpose.msra.mxu0 0.0
      %294 = vmatprep.subr.mxu0 0.0
      %295 = vmatpush1.xpose.msra.mxu0 0.0
      %296 = vmatprep.subr.mxu0 0.0
      %297 = vmatpush1.xpose.msra.mxu0 0.0
      %298 = vmatprep.subr.mxu0 0.0
      %299 = vmatpush1.xpose.msra.mxu0 0.0
      %300 = vmatprep.subr.mxu0 0.0
      %301 = vmatpush1.xpose.msra.mxu0 0.0
      %302 = vmatprep.subr.mxu0 0.0
      %303 = vmatpush1.xpose.msra.mxu0 0.0
      %304 = vmatprep.subr.mxu0 0.0
      %305 = vmatpush1.xpose.msra.mxu0 0.0
      %306 = vmatprep.subr.mxu0 0.0
      %307 = vmatpush1.xpose.msra.mxu0 0.0
      %308 = vmatprep.subr.mxu0 0.0
      %309 = vmatpush1.xpose.msra.mxu0 0.0
      %310 = vmatprep.subr.mxu0 0.0
      %311 = vmatpush1.xpose.msra.mxu0 0.0
      %312 = vmatprep.subr.mxu0 0.0
      %313 = vmatpush1.xpose.msra.mxu0 0.0
      %314 = vmatprep.subr.mxu0 0.0
      %315 = vmatpush1.xpose.msra.mxu0 0.0
      %316 = vmatprep.subr.mxu0 0.0
      %317 = vmatpush1.xpose.msra.mxu0 0.0
      %318 = vmatprep.subr.mxu0 0.0
      %319 = vmatpush1.xpose.msra.mxu0 0.0
      %320 = vmatprep.subr.mxu0 0.0
      %321 = vmatpush1.xpose.msra.mxu0 0.0
      %322 = vmatprep.subr.mxu0 0.0
      %323 = vmatpush1.xpose.msra.mxu0 0.0
      %324 = vmatprep.subr.mxu0 0.0
      %325 = vmatpush1.xpose.msra.mxu0 0.0
      %326 = vmatprep.subr.mxu0 0.0
      %327 = vmatpush1.xpose.msra.mxu0 0.0
      %328 = vmatprep.subr.mxu0 0.0
      %329 = vmatpush1.xpose.msra.mxu0 0.0
      %330 = vmatprep.subr.mxu0 0.0
      %331 = vmatpush1.xpose.msra.mxu0 0.0
      %332 = vmatprep.subr.mxu0 0.0
      %333 = vmatpush1.xpose.msra.mxu0 0.0
      %334 = vmatprep.subr.mxu0 0.0
      %335 = vmatpush1.xpose.msra.mxu0 0.0
      %336 = vmatprep.mubr.f32.mxu0 0.0
      %337 = vmatmul.mubr.f32.gmra.mrb[0].mxu0 %v267
      %v338 = vpop.f32.mrb[0].mxu0
      %v339 = vadd.f32 0.0, %v338
      %v340 = vpop.f32.mrb[0].mxu0
      %341 = vdwg.mxu0
      %v343 = vsel %vm265, %v253, 0
      %v346 = vsel %vm265, %v257, 0
      %348 = vmatprep.subr.mxu0 0.0
      %349 = vmatpush1.xpose.msra.mxu0 %v346
      %350 = vmatprep.subr.mxu0 0.0
      %351 = vmatpush1.xpose.msra.mxu0 0.0
      %352 = vmatprep.subr.mxu0 0.0
      %353 = vmatpush1.xpose.msra.mxu0 0.0
      %354 = vmatprep.subr.mxu0 0.0
      %355 = vmatpush1.xpose.msra.mxu0 0.0
      %356 = vmatprep.subr.mxu0 0.0
      %357 = vmatpush1.xpose.msra.mxu0 0.0
      %358 = vmatprep.subr.mxu0 0.0
      %359 = vmatpush1.xpose.msra.mxu0 0.0
      %360 = vmatprep.subr.mxu0 0.0
      %361 = vmatpush1.xpose.msra.mxu0 0.0
      %362 = vmatprep.subr.mxu0 0.0
      %363 = vmatpush1.xpose.msra.mxu0 0.0
      %364 = vmatprep.subr.mxu0 0.0
      %365 = vmatpush1.xpose.msra.mxu0 0.0
      %366 = vmatprep.subr.mxu0 0.0
      %367 = vmatpush1.xpose.msra.mxu0 0.0
      %368 = vmatprep.subr.mxu0 0.0
      %369 = vmatpush1.xpose.msra.mxu0 0.0
      %370 = vmatprep.subr.mxu0 0.0
      %371 = vmatpush1.xpose.msra.mxu0 0.0
      %372 = vmatprep.subr.mxu0 0.0
      %373 = vmatpush1.xpose.msra.mxu0 0.0
      %374 = vmatprep.subr.mxu0 0.0
      %375 = vmatpush1.xpose.msra.mxu0 0.0
      %376 = vmatprep.subr.mxu0 0.0
      %377 = vmatpush1.xpose.msra.mxu0 0.0
      %378 = vmatprep.subr.mxu0 0.0
      %379 = vmatpush1.xpose.msra.mxu0 0.0
      %380 = vmatprep.subr.mxu0 0.0
      %381 = vmatpush1.xpose.msra.mxu0 0.0
      %382 = vmatprep.subr.mxu0 0.0
      %383 = vmatpush1.xpose.msra.mxu0 0.0
      %384 = vmatprep.subr.mxu0 0.0
      %385 = vmatpush1.xpose.msra.mxu0 0.0
      %386 = vmatprep.subr.mxu0 0.0
      %387 = vmatpush1.xpose.msra.mxu0 0.0
      %388 = vmatprep.subr.mxu0 0.0
      %389 = vmatpush1.xpose.msra.mxu0 0.0
      %390 = vmatprep.subr.mxu0 0.0
      %391 = vmatpush1.xpose.msra.mxu0 0.0
      %392 = vmatprep.subr.mxu0 0.0
      %393 = vmatpush1.xpose.msra.mxu0 0.0
      %394 = vmatprep.subr.mxu0 0.0
      %395 = vmatpush1.xpose.msra.mxu0 0.0
      %396 = vmatprep.subr.mxu0 0.0
      %397 = vmatpush1.xpose.msra.mxu0 0.0
      %398 = vmatprep.subr.mxu0 0.0
      %399 = vmatpush1.xpose.msra.mxu0 0.0
      %400 = vmatprep.subr.mxu0 0.0
      %401 = vmatpush1.xpose.msra.mxu0 0.0
      %402 = vmatprep.subr.mxu0 0.0
      %403 = vmatpush1.xpose.msra.mxu0 0.0
      %404 = vmatprep.subr.mxu0 0.0
      %405 = vmatpush1.xpose.msra.mxu0 0.0
      %406 = vmatprep.subr.mxu0 0.0
      %407 = vmatpush1.xpose.msra.mxu0 0.0
      %408 = vmatprep.subr.mxu0 0.0
      %409 = vmatpush1.xpose.msra.mxu0 0.0
      %410 = vmatprep.subr.mxu0 0.0
      %411 = vmatpush1.xpose.msra.mxu0 0.0
      %412 = vmatprep.mubr.f32.mxu0 0.0
      %413 = vmatmul.mubr.f32.gmra.mrb[0].mxu0 %v343
      %v414 = vpop.f32.mrb[0].mxu0
      %v415 = vadd.f32 0.0, %v414
      %v416 = vpop.f32.mrb[0].mxu0
      %417 = vdwg.mxu0
      %v419 = vsel %vm265, %v254, 0
      %v422 = vsel %vm265, %v258, 0
      %424 = vmatprep.subr.mxu0 0.0
      %425 = vmatpush1.xpose.msra.mxu0 %v422
      %426 = vmatprep.subr.mxu0 0.0
      %427 = vmatpush1.xpose.msra.mxu0 0.0
      %428 = vmatprep.subr.mxu0 0.0
      %429 = vmatpush1.xpose.msra.mxu0 0.0
      %430 = vmatprep.subr.mxu0 0.0
      %431 = vmatpush1.xpose.msra.mxu0 0.0
      %432 = vmatprep.subr.mxu0 0.0
      %433 = vmatpush1.xpose.msra.mxu0 0.0
      %434 = vmatprep.subr.mxu0 0.0
      %435 = vmatpush1.xpose.msra.mxu0 0.0
      %436 = vmatprep.subr.mxu0 0.0
      %437 = vmatpush1.xpose.msra.mxu0 0.0
      %438 = vmatprep.subr.mxu0 0.0
      %439 = vmatpush1.xpose.msra.mxu0 0.0
      %440 = vmatprep.subr.mxu0 0.0
      %441 = vmatpush1.xpose.msra.mxu0 0.0
      %442 = vmatprep.subr.mxu0 0.0
      %443 = vmatpush1.xpose.msra.mxu0 0.0
      %444 = vmatprep.subr.mxu0 0.0
      %445 = vmatpush1.xpose.msra.mxu0 0.0
      %446 = vmatprep.subr.mxu0 0.0
      %447 = vmatpush1.xpose.msra.mxu0 0.0
      %448 = vmatprep.subr.mxu0 0.0
      %449 = vmatpush1.xpose.msra.mxu0 0.0
      %450 = vmatprep.subr.mxu0 0.0
      %451 = vmatpush1.xpose.msra.mxu0 0.0
      %452 = vmatprep.subr.mxu0 0.0
      %453 = vmatpush1.xpose.msra.mxu0 0.0
      %454 = vmatprep.subr.mxu0 0.0
      %455 = vmatpush1.xpose.msra.mxu0 0.0
      %456 = vmatprep.subr.mxu0 0.0
      %457 = vmatpush1.xpose.msra.mxu0 0.0
      %458 = vmatprep.subr.mxu0 0.0
      %459 = vmatpush1.xpose.msra.mxu0 0.0
      %460 = vmatprep.subr.mxu0 0.0
      %461 = vmatpush1.xpose.msra.mxu0 0.0
      %462 = vmatprep.subr.mxu0 0.0
      %463 = vmatpush1.xpose.msra.mxu0 0.0
      %464 = vmatprep.subr.mxu0 0.0
      %465 = vmatpush1.xpose.msra.mxu0 0.0
      %466 = vmatprep.subr.mxu0 0.0
      %467 = vmatpush1.xpose.msra.mxu0 0.0
      %468 = vmatprep.subr.mxu0 0.0
      %469 = vmatpush1.xpose.msra.mxu0 0.0
      %470 = vmatprep.subr.mxu0 0.0
      %471 = vmatpush1.xpose.msra.mxu0 0.0
      %472 = vmatprep.subr.mxu0 0.0
      %473 = vmatpush1.xpose.msra.mxu0 0.0
      %474 = vmatprep.subr.mxu0 0.0
      %475 = vmatpush1.xpose.msra.mxu0 0.0
      %476 = vmatprep.subr.mxu0 0.0
      %477 = vmatpush1.xpose.msra.mxu0 0.0
      %478 = vmatprep.subr.mxu0 0.0
      %479 = vmatpush1.xpose.msra.mxu0 0.0
      %480 = vmatprep.subr.mxu0 0.0
      %481 = vmatpush1.xpose.msra.mxu0 0.0
      %482 = vmatprep.subr.mxu0 0.0
      %483 = vmatpush1.xpose.msra.mxu0 0.0
      %484 = vmatprep.subr.mxu0 0.0
      %485 = vmatpush1.xpose.msra.mxu0 0.0
      %486 = vmatprep.subr.mxu0 0.0
      %487 = vmatpush1.xpose.msra.mxu0 0.0
      %488 = vmatprep.mubr.f32.mxu0 0.0
      %489 = vmatmul.mubr.f32.gmra.mrb[0].mxu0 %v419
      %v490 = vpop.f32.mrb[0].mxu0
      %v491 = vadd.f32 0.0, %v490
      %v492 = vpop.f32.mrb[0].mxu0
      %493 = vdwg.mxu0
      %v495 = vsel %vm265, %v255, 0
      %v498 = vsel %vm265, %v259, 0
      %500 = vmatprep.subr.mxu0 0.0
      %501 = vmatpush1.xpose.msra.mxu0 %v498
      %502 = vmatprep.subr.mxu0 0.0
      %503 = vmatpush1.xpose.msra.mxu0 0.0
      %504 = vmatprep.subr.mxu0 0.0
      %505 = vmatpush1.xpose.msra.mxu0 0.0
      %506 = vmatprep.subr.mxu0 0.0
      %507 = vmatpush1.xpose.msra.mxu0 0.0
      %508 = vmatprep.subr.mxu0 0.0
      %509 = vmatpush1.xpose.msra.mxu0 0.0
      %510 = vmatprep.subr.mxu0 0.0
      %511 = vmatpush1.xpose.msra.mxu0 0.0
      %512 = vmatprep.subr.mxu0 0.0
      %513 = vmatpush1.xpose.msra.mxu0 0.0
      %514 = vmatprep.subr.mxu0 0.0
      %515 = vmatpush1.xpose.msra.mxu0 0.0
      %516 = vmatprep.subr.mxu0 0.0
      %517 = vmatpush1.xpose.msra.mxu0 0.0
      %518 = vmatprep.subr.mxu0 0.0
      %519 = vmatpush1.xpose.msra.mxu0 0.0
      %520 = vmatprep.subr.mxu0 0.0
      %521 = vmatpush1.xpose.msra.mxu0 0.0
      %522 = vmatprep.subr.mxu0 0.0
      %523 = vmatpush1.xpose.msra.mxu0 0.0
      %524 = vmatprep.subr.mxu0 0.0
      %525 = vmatpush1.xpose.msra.mxu0 0.0
      %526 = vmatprep.subr.mxu0 0.0
      %527 = vmatpush1.xpose.msra.mxu0 0.0
      %528 = vmatprep.subr.mxu0 0.0
      %529 = vmatpush1.xpose.msra.mxu0 0.0
      %530 = vmatprep.subr.mxu0 0.0
      %531 = vmatpush1.xpose.msra.mxu0 0.0
      %532 = vmatprep.subr.mxu0 0.0
      %533 = vmatpush1.xpose.msra.mxu0 0.0
      %534 = vmatprep.subr.mxu0 0.0
      %535 = vmatpush1.xpose.msra.mxu0 0.0
      %536 = vmatprep.subr.mxu0 0.0
      %537 = vmatpush1.xpose.msra.mxu0 0.0
      %538 = vmatprep.subr.mxu0 0.0
      %539 = vmatpush1.xpose.msra.mxu0 0.0
      %540 = vmatprep.subr.mxu0 0.0
      %541 = vmatpush1.xpose.msra.mxu0 0.0
      %542 = vmatprep.subr.mxu0 0.0
      %543 = vmatpush1.xpose.msra.mxu0 0.0
      %544 = vmatprep.subr.mxu0 0.0
      %545 = vmatpush1.xpose.msra.mxu0 0.0
      %546 = vmatprep.subr.mxu0 0.0
      %547 = vmatpush1.xpose.msra.mxu0 0.0
      %548 = vmatprep.subr.mxu0 0.0
      %549 = vmatpush1.xpose.msra.mxu0 0.0
      %550 = vmatprep.subr.mxu0 0.0
      %551 = vmatpush1.xpose.msra.mxu0 0.0
      %552 = vmatprep.subr.mxu0 0.0
      %553 = vmatpush1.xpose.msra.mxu0 0.0
      %554 = vmatprep.subr.mxu0 0.0
      %555 = vmatpush1.xpose.msra.mxu0 0.0
      %556 = vmatprep.subr.mxu0 0.0
      %557 = vmatpush1.xpose.msra.mxu0 0.0
      %558 = vmatprep.subr.mxu0 0.0
      %559 = vmatpush1.xpose.msra.mxu0 0.0
      %560 = vmatprep.subr.mxu0 0.0
      %561 = vmatpush1.xpose.msra.mxu0 0.0
      %562 = vmatprep.subr.mxu0 0.0
      %563 = vmatpush1.xpose.msra.mxu0 0.0
      %564 = vmatprep.mubr.f32.mxu0 0.0
      %565 = vmatmul.mubr.f32.gmra.mrb[0].mxu0 %v495
      %v566 = vpop.f32.mrb[0].mxu0
      %v567 = vadd.f32 0.0, %v566
      %v568 = vpop.f32.mrb[0].mxu0
      %569 = vdwg.mxu0
      %v570 = vrsqrt.pop %v339
      %v571 = vmul.f32 %v339, %v570
      %vm572 = vcmp.eq.f32.partialorder %v339, inf
      %v573 = vsel %vm572, %v339, %v571
      %vm574 = vcmp.eq.f32.partialorder %v339, 0.0
      %v575 = vand.u32 %v339, 2147483648
      %v576 = vsel %vm574, %v575, %v573
      %v577 = vrsqrt.pop %v415
      %v578 = vmul.f32 %v415, %v577
      %vm579 = vcmp.eq.f32.partialorder %v415, inf
      %v580 = vsel %vm579, %v415, %v578
      %vm581 = vcmp.eq.f32.partialorder %v415, 0.0
      %v582 = vand.u32 %v415, 2147483648
      %v583 = vsel %vm581, %v582, %v580
      %v584 = vrsqrt.pop %v491
      %v585 = vmul.f32 %v491, %v584
      %vm586 = vcmp.eq.f32.partialorder %v491, inf
      %v587 = vsel %vm586, %v491, %v585
      %vm588 = vcmp.eq.f32.partialorder %v491, 0.0
      %v589 = vand.u32 %v491, 2147483648
      %v590 = vsel %vm588, %v589, %v587
      %v591 = vrsqrt.pop %v567
      %v592 = vmul.f32 %v567, %v591
      %vm593 = vcmp.eq.f32.partialorder %v567, inf
      %v594 = vsel %vm593, %v567, %v592
      %vm595 = vcmp.eq.f32.partialorder %v567, 0.0
      %v596 = vand.u32 %v567, 2147483648
      %v597 = vsel %vm595, %v596, %v594
      %v598 = vmul.f32 %v264, -1e+09
      %v600 = vlaneseq
      %v601 = vshrl.u32 %v600, 7
      %v602 = vsub.s32 0, %v601
      %v603 = vrot.slane %v598, %v602
      %v605 = vadd.f32 %v576, %v603
      %v606 = vadd.f32 %v583, %v603
      %v607 = vadd.f32 %v590, %v603
      %v608 = vadd.f32 %v597, %v603
      %v609 = vsel %vm265, %v605, -inf
      %610 = vmax.xlane.f32.xlu0 %v609
      %v611 = vpop.xlane.xlu0 %610
      %v612 = vsel %vm265, %v606, -inf
      %613 = vmax.xlane.f32.xlu0 %v612
      %v614 = vpop.xlane.xlu0 %613
      %v615 = vsel %vm265, %v607, -inf
      %616 = vmax.xlane.f32.xlu0 %v615
      %v617 = vpop.xlane.xlu0 %616
      %v618 = vsel %vm265, %v608, -inf
      %619 = vmax.xlane.f32.xlu0 %v618
      %v620 = vpop.xlane.xlu0 %619
      %v621 = vsub.f32 %v605, %v611
      %v622 = vsub.f32 %v606, %v614
      %v623 = vsub.f32 %v607, %v617
      %v624 = vsub.f32 %v608, %v620
      %v625 = vmul.f32 %v621, 1.442695
      %v626 = vpow.pop %v625
      %v627 = vmul.f32 %v622, 1.442695
      %v628 = vpow.pop %v627
      %v629 = vmul.f32 %v623, 1.442695
      %v630 = vpow.pop %v629
      %v631 = vmul.f32 %v624, 1.442695
      %v632 = vpow.pop %v631
      %v633 = vsel %vm265, %v626, 0.0
      %634 = vadd.xlane.f32.xlu0 %v633
      %v635 = vpop.xlane.xlu0 %634
      %v636 = vsel %vm265, %v628, 0.0
      %637 = vadd.xlane.f32.xlu0 %v636
      %v638 = vpop.xlane.xlu0 %637
      %v639 = vsel %vm265, %v630, 0.0
      %640 = vadd.xlane.f32.xlu0 %v639
      %v641 = vpop.xlane.xlu0 %640
      %v642 = vsel %vm265, %v632, 0.0
      %643 = vadd.xlane.f32.xlu0 %v642
      %v644 = vpop.xlane.xlu0 %643
      %v645 = vrcp.pop %v635
      %v646 = vrcp.pop %v638
      %v647 = vrcp.pop %v641
      %v648 = vrcp.pop %v644
      %v649 = vmul.f32 %v626, %v645
      %v650 = vmul.f32 %v628, %v646
      %v651 = vmul.f32 %v630, %v647
      %v652 = vmul.f32 %v632, %v648
      %v654 = vsel %vm265, %v649, 0
      %656 = vmatprep.subr.mxu0 0.0
      %657 = vmatpush1.msra.mxu0 %v260
      %658 = vmatprep.subr.mxu0 0.0
      %659 = vmatpush1.msra.mxu0 0.0
      %660 = vmatprep.subr.mxu0 0.0
      %661 = vmatpush1.msra.mxu0 0.0
      %662 = vmatprep.subr.mxu0 0.0
      %663 = vmatpush1.msra.mxu0 0.0
      %664 = vmatprep.subr.mxu0 0.0
      %665 = vmatpush1.msra.mxu0 0.0
      %666 = vmatprep.subr.mxu0 0.0
      %667 = vmatpush1.msra.mxu0 0.0
      %668 = vmatprep.subr.mxu0 0.0
      %669 = vmatpush1.msra.mxu0 0.0
      %670 = vmatprep.subr.mxu0 0.0
      %671 = vmatpush1.msra.mxu0 0.0
      %672 = vmatprep.subr.mxu0 0.0
      %673 = vmatpush1.msra.mxu0 0.0
      %674 = vmatprep.subr.mxu0 0.0
      %675 = vmatpush1.msra.mxu0 0.0
      %676 = vmatprep.subr.mxu0 0.0
      %677 = vmatpush1.msra.mxu0 0.0
      %678 = vmatprep.subr.mxu0 0.0
      %679 = vmatpush1.msra.mxu0 0.0
      %680 = vmatprep.subr.mxu0 0.0
      %681 = vmatpush1.msra.mxu0 0.0
      %682 = vmatprep.subr.mxu0 0.0
      %683 = vmatpush1.msra.mxu0 0.0
      %684 = vmatprep.subr.mxu0 0.0
      %685 = vmatpush1.msra.mxu0 0.0
      %686 = vmatprep.subr.mxu0 0.0
      %687 = vmatpush1.msra.mxu0 0.0
      %688 = vmatprep.subr.mxu0 0.0
      %689 = vmatpush1.msra.mxu0 0.0
      %690 = vmatprep.subr.mxu0 0.0
      %691 = vmatpush1.msra.mxu0 0.0
      %692 = vmatprep.subr.mxu0 0.0
      %693 = vmatpush1.msra.mxu0 0.0
      %694 = vmatprep.subr.mxu0 0.0
      %695 = vmatpush1.msra.mxu0 0.0
      %696 = vmatprep.subr.mxu0 0.0
      %697 = vmatpush1.msra.mxu0 0.0
      %698 = vmatprep.subr.mxu0 0.0
      %699 = vmatpush1.msra.mxu0 0.0
      %700 = vmatprep.subr.mxu0 0.0
      %701 = vmatpush1.msra.mxu0 0.0
      %702 = vmatprep.subr.mxu0 0.0
      %703 = vmatpush1.msra.mxu0 0.0
      %704 = vmatprep.subr.mxu0 0.0
      %705 = vmatpush1.msra.mxu0 0.0
      %706 = vmatprep.subr.mxu0 0.0
      %707 = vmatpush1.msra.mxu0 0.0
      %708 = vmatprep.subr.mxu0 0.0
      %709 = vmatpush1.msra.mxu0 0.0
      %710 = vmatprep.subr.mxu0 0.0
      %711 = vmatpush1.msra.mxu0 0.0
      %712 = vmatprep.subr.mxu0 0.0
      %713 = vmatpush1.msra.mxu0 0.0
      %714 = vmatprep.subr.mxu0 0.0
      %715 = vmatpush1.msra.mxu0 0.0
      %716 = vmatprep.subr.mxu0 0.0
      %717 = vmatpush1.msra.mxu0 0.0
      %718 = vmatprep.subr.mxu0 0.0
      %719 = vmatpush1.msra.mxu0 0.0
      %720 = vmatprep.mubr.f32.mxu0 0.0
      %721 = vmatmul.mubr.f32.gmra.mrb[0].mxu0 %v654
      %v722 = vpop.f32.mrb[0].mxu0
      %v723 = vadd.f32 0.0, %v722
      %v724 = vpop.f32.mrb[0].mxu0
      %725 = vdwg.mxu0
      %v727 = vsel %vm265, %v650, 0
      %729 = vmatprep.subr.mxu0 0.0
      %730 = vmatpush1.msra.mxu0 %v261
      %731 = vmatprep.subr.mxu0 0.0
      %732 = vmatpush1.msra.mxu0 0.0
      %733 = vmatprep.subr.mxu0 0.0
      %734 = vmatpush1.msra.mxu0 0.0
      %735 = vmatprep.subr.mxu0 0.0
      %736 = vmatpush1.msra.mxu0 0.0
      %737 = vmatprep.subr.mxu0 0.0
      %738 = vmatpush1.msra.mxu0 0.0
      %739 = vmatprep.subr.mxu0 0.0
      %740 = vmatpush1.msra.mxu0 0.0
      %741 = vmatprep.subr.mxu0 0.0
      %742 = vmatpush1.msra.mxu0 0.0
      %743 = vmatprep.subr.mxu0 0.0
      %744 = vmatpush1.msra.mxu0 0.0
      %745 = vmatprep.subr.mxu0 0.0
      %746 = vmatpush1.msra.mxu0 0.0
      %747 = vmatprep.subr.mxu0 0.0
      %748 = vmatpush1.msra.mxu0 0.0
      %749 = vmatprep.subr.mxu0 0.0
      %750 = vmatpush1.msra.mxu0 0.0
      %751 = vmatprep.subr.mxu0 0.0
      %752 = vmatpush1.msra.mxu0 0.0
      %753 = vmatprep.subr.mxu0 0.0
      %754 = vmatpush1.msra.mxu0 0.0
      %755 = vmatprep.subr.mxu0 0.0
      %756 = vmatpush1.msra.mxu0 0.0
      %757 = vmatprep.subr.mxu0 0.0
      %758 = vmatpush1.msra.mxu0 0.0
      %759 = vmatprep.subr.mxu0 0.0
      %760 = vmatpush1.msra.mxu0 0.0
      %761 = vmatprep.subr.mxu0 0.0
      %762 = vmatpush1.msra.mxu0 0.0
      %763 = vmatprep.subr.mxu0 0.0
      %764 = vmatpush1.msra.mxu0 0.0
      %765 = vmatprep.subr.mxu0 0.0
      %766 = vmatpush1.msra.mxu0 0.0
      %767 = vmatprep.subr.mxu0 0.0
      %768 = vmatpush1.msra.mxu0 0.0
      %769 = vmatprep.subr.mxu0 0.0
      %770 = vmatpush1.msra.mxu0 0.0
      %771 = vmatprep.subr.mxu0 0.0
      %772 = vmatpush1.msra.mxu0 0.0
      %773 = vmatprep.subr.mxu0 0.0
      %774 = vmatpush1.msra.mxu0 0.0
      %775 = vmatprep.subr.mxu0 0.0
      %776 = vmatpush1.msra.mxu0 0.0
      %777 = vmatprep.subr.mxu0 0.0
      %778 = vmatpush1.msra.mxu0 0.0
      %779 = vmatprep.subr.mxu0 0.0
      %780 = vmatpush1.msra.mxu0 0.0
      %781 = vmatprep.subr.mxu0 0.0
      %782 = vmatpush1.msra.mxu0 0.0
      %783 = vmatprep.subr.mxu0 0.0
      %784 = vmatpush1.msra.mxu0 0.0
      %785 = vmatprep.subr.mxu0 0.0
      %786 = vmatpush1.msra.mxu0 0.0
      %787 = vmatprep.subr.mxu0 0.0
      %788 = vmatpush1.msra.mxu0 0.0
      %789 = vmatprep.subr.mxu0 0.0
      %790 = vmatpush1.msra.mxu0 0.0
      %791 = vmatprep.subr.mxu0 0.0
      %792 = vmatpush1.msra.mxu0 0.0
      %793 = vmatprep.mubr.f32.mxu0 0.0
      %794 = vmatmul.mubr.f32.gmra.mrb[0].mxu0 %v727
      %v795 = vpop.f32.mrb[0].mxu0
      %v796 = vadd.f32 0.0, %v795
      %v797 = vpop.f32.mrb[0].mxu0
      %798 = vdwg.mxu0
      %v800 = vsel %vm265, %v651, 0
      %802 = vmatprep.subr.mxu0 0.0
      %803 = vmatpush1.msra.mxu0 %v262
      %804 = vmatprep.subr.mxu0 0.0
      %805 = vmatpush1.msra.mxu0 0.0
      %806 = vmatprep.subr.mxu0 0.0
      %807 = vmatpush1.msra.mxu0 0.0
      %808 = vmatprep.subr.mxu0 0.0
      %809 = vmatpush1.msra.mxu0 0.0
      %810 = vmatprep.subr.mxu0 0.0
      %811 = vmatpush1.msra.mxu0 0.0
      %812 = vmatprep.subr.mxu0 0.0
      %813 = vmatpush1.msra.mxu0 0.0
      %814 = vmatprep.subr.mxu0 0.0
      %815 = vmatpush1.msra.mxu0 0.0
      %816 = vmatprep.subr.mxu0 0.0
      %817 = vmatpush1.msra.mxu0 0.0
      %818 = vmatprep.subr.mxu0 0.0
      %819 = vmatpush1.msra.mxu0 0.0
      %820 = vmatprep.subr.mxu0 0.0
      %821 = vmatpush1.msra.mxu0 0.0
      %822 = vmatprep.subr.mxu0 0.0
      %823 = vmatpush1.msra.mxu0 0.0
      %824 = vmatprep.subr.mxu0 0.0
      %825 = vmatpush1.msra.mxu0 0.0
      %826 = vmatprep.subr.mxu0 0.0
      %827 = vmatpush1.msra.mxu0 0.0
      %828 = vmatprep.subr.mxu0 0.0
      %829 = vmatpush1.msra.mxu0 0.0
      %830 = vmatprep.subr.mxu0 0.0
      %831 = vmatpush1.msra.mxu0 0.0
      %832 = vmatprep.subr.mxu0 0.0
      %833 = vmatpush1.msra.mxu0 0.0
      %834 = vmatprep.subr.mxu0 0.0
      %835 = vmatpush1.msra.mxu0 0.0
      %836 = vmatprep.subr.mxu0 0.0
      %837 = vmatpush1.msra.mxu0 0.0
      %838 = vmatprep.subr.mxu0 0.0
      %839 = vmatpush1.msra.mxu0 0.0
      %840 = vmatprep.subr.mxu0 0.0
      %841 = vmatpush1.msra.mxu0 0.0
      %842 = vmatprep.subr.mxu0 0.0
      %843 = vmatpush1.msra.mxu0 0.0
      %844 = vmatprep.subr.mxu0 0.0
      %845 = vmatpush1.msra.mxu0 0.0
      %846 = vmatprep.subr.mxu0 0.0
      %847 = vmatpush1.msra.mxu0 0.0
      %848 = vmatprep.subr.mxu0 0.0
      %849 = vmatpush1.msra.mxu0 0.0
      %850 = vmatprep.subr.mxu0 0.0
      %851 = vmatpush1.msra.mxu0 0.0
      %852 = vmatprep.subr.mxu0 0.0
      %853 = vmatpush1.msra.mxu0 0.0
      %854 = vmatprep.subr.mxu0 0.0
      %855 = vmatpush1.msra.mxu0 0.0
      %856 = vmatprep.subr.mxu0 0.0
      %857 = vmatpush1.msra.mxu0 0.0
      %858 = vmatprep.subr.mxu0 0.0
      %859 = vmatpush1.msra.mxu0 0.0
      %860 = vmatprep.subr.mxu0 0.0
      %861 = vmatpush1.msra.mxu0 0.0
      %862 = vmatprep.subr.mxu0 0.0
      %863 = vmatpush1.msra.mxu0 0.0
      %864 = vmatprep.subr.mxu0 0.0
      %865 = vmatpush1.msra.mxu0 0.0
      %866 = vmatprep.mubr.f32.mxu0 0.0
      %867 = vmatmul.mubr.f32.gmra.mrb[0].mxu0 %v800
      %v868 = vpop.f32.mrb[0].mxu0
      %v869 = vadd.f32 0.0, %v868
      %v870 = vpop.f32.mrb[0].mxu0
      %871 = vdwg.mxu0
      %v873 = vsel %vm265, %v652, 0
      %875 = vmatprep.subr.mxu0 0.0
      %876 = vmatpush1.msra.mxu0 %v263
      %877 = vmatprep.subr.mxu0 0.0
      %878 = vmatpush1.msra.mxu0 0.0
      %879 = vmatprep.subr.mxu0 0.0
      %880 = vmatpush1.msra.mxu0 0.0
      %881 = vmatprep.subr.mxu0 0.0
      %882 = vmatpush1.msra.mxu0 0.0
      %883 = vmatprep.subr.mxu0 0.0
      %884 = vmatpush1.msra.mxu0 0.0
      %885 = vmatprep.subr.mxu0 0.0
      %886 = vmatpush1.msra.mxu0 0.0
      %887 = vmatprep.subr.mxu0 0.0
      %888 = vmatpush1.msra.mxu0 0.0
      %889 = vmatprep.subr.mxu0 0.0
      %890 = vmatpush1.msra.mxu0 0.0
      %891 = vmatprep.subr.mxu0 0.0
      %892 = vmatpush1.msra.mxu0 0.0
      %893 = vmatprep.subr.mxu0 0.0
      %894 = vmatpush1.msra.mxu0 0.0
      %895 = vmatprep.subr.mxu0 0.0
      %896 = vmatpush1.msra.mxu0 0.0
      %897 = vmatprep.subr.mxu0 0.0
      %898 = vmatpush1.msra.mxu0 0.0
      %899 = vmatprep.subr.mxu0 0.0
      %900 = vmatpush1.msra.mxu0 0.0
      %901 = vmatprep.subr.mxu0 0.0
      %902 = vmatpush1.msra.mxu0 0.0
      %903 = vmatprep.subr.mxu0 0.0
      %904 = vmatpush1.msra.mxu0 0.0
      %905 = vmatprep.subr.mxu0 0.0
      %906 = vmatpush1.msra.mxu0 0.0
      %907 = vmatprep.subr.mxu0 0.0
      %908 = vmatpush1.msra.mxu0 0.0
      %909 = vmatprep.subr.mxu0 0.0
      %910 = vmatpush1.msra.mxu0 0.0
      %911 = vmatprep.subr.mxu0 0.0
      %912 = vmatpush1.msra.mxu0 0.0
      %913 = vmatprep.subr.mxu0 0.0
      %914 = vmatpush1.msra.mxu0 0.0
      %915 = vmatprep.subr.mxu0 0.0
      %916 = vmatpush1.msra.mxu0 0.0
      %917 = vmatprep.subr.mxu0 0.0
      %918 = vmatpush1.msra.mxu0 0.0
      %919 = vmatprep.subr.mxu0 0.0
      %920 = vmatpush1.msra.mxu0 0.0
      %921 = vmatprep.subr.mxu0 0.0
      %922 = vmatpush1.msra.mxu0 0.0
      %923 = vmatprep.subr.mxu0 0.0
      %924 = vmatpush1.msra.mxu0 0.0
      %925 = vmatprep.subr.mxu0 0.0
      %926 = vmatpush1.msra.mxu0 0.0
      %927 = vmatprep.subr.mxu0 0.0
      %928 = vmatpush1.msra.mxu0 0.0
      %929 = vmatprep.subr.mxu0 0.0
      %930 = vmatpush1.msra.mxu0 0.0
      %931 = vmatprep.subr.mxu0 0.0
      %932 = vmatpush1.msra.mxu0 0.0
      %933 = vmatprep.subr.mxu0 0.0
      %934 = vmatpush1.msra.mxu0 0.0
      %935 = vmatprep.subr.mxu0 0.0
      %936 = vmatpush1.msra.mxu0 0.0
      %937 = vmatprep.subr.mxu0 0.0
      %938 = vmatpush1.msra.mxu0 0.0
      %939 = vmatprep.mubr.f32.mxu0 0.0
      %940 = vmatmul.mubr.f32.gmra.mrb[0].mxu0 %v873
      %v941 = vpop.f32.mrb[0].mxu0
      %v942 = vadd.f32 0.0, %v941
      %v943 = vpop.f32.mrb[0].mxu0
      %944 = vdwg.mxu0
      %945 = vst.msk [vmem:[%s251] sm:$0xff] %vm265, %v723
      %946 = vst.msk [vmem:[%s251 + $0x8] sm:$0xff] %vm265, %v796
      %947 = vst.msk [vmem:[%s251 + $0x10] sm:$0xff] %vm265, %v869
      %948 = vst.msk [vmem:[%s251 + $0x18] sm:$0xff] %vm265, %v942
      %p949 = scmp.lt.s32.totalorder %s15, 1
      %s950 = scalar_select %p949, %s15, 1
      %s951 = smul.addr %s950, 4
      %s952 = smul.addr %s951, 8
      %s953 = scalar_lea.vmem %s4, %s952
      // Predicated region
      $region37: #{decoder_forward.13} parent=35 // pred_check
        %p954 = pneg %p137
      $region38: #{decoder_forward.13} parent=35 // pred_check_branch
        %956 = sbr.rel (%p954) target = $region40
      $region39: #{decoder_forward.13} parent=35 // pred_region
        _
      $region40: #{decoder_forward.13} parent=35 // pred_fallthru
        _
    $region36: #{decoder_forward.13} parent=5 // pred_fallthru
      _
    %p957 = scmp.le.s32.totalorder 2, %s10
    // Predicated region
    $region41: #{decoder_forward.13} parent=5 // pred_check
      %p958 = pneg %p957
    $region42: #{decoder_forward.13} parent=5 // pred_check_branch
      %960 = sbr.rel (%p958) target = $region44
    $region43: #{decoder_forward.13} parent=5 // pred_region
      %s961 = ssub.s32 %s10, 2
      // Predicated region
      $region45: #{decoder_forward.13} parent=43 // pred_check
        %p962 = pneg %p143
      $region46: #{decoder_forward.13} parent=43 // pred_check_branch
        %964 = sbr.rel (%p962) target = $region48
      $region47: #{decoder_forward.13} parent=43 // pred_region
        %p965 = scmp.lt.s32.totalorder %s16, 1
        %s966 = scalar_select %p965, %s16, 1
        %s967 = smul.addr %s966, 4
        %s968 = smul.addr %s967, 8
        %s969 = scalar_lea.vmem %s4, %s968
      $region48: #{decoder_forward.13} parent=43 // pred_fallthru
        _
    $region44: #{decoder_forward.13} parent=5 // pred_fallthru
      _
  $region6: #{decoder_forward.13} parent=0 // loop_footer
    %s14 = sadd.s32 1, %s10
  $region7: #{decoder_forward.13} parent=0 // loop_footer_branch
    %9 = sbr.rel target = $region3
  $region8: #{decoder_forward.13} parent=0 // loop_exit
    _

// kernel: decoder_forward.11
$region0: #{decoder_forward.11}
  #allocation0 [shape = 'u32[]', space=smem, size = 0x4, offset = 0x4, fixed_abs, tag = 'smem constant byte address 0x4 - core index']
  #allocation1 [shape = 'u32[144,128]{1,0:T(1,128)}', space=vmem, size = 0x12000, scoped, tag = 'internal scratch']
  %s0 = inlined_call_operand.vmem [shape: f32[2,4,8,8], index: 0, kind: input, shape index: {}]
  %s1 = inlined_call_operand.vmem [shape: f32[2,4,8,8], index: 1, kind: input, shape index: {}]
  %s2 = inlined_call_operand.vmem [shape: f32[2,4,8,8], index: 2, kind: input, shape index: {}]
  %s3 = inlined_call_operand.vmem [shape: f32[1,8,8], index: 3, kind: input, shape index: {}]
  %s4 = inlined_call_operand.vmem [shape: f32[2,4,8,8], index: 4, kind: output, shape index: {}]
  %s5 = sld [smem:[#allocation0]]
  $region49: #{decoder_forward.11} parent=0
    _
  %s7 = ssub.s32 1, %s5
  %s8 = scalar_select 0, %s7, %s5
  loop: start=0, step=1, limit=4
  $region2: #{decoder_forward.11} parent=0 // loop_pre_header
    _
  $region3: #{decoder_forward.11} parent=0 // loop_header
    %s10 = sphi 0, %s14
    %p11 = scmp.ge.s32.totalorder %s10, 4
    %s20 = sphi 0, %s22
    %s23 = sphi 0, %s20
    %s24 = sphi 0, %s23
    %s40 = sphi 0, %s24
    %s46 = sphi 0, %s48
    %s49 = sphi 0, %s46
    %s50 = sphi 0, %s49
    %s66 = sphi 0, %s50
    %s72 = sphi 0, %s74
    %s75 = sphi 0, %s72
    %s76 = sphi 0, %s75
    %s92 = sphi 0, %s76
    %s96 = sphi 0, %s96
    %s98 = sphi 0, %s96
    %s99 = sphi 0, %s98
    %s113 = sphi 0, %s99
    %s119 = sphi 0, %s121
    %s122 = sphi 0, %s119
    %s123 = sphi 0, %s122
    %s139 = sphi 0, %s123
  $region4: #{decoder_forward.11} parent=0 // loop_header_branch
    %13 = sbr.rel (%p11) target = $region8
  $region5: #{decoder_forward.11} parent=0 // loop_body
    %s15 = ssub.s32 %s10, 1
    %s16 = ssub.s32 %s10, 2
    %s17 = sadd.s32 %s10, 1
    %s18 = ssub.s32 %s10, %s17
    %p19 = scmp.eq.s32.totalorder %s18, 0
    %s21 = sadd.s32 %s20, 1
    %s22 = scalar_select %p19, %s20, %s21
    %p25 = pneg %p19
    %p26 = scmp.eq.s32.totalorder %s10, 1
    %p27 = por %p25, %p26
    %p28 = scmp.ne.s32.totalorder %s20, %s23
    %p29 = scmp.eq.s32.totalorder %s10, 0
    %p30 = por %p28, %p29
    %p31 = scmp.ne.s32.totalorder %s20, %s23
    %p32 = scmp.eq.s32.totalorder %s15, 1
    %p33 = por %p31, %p32
    %p34 = scmp.ne.s32.totalorder %s23, %s24
    %p35 = scmp.eq.s32.totalorder %s15, 0
    %p36 = por %p34, %p35
    %p37 = scmp.ne.s32.totalorder %s23, %s24
    %p38 = scmp.eq.s32.totalorder %s16, 1
    %p39 = por %p37, %p38
    %p41 = scmp.ne.s32.totalorder %s24, %s40
    %p42 = scmp.eq.s32.totalorder %s16, 0
    %p43 = por %p41, %p42
    %s44 = ssub.s32 %s10, %s17
    %p45 = scmp.eq.s32.totalorder %s44, 0
    %s47 = sadd.s32 %s46, 1
    %s48 = scalar_select %p45, %s46, %s47
    %p51 = pneg %p45
    %p52 = scmp.eq.s32.totalorder %s10, 1
    %p53 = por %p51, %p52
    %p54 = scmp.ne.s32.totalorder %s46, %s49
    %p55 = scmp.eq.s32.totalorder %s10, 0
    %p56 = por %p54, %p55
    %p57 = scmp.ne.s32.totalorder %s46, %s49
    %p58 = scmp.eq.s32.totalorder %s15, 1
    %p59 = por %p57, %p58
    %p60 = scmp.ne.s32.totalorder %s49, %s50
    %p61 = scmp.eq.s32.totalorder %s15, 0
    %p62 = por %p60, %p61
    %p63 = scmp.ne.s32.totalorder %s49, %s50
    %p64 = scmp.eq.s32.totalorder %s16, 1
    %p65 = por %p63, %p64
    %p67 = scmp.ne.s32.totalorder %s50, %s66
    %p68 = scmp.eq.s32.totalorder %s16, 0
    %p69 = por %p67, %p68
    %s70 = ssub.s32 %s10, %s17
    %p71 = scmp.eq.s32.totalorder %s70, 0
    %s73 = sadd.s32 %s72, 1
    %s74 = scalar_select %p71, %s72, %s73
    %p77 = pneg %p71
    %p78 = scmp.eq.s32.totalorder %s10, 1
    %p79 = por %p77, %p78
    %p80 = scmp.ne.s32.totalorder %s72, %s75
    %p81 = scmp.eq.s32.totalorder %s10, 0
    %p82 = por %p80, %p81
    %p83 = scmp.ne.s32.totalorder %s72, %s75
    %p84 = scmp.eq.s32.totalorder %s15, 1
    %p85 = por %p83, %p84
    %p86 = scmp.ne.s32.totalorder %s75, %s76
    %p87 = scmp.eq.s32.totalorder %s15, 0
    %p88 = por %p86, %p87
    %p89 = scmp.ne.s32.totalorder %s75, %s76
    %p90 = scmp.eq.s32.totalorder %s16, 1
    %p91 = por %p89, %p90
    %p93 = scmp.ne.s32.totalorder %s76, %s92
    %p94 = scmp.eq.s32.totalorder %s16, 0
    %p95 = por %p93, %p94
    %s97 = sadd.s32 %s96, 1
    %p100 = scmp.eq.s32.totalorder %s10, 1
    %p101 = scmp.ne.s32.totalorder %s96, %s98
    %p102 = scmp.eq.s32.totalorder %s10, 0
    %p103 = por %p101, %p102
    %p104 = scmp.ne.s32.totalorder %s96, %s98
    %p105 = scmp.eq.s32.totalorder %s15, 1
    %p106 = por %p104, %p105
    %p107 = scmp.ne.s32.totalorder %s98, %s99
    %p108 = scmp.eq.s32.totalorder %s15, 0
    %p109 = por %p107, %p108
    %p110 = scmp.ne.s32.totalorder %s98, %s99
    %p111 = scmp.eq.s32.totalorder %s16, 1
    %p112 = por %p110, %p111
    %p114 = scmp.ne.s32.totalorder %s99, %s113
    %p115 = scmp.eq.s32.totalorder %s16, 0
    %p116 = por %p114, %p115
    %s117 = ssub.s32 %s10, %s17
    %p118 = scmp.eq.s32.totalorder %s117, 0
    %s120 = sadd.s32 %s119, 1
    %s121 = scalar_select %p118, %s119, %s120
    %p124 = pneg %p118
    %p125 = scmp.eq.s32.totalorder %s10, 1
    %p126 = por %p124, %p125
    %p127 = scmp.ne.s32.totalorder %s119, %s122
    %p128 = scmp.eq.s32.totalorder %s10, 0
    %p129 = por %p127, %p128
    %p130 = scmp.ne.s32.totalorder %s119, %s122
    %p131 = scmp.eq.s32.totalorder %s15, 1
    %p132 = por %p130, %p131
    %p133 = scmp.ne.s32.totalorder %s122, %s123
    %p134 = scmp.eq.s32.totalorder %s15, 0
    %p135 = por %p133, %p134
    %p136 = scmp.ne.s32.totalorder %s122, %s123
    %p137 = scmp.eq.s32.totalorder %s16, 1
    %p138 = por %p136, %p137
    %p140 = scmp.ne.s32.totalorder %s123, %s139
    %p141 = scmp.eq.s32.totalorder %s16, 0
    %p142 = por %p140, %p141
    %p143 = scmp.le.s32.totalorder 1, %s10
    %p144 = scmp.lt.s32.totalorder %s10, 3
    %p145 = pnand %p143, %p144
    %p146 = pneg %p145
    // Predicated region
    $region9: #{decoder_forward.11} parent=5 // pred_check
      _
    $region10: #{decoder_forward.11} parent=5 // pred_check_branch
      %148 = sbr.rel (%p145) target = $region12
    $region11: #{decoder_forward.11} parent=5 // pred_region
      %s149 = ssub.s32 %s10, 1
      // Predicated region
      $region13: #{decoder_forward.11} parent=11 // pred_check
        %p150 = pneg %p109
      $region14: #{decoder_forward.11} parent=11 // pred_check_branch
        %152 = sbr.rel (%p150) target = $region16
      $region15: #{decoder_forward.11} parent=11 // pred_region
        _
      $region16: #{decoder_forward.11} parent=11 // pred_fallthru
        _
    $region12: #{decoder_forward.11} parent=5 // pred_fallthru
      _
    %p153 = scmp.lt.s32.totalorder %s10, 2
    // Predicated region
    $region17: #{decoder_forward.11} parent=5 // pred_check
      %p154 = pneg %p153
    $region18: #{decoder_forward.11} parent=5 // pred_check_branch
      %156 = sbr.rel (%p154) target = $region20
    $region19: #{decoder_forward.11} parent=5 // pred_region
      // Predicated region
      $region21: #{decoder_forward.11} parent=19 // pred_check
        %p157 = pneg %p30
      $region22: #{decoder_forward.11} parent=19 // pred_check_branch
        %159 = sbr.rel (%p157) target = $region24
      $region23: #{decoder_forward.11} parent=19 // pred_region
        %p160 = scmp.lt.s32.totalorder %s10, 1
        %s161 = scalar_select %p160, %s10, 1
        %s162 = smul.addr %s161, 4
        %s163 = smul.addr %s162, 8
        %s164 = scalar_lea.vmem %s0, %s163
      $region24: #{decoder_forward.11} parent=19 // pred_fallthru
        _
      // Predicated region
      $region25: #{decoder_forward.11} parent=19 // pred_check
        %p165 = pneg %p56
      $region26: #{decoder_forward.11} parent=19 // pred_check_branch
        %167 = sbr.rel (%p165) target = $region28
      $region27: #{decoder_forward.11} parent=19 // pred_region
        %p168 = scmp.lt.s32.totalorder %s10, 1
        %s169 = scalar_select %p168, %s10, 1
        %s170 = smul.addr %s169, 4
        %s171 = smul.addr %s170, 8
        %s172 = scalar_lea.vmem %s1, %s171
      $region28: #{decoder_forward.11} parent=19 // pred_fallthru
        _
      // Predicated region
      $region29: #{decoder_forward.11} parent=19 // pred_check
        %p173 = pneg %p82
      $region30: #{decoder_forward.11} parent=19 // pred_check_branch
        %175 = sbr.rel (%p173) target = $region32
      $region31: #{decoder_forward.11} parent=19 // pred_region
        %p176 = scmp.lt.s32.totalorder %s10, 1
        %s177 = scalar_select %p176, %s10, 1
        %s178 = smul.addr %s177, 4
        %s179 = smul.addr %s178, 8
        %s180 = scalar_lea.vmem %s2, %s179
      $region32: #{decoder_forward.11} parent=19 // pred_fallthru
        _
    $region20: #{decoder_forward.11} parent=5 // pred_fallthru
      _
    %p181 = scmp.le.s32.totalorder 1, %s10
    %p182 = scmp.lt.s32.totalorder %s10, 3
    %p183 = pnand %p181, %p182
    %p184 = pneg %p183
    // Predicated region
    $region33: #{decoder_forward.11} parent=5 // pred_check
      _
    $region34: #{decoder_forward.11} parent=5 // pred_check_branch
      %186 = sbr.rel (%p183) target = $region36
    $region35: #{decoder_forward.11} parent=5 // pred_region
      %s187 = ssub.s32 %s10, 1
      %p188 = scmp.lt.s32.totalorder %s15, 1
      %s189 = scalar_select %p188, %s15, 1
      %s190 = smul.addr %s189, 4
      %s191 = smul.addr %s190, 8
      %s192 = scalar_lea.vmem %s0, %s191
      %p193 = pneg %p36
      %p194 = pneg %p33
      %p195 = scmp.lt.s32.totalorder %s15, 1
      %s196 = scalar_select %p195, %s15, 1
      %s197 = smul.addr %s196, 4
      %s198 = smul.addr %s197, 8
      %s199 = scalar_lea.vmem %s1, %s198
      %p200 = pneg %p62
      %p201 = pneg %p59
      %p202 = scmp.lt.s32.totalorder %s15, 1
      %s203 = scalar_select %p202, %s15, 1
      %s204 = smul.addr %s203, 4
      %s205 = smul.addr %s204, 8
      %s206 = scalar_lea.vmem %s2, %s205
      %p207 = pneg %p88
      %p208 = pneg %p85
      %p209 = pneg %p109
      %p210 = pneg %p106
      %p211 = pneg %p135
      %p212 = pneg %p132
      %p213 = scmp.lt.s32.totalorder %s15, 1
      %s214 = scalar_select %p213, %s15, 1
      %s215 = smul.addr %s214, 4
      %s216 = smul.addr %s215, 8
      %s217 = scalar_lea.vmem %s4, %s216
      %p218 = scmp.lt.s32.totalorder %s15, 1
      %s219 = scalar_select %p218, %s15, 1
      %s220 = smul.addr %s219, 4
      %s221 = smul.addr %s220, 8
      %s222 = scalar_lea.vmem %s0, %s221
      %p223 = scmp.lt.s32.totalorder %s15, 1
      %s224 = scalar_select %p223, %s15, 1
      %s225 = smul.addr %s224, 4
      %s226 = smul.addr %s225, 8
      %s227 = scalar_lea.vmem %s1, %s226
      %p228 = scmp.lt.s32.totalorder %s15, 1
      %s229 = scalar_select %p228, %s15, 1
      %s230 = smul.addr %s229, 4
      %s231 = smul.addr %s230, 8
      %s232 = scalar_lea.vmem %s2, %s231
      %p233 = scmp.lt.s32.totalorder %s15, 1
      %s234 = scalar_select %p233, %s15, 1
      %s235 = smul.addr %s234, 4
      %s236 = smul.addr %s235, 8
      %s237 = scalar_lea.vmem %s4, %s236
      %v238 = vld [vmem:[%s222] sm:$0xff]
      %v239 = vld [vmem:[%s222 + $0x8] sm:$0xff]
      %v240 = vld [vmem:[%s222 + $0x10] sm:$0xff]
      %v241 = vld [vmem:[%s222 + $0x18] sm:$0xff]
      %v242 = vld [vmem:[%s227] sm:$0xff]
      %v243 = vld [vmem:[%s227 + $0x8] sm:$0xff]
      %v244 = vld [vmem:[%s227 + $0x10] sm:$0xff]
      %v245 = vld [vmem:[%s227 + $0x18] sm:$0xff]
      %v246 = vld [vmem:[%s232] sm:$0xff]
      %v247 = vld [vmem:[%s232 + $0x8] sm:$0xff]
      %v248 = vld [vmem:[%s232 + $0x10] sm:$0xff]
      %v249 = vld [vmem:[%s232 + $0x18] sm:$0xff]
      %v250 = vld [vmem:[%s3] sm:$0xff]
      %vm251 = vcmask 64512
      %v253 = vsel %vm251, %v238, 0
      %v256 = vsel %vm251, %v242, 0
      %258 = vmatprep.subr.mxu0 0.0
      %259 = vmatpush1.xpose.msra.mxu0 %v256
      %260 = vmatprep.subr.mxu0 0.0
      %261 = vmatpush1.xpose.msra.mxu0 0.0
      %262 = vmatprep.subr.mxu0 0.0
      %263 = vmatpush1.xpose.msra.mxu0 0.0
      %264 = vmatprep.subr.mxu0 0.0
      %265 = vmatpush1.xpose.msra.mxu0 0.0
      %266 = vmatprep.subr.mxu0 0.0
      %267 = vmatpush1.xpose.msra.mxu0 0.0
      %268 = vmatprep.subr.mxu0 0.0
      %269 = vmatpush1.xpose.msra.mxu0 0.0
      %270 = vmatprep.subr.mxu0 0.0
      %271 = vmatpush1.xpose.msra.mxu0 0.0
      %272 = vmatprep.subr.mxu0 0.0
      %273 = vmatpush1.xpose.msra.mxu0 0.0
      %274 = vmatprep.subr.mxu0 0.0
      %275 = vmatpush1.xpose.msra.mxu0 0.0
      %276 = vmatprep.subr.mxu0 0.0
      %277 = vmatpush1.xpose.msra.mxu0 0.0
      %278 = vmatprep.subr.mxu0 0.0
      %279 = vmatpush1.xpose.msra.mxu0 0.0
      %280 = vmatprep.subr.mxu0 0.0
      %281 = vmatpush1.xpose.msra.mxu0 0.0
      %282 = vmatprep.subr.mxu0 0.0
      %283 = vmatpush1.xpose.msra.mxu0 0.0
      %284 = vmatprep.subr.mxu0 0.0
      %285 = vmatpush1.xpose.msra.mxu0 0.0
      %286 = vmatprep.subr.mxu0 0.0
      %287 = vmatpush1.xpose.msra.mxu0 0.0
      %288 = vmatprep.subr.mxu0 0.0
      %289 = vmatpush1.xpose.msra.mxu0 0.0
      %290 = vmatprep.subr.mxu0 0.0
      %291 = vmatpush1.xpose.msra.mxu0 0.0
      %292 = vmatprep.subr.mxu0 0.0
      %293 = vmatpush1.xpose.msra.mxu0 0.0
      %294 = vmatprep.subr.mxu0 0.0
      %295 = vmatpush1.xpose.msra.mxu0 0.0
      %296 = vmatprep.subr.mxu0 0.0
      %297 = vmatpush1.xpose.msra.mxu0 0.0
      %298 = vmatprep.subr.mxu0 0.0
      %299 = vmatpush1.xpose.msra.mxu0 0.0
      %300 = vmatprep.subr.mxu0 0.0
      %301 = vmatpush1.xpose.msra.mxu0 0.0
      %302 = vmatprep.subr.mxu0 0.0
      %303 = vmatpush1.xpose.msra.mxu0 0.0
      %304 = vmatprep.subr.mxu0 0.0
      %305 = vmatpush1.xpose.msra.mxu0 0.0
      %306 = vmatprep.subr.mxu0 0.0
      %307 = vmatpush1.xpose.msra.mxu0 0.0
      %308 = vmatprep.subr.mxu0 0.0
      %309 = vmatpush1.xpose.msra.mxu0 0.0
      %310 = vmatprep.subr.mxu0 0.0
      %311 = vmatpush1.xpose.msra.mxu0 0.0
      %312 = vmatprep.subr.mxu0 0.0
      %313 = vmatpush1.xpose.msra.mxu0 0.0
      %314 = vmatprep.subr.mxu0 0.0
      %315 = vmatpush1.xpose.msra.mxu0 0.0
      %316 = vmatprep.subr.mxu0 0.0
      %317 = vmatpush1.xpose.msra.mxu0 0.0
      %318 = vmatprep.subr.mxu0 0.0
      %319 = vmatpush1.xpose.msra.mxu0 0.0
      %320 = vmatprep.subr.mxu0 0.0
      %321 = vmatpush1.xpose.msra.mxu0 0.0
      %322 = vmatprep.mubr.f32.mxu0 0.0
      %323 = vmatmul.mubr.f32.gmra.mrb[0].mxu0 %v253
      %v324 = vpop.f32.mrb[0].mxu0
      %v325 = vadd.f32 0.0, %v324
      %v326 = vpop.f32.mrb[0].mxu0
      %327 = vdwg.mxu0
      %v329 = vsel %vm251, %v239, 0
      %v332 = vsel %vm251, %v243, 0
      %334 = vmatprep.subr.mxu0 0.0
      %335 = vmatpush1.xpose.msra.mxu0 %v332
      %336 = vmatprep.subr.mxu0 0.0
      %337 = vmatpush1.xpose.msra.mxu0 0.0
      %338 = vmatprep.subr.mxu0 0.0
      %339 = vmatpush1.xpose.msra.mxu0 0.0
      %340 = vmatprep.subr.mxu0 0.0
      %341 = vmatpush1.xpose.msra.mxu0 0.0
      %342 = vmatprep.subr.mxu0 0.0
      %343 = vmatpush1.xpose.msra.mxu0 0.0
      %344 = vmatprep.subr.mxu0 0.0
      %345 = vmatpush1.xpose.msra.mxu0 0.0
      %346 = vmatprep.subr.mxu0 0.0
      %347 = vmatpush1.xpose.msra.mxu0 0.0
      %348 = vmatprep.subr.mxu0 0.0
      %349 = vmatpush1.xpose.msra.mxu0 0.0
      %350 = vmatprep.subr.mxu0 0.0
      %351 = vmatpush1.xpose.msra.mxu0 0.0
      %352 = vmatprep.subr.mxu0 0.0
      %353 = vmatpush1.xpose.msra.mxu0 0.0
      %354 = vmatprep.subr.mxu0 0.0
      %355 = vmatpush1.xpose.msra.mxu0 0.0
      %356 = vmatprep.subr.mxu0 0.0
      %357 = vmatpush1.xpose.msra.mxu0 0.0
      %358 = vmatprep.subr.mxu0 0.0
      %359 = vmatpush1.xpose.msra.mxu0 0.0
      %360 = vmatprep.subr.mxu0 0.0
      %361 = vmatpush1.xpose.msra.mxu0 0.0
      %362 = vmatprep.subr.mxu0 0.0
      %363 = vmatpush1.xpose.msra.mxu0 0.0
      %364 = vmatprep.subr.mxu0 0.0
      %365 = vmatpush1.xpose.msra.mxu0 0.0
      %366 = vmatprep.subr.mxu0 0.0
      %367 = vmatpush1.xpose.msra.mxu0 0.0
      %368 = vmatprep.subr.mxu0 0.0
      %369 = vmatpush1.xpose.msra.mxu0 0.0
      %370 = vmatprep.subr.mxu0 0.0
      %371 = vmatpush1.xpose.msra.mxu0 0.0
      %372 = vmatprep.subr.mxu0 0.0
      %373 = vmatpush1.xpose.msra.mxu0 0.0
      %374 = vmatprep.subr.mxu0 0.0
      %375 = vmatpush1.xpose.msra.mxu0 0.0
      %376 = vmatprep.subr.mxu0 0.0
      %377 = vmatpush1.xpose.msra.mxu0 0.0
      %378 = vmatprep.subr.mxu0 0.0
      %379 = vmatpush1.xpose.msra.mxu0 0.0
      %380 = vmatprep.subr.mxu0 0.0
      %381 = vmatpush1.xpose.msra.mxu0 0.0
      %382 = vmatprep.subr.mxu0 0.0
      %383 = vmatpush1.xpose.msra.mxu0 0.0
      %384 = vmatprep.subr.mxu0 0.0
      %385 = vmatpush1.xpose.msra.mxu0 0.0
      %386 = vmatprep.subr.mxu0 0.0
      %387 = vmatpush1.xpose.msra.mxu0 0.0
      %388 = vmatprep.subr.mxu0 0.0
      %389 = vmatpush1.xpose.msra.mxu0 0.0
      %390 = vmatprep.subr.mxu0 0.0
      %391 = vmatpush1.xpose.msra.mxu0 0.0
      %392 = vmatprep.subr.mxu0 0.0
      %393 = vmatpush1.xpose.msra.mxu0 0.0
      %394 = vmatprep.subr.mxu0 0.0
      %395 = vmatpush1.xpose.msra.mxu0 0.0
      %396 = vmatprep.subr.mxu0 0.0
      %397 = vmatpush1.xpose.msra.mxu0 0.0
      %398 = vmatprep.mubr.f32.mxu0 0.0
      %399 = vmatmul.mubr.f32.gmra.mrb[0].mxu0 %v329
      %v400 = vpop.f32.mrb[0].mxu0
      %v401 = vadd.f32 0.0, %v400
      %v402 = vpop.f32.mrb[0].mxu0
      %403 = vdwg.mxu0
      %v405 = vsel %vm251, %v240, 0
      %v408 = vsel %vm251, %v244, 0
      %410 = vmatprep.subr.mxu0 0.0
      %411 = vmatpush1.xpose.msra.mxu0 %v408
      %412 = vmatprep.subr.mxu0 0.0
      %413 = vmatpush1.xpose.msra.mxu0 0.0
      %414 = vmatprep.subr.mxu0 0.0
      %415 = vmatpush1.xpose.msra.mxu0 0.0
      %416 = vmatprep.subr.mxu0 0.0
      %417 = vmatpush1.xpose.msra.mxu0 0.0
      %418 = vmatprep.subr.mxu0 0.0
      %419 = vmatpush1.xpose.msra.mxu0 0.0
      %420 = vmatprep.subr.mxu0 0.0
      %421 = vmatpush1.xpose.msra.mxu0 0.0
      %422 = vmatprep.subr.mxu0 0.0
      %423 = vmatpush1.xpose.msra.mxu0 0.0
      %424 = vmatprep.subr.mxu0 0.0
      %425 = vmatpush1.xpose.msra.mxu0 0.0
      %426 = vmatprep.subr.mxu0 0.0
      %427 = vmatpush1.xpose.msra.mxu0 0.0
      %428 = vmatprep.subr.mxu0 0.0
      %429 = vmatpush1.xpose.msra.mxu0 0.0
      %430 = vmatprep.subr.mxu0 0.0
      %431 = vmatpush1.xpose.msra.mxu0 0.0
      %432 = vmatprep.subr.mxu0 0.0
      %433 = vmatpush1.xpose.msra.mxu0 0.0
      %434 = vmatprep.subr.mxu0 0.0
      %435 = vmatpush1.xpose.msra.mxu0 0.0
      %436 = vmatprep.subr.mxu0 0.0
      %437 = vmatpush1.xpose.msra.mxu0 0.0
      %438 = vmatprep.subr.mxu0 0.0
      %439 = vmatpush1.xpose.msra.mxu0 0.0
      %440 = vmatprep.subr.mxu0 0.0
      %441 = vmatpush1.xpose.msra.mxu0 0.0
      %442 = vmatprep.subr.mxu0 0.0
      %443 = vmatpush1.xpose.msra.mxu0 0.0
      %444 = vmatprep.subr.mxu0 0.0
      %445 = vmatpush1.xpose.msra.mxu0 0.0
      %446 = vmatprep.subr.mxu0 0.0
      %447 = vmatpush1.xpose.msra.mxu0 0.0
      %448 = vmatprep.subr.mxu0 0.0
      %449 = vmatpush1.xpose.msra.mxu0 0.0
      %450 = vmatprep.subr.mxu0 0.0
      %451 = vmatpush1.xpose.msra.mxu0 0.0
      %452 = vmatprep.subr.mxu0 0.0
      %453 = vmatpush1.xpose.msra.mxu0 0.0
      %454 = vmatprep.subr.mxu0 0.0
      %455 = vmatpush1.xpose.msra.mxu0 0.0
      %456 = vmatprep.subr.mxu0 0.0
      %457 = vmatpush1.xpose.msra.mxu0 0.0
      %458 = vmatprep.subr.mxu0 0.0
      %459 = vmatpush1.xpose.msra.mxu0 0.0
      %460 = vmatprep.subr.mxu0 0.0
      %461 = vmatpush1.xpose.msra.mxu0 0.0
      %462 = vmatprep.subr.mxu0 0.0
      %463 = vmatpush1.xpose.msra.mxu0 0.0
      %464 = vmatprep.subr.mxu0 0.0
      %465 = vmatpush1.xpose.msra.mxu0 0.0
      %466 = vmatprep.subr.mxu0 0.0
      %467 = vmatpush1.xpose.msra.mxu0 0.0
      %468 = vmatprep.subr.mxu0 0.0
      %469 = vmatpush1.xpose.msra.mxu0 0.0
      %470 = vmatprep.subr.mxu0 0.0
      %471 = vmatpush1.xpose.msra.mxu0 0.0
      %472 = vmatprep.subr.mxu0 0.0
      %473 = vmatpush1.xpose.msra.mxu0 0.0
      %474 = vmatprep.mubr.f32.mxu0 0.0
      %475 = vmatmul.mubr.f32.gmra.mrb[0].mxu0 %v405
      %v476 = vpop.f32.mrb[0].mxu0
      %v477 = vadd.f32 0.0, %v476
      %v478 = vpop.f32.mrb[0].mxu0
      %479 = vdwg.mxu0
      %v481 = vsel %vm251, %v241, 0
      %v484 = vsel %vm251, %v245, 0
      %486 = vmatprep.subr.mxu0 0.0
      %487 = vmatpush1.xpose.msra.mxu0 %v484
      %488 = vmatprep.subr.mxu0 0.0
      %489 = vmatpush1.xpose.msra.mxu0 0.0
      %490 = vmatprep.subr.mxu0 0.0
      %491 = vmatpush1.xpose.msra.mxu0 0.0
      %492 = vmatprep.subr.mxu0 0.0
      %493 = vmatpush1.xpose.msra.mxu0 0.0
      %494 = vmatprep.subr.mxu0 0.0
      %495 = vmatpush1.xpose.msra.mxu0 0.0
      %496 = vmatprep.subr.mxu0 0.0
      %497 = vmatpush1.xpose.msra.mxu0 0.0
      %498 = vmatprep.subr.mxu0 0.0
      %499 = vmatpush1.xpose.msra.mxu0 0.0
      %500 = vmatprep.subr.mxu0 0.0
      %501 = vmatpush1.xpose.msra.mxu0 0.0
      %502 = vmatprep.subr.mxu0 0.0
      %503 = vmatpush1.xpose.msra.mxu0 0.0
      %504 = vmatprep.subr.mxu0 0.0
      %505 = vmatpush1.xpose.msra.mxu0 0.0
      %506 = vmatprep.subr.mxu0 0.0
      %507 = vmatpush1.xpose.msra.mxu0 0.0
      %508 = vmatprep.subr.mxu0 0.0
      %509 = vmatpush1.xpose.msra.mxu0 0.0
      %510 = vmatprep.subr.mxu0 0.0
      %511 = vmatpush1.xpose.msra.mxu0 0.0
      %512 = vmatprep.subr.mxu0 0.0
      %513 = vmatpush1.xpose.msra.mxu0 0.0
      %514 = vmatprep.subr.mxu0 0.0
      %515 = vmatpush1.xpose.msra.mxu0 0.0
      %516 = vmatprep.subr.mxu0 0.0
      %517 = vmatpush1.xpose.msra.mxu0 0.0
      %518 = vmatprep.subr.mxu0 0.0
      %519 = vmatpush1.xpose.msra.mxu0 0.0
      %520 = vmatprep.subr.mxu0 0.0
      %521 = vmatpush1.xpose.msra.mxu0 0.0
      %522 = vmatprep.subr.mxu0 0.0
      %523 = vmatpush1.xpose.msra.mxu0 0.0
      %524 = vmatprep.subr.mxu0 0.0
      %525 = vmatpush1.xpose.msra.mxu0 0.0
      %526 = vmatprep.subr.mxu0 0.0
      %527 = vmatpush1.xpose.msra.mxu0 0.0
      %528 = vmatprep.subr.mxu0 0.0
      %529 = vmatpush1.xpose.msra.mxu0 0.0
      %530 = vmatprep.subr.mxu0 0.0
      %531 = vmatpush1.xpose.msra.mxu0 0.0
      %532 = vmatprep.subr.mxu0 0.0
      %533 = vmatpush1.xpose.msra.mxu0 0.0
      %534 = vmatprep.subr.mxu0 0.0
      %535 = vmatpush1.xpose.msra.mxu0 0.0
      %536 = vmatprep.subr.mxu0 0.0
      %537 = vmatpush1.xpose.msra.mxu0 0.0
      %538 = vmatprep.subr.mxu0 0.0
      %539 = vmatpush1.xpose.msra.mxu0 0.0
      %540 = vmatprep.subr.mxu0 0.0
      %541 = vmatpush1.xpose.msra.mxu0 0.0
      %542 = vmatprep.subr.mxu0 0.0
      %543 = vmatpush1.xpose.msra.mxu0 0.0
      %544 = vmatprep.subr.mxu0 0.0
      %545 = vmatpush1.xpose.msra.mxu0 0.0
      %546 = vmatprep.subr.mxu0 0.0
      %547 = vmatpush1.xpose.msra.mxu0 0.0
      %548 = vmatprep.subr.mxu0 0.0
      %549 = vmatpush1.xpose.msra.mxu0 0.0
      %550 = vmatprep.mubr.f32.mxu0 0.0
      %551 = vmatmul.mubr.f32.gmra.mrb[0].mxu0 %v481
      %v552 = vpop.f32.mrb[0].mxu0
      %v553 = vadd.f32 0.0, %v552
      %v554 = vpop.f32.mrb[0].mxu0
      %555 = vdwg.mxu0
      %v556 = vrsqrt.pop %v325
      %v557 = vmul.f32 %v325, %v556
      %vm558 = vcmp.eq.f32.partialorder %v325, inf
      %v559 = vsel %vm558, %v325, %v557
      %vm560 = vcmp.eq.f32.partialorder %v325, 0.0
      %v561 = vand.u32 %v325, 2147483648
      %v562 = vsel %vm560, %v561, %v559
      %v563 = vrsqrt.pop %v401
      %v564 = vmul.f32 %v401, %v563
      %vm565 = vcmp.eq.f32.partialorder %v401, inf
      %v566 = vsel %vm565, %v401, %v564
      %vm567 = vcmp.eq.f32.partialorder %v401, 0.0
      %v568 = vand.u32 %v401, 2147483648
      %v569 = vsel %vm567, %v568, %v566
      %v570 = vrsqrt.pop %v477
      %v571 = vmul.f32 %v477, %v570
      %vm572 = vcmp.eq.f32.partialorder %v477, inf
      %v573 = vsel %vm572, %v477, %v571
      %vm574 = vcmp.eq.f32.partialorder %v477, 0.0
      %v575 = vand.u32 %v477, 2147483648
      %v576 = vsel %vm574, %v575, %v573
      %v577 = vrsqrt.pop %v553
      %v578 = vmul.f32 %v553, %v577
      %vm579 = vcmp.eq.f32.partialorder %v553, inf
      %v580 = vsel %vm579, %v553, %v578
      %vm581 = vcmp.eq.f32.partialorder %v553, 0.0
      %v582 = vand.u32 %v553, 2147483648
      %v583 = vsel %vm581, %v582, %v580
      %v584 = vmul.f32 %v250, -1e+09
      %v585 = vadd.f32 %v562, %v584
      %v586 = vadd.f32 %v569, %v584
      %v587 = vadd.f32 %v576, %v584
      %v588 = vadd.f32 %v583, %v584
      %v589 = vsel %vm251, %v585, -inf
      %590 = vmax.xlane.f32.xlu0 %v589
      %v591 = vpop.xlane.xlu0 %590
      %v592 = vsel %vm251, %v586, -inf
      %593 = vmax.xlane.f32.xlu0 %v592
      %v594 = vpop.xlane.xlu0 %593
      %v595 = vsel %vm251, %v587, -inf
      %596 = vmax.xlane.f32.xlu0 %v595
      %v597 = vpop.xlane.xlu0 %596
      %v598 = vsel %vm251, %v588, -inf
      %599 = vmax.xlane.f32.xlu0 %v598
      %v600 = vpop.xlane.xlu0 %599
      %v601 = vsub.f32 %v585, %v591
      %v602 = vsub.f32 %v586, %v594
      %v603 = vsub.f32 %v587, %v597
      %v604 = vsub.f32 %v588, %v600
      %v605 = vmul.f32 %v601, 1.442695
      %v606 = vpow.pop %v605
      %v607 = vmul.f32 %v602, 1.442695
      %v608 = vpow.pop %v607
      %v609 = vmul.f32 %v603, 1.442695
      %v610 = vpow.pop %v609
      %v611 = vmul.f32 %v604, 1.442695
      %v612 = vpow.pop %v611
      %v613 = vsel %vm251, %v606, 0.0
      %614 = vadd.xlane.f32.xlu0 %v613
      %v615 = vpop.xlane.xlu0 %614
      %v616 = vsel %vm251, %v608, 0.0
      %617 = vadd.xlane.f32.xlu0 %v616
      %v618 = vpop.xlane.xlu0 %617
      %v619 = vsel %vm251, %v610, 0.0
      %620 = vadd.xlane.f32.xlu0 %v619
      %v621 = vpop.xlane.xlu0 %620
      %v622 = vsel %vm251, %v612, 0.0
      %623 = vadd.xlane.f32.xlu0 %v622
      %v624 = vpop.xlane.xlu0 %623
      %v625 = vrcp.pop %v615
      %v626 = vrcp.pop %v618
      %v627 = vrcp.pop %v621
      %v628 = vrcp.pop %v624
      %v629 = vmul.f32 %v606, %v625
      %v630 = vmul.f32 %v608, %v626
      %v631 = vmul.f32 %v610, %v627
      %v632 = vmul.f32 %v612, %v628
      %v634 = vsel %vm251, %v629, 0
      %636 = vmatprep.subr.mxu0 0.0
      %637 = vmatpush1.msra.mxu0 %v246
      %638 = vmatprep.subr.mxu0 0.0
      %639 = vmatpush1.msra.mxu0 0.0
      %640 = vmatprep.subr.mxu0 0.0
      %641 = vmatpush1.msra.mxu0 0.0
      %642 = vmatprep.subr.mxu0 0.0
      %643 = vmatpush1.msra.mxu0 0.0
      %644 = vmatprep.subr.mxu0 0.0
      %645 = vmatpush1.msra.mxu0 0.0
      %646 = vmatprep.subr.mxu0 0.0
      %647 = vmatpush1.msra.mxu0 0.0
      %648 = vmatprep.subr.mxu0 0.0
      %649 = vmatpush1.msra.mxu0 0.0
      %650 = vmatprep.subr.mxu0 0.0
      %651 = vmatpush1.msra.mxu0 0.0
      %652 = vmatprep.subr.mxu0 0.0
      %653 = vmatpush1.msra.mxu0 0.0
      %654 = vmatprep.subr.mxu0 0.0
      %655 = vmatpush1.msra.mxu0 0.0
      %656 = vmatprep.subr.mxu0 0.0
      %657 = vmatpush1.msra.mxu0 0.0
      %658 = vmatprep.subr.mxu0 0.0
      %659 = vmatpush1.msra.mxu0 0.0
      %660 = vmatprep.subr.mxu0 0.0
      %661 = vmatpush1.msra.mxu0 0.0
      %662 = vmatprep.subr.mxu0 0.0
      %663 = vmatpush1.msra.mxu0 0.0
      %664 = vmatprep.subr.mxu0 0.0
      %665 = vmatpush1.msra.mxu0 0.0
      %666 = vmatprep.subr.mxu0 0.0
      %667 = vmatpush1.msra.mxu0 0.0
      %668 = vmatprep.subr.mxu0 0.0
      %669 = vmatpush1.msra.mxu0 0.0
      %670 = vmatprep.subr.mxu0 0.0
      %671 = vmatpush1.msra.mxu0 0.0
      %672 = vmatprep.subr.mxu0 0.0
      %673 = vmatpush1.msra.mxu0 0.0
      %674 = vmatprep.subr.mxu0 0.0
      %675 = vmatpush1.msra.mxu0 0.0
      %676 = vmatprep.subr.mxu0 0.0
      %677 = vmatpush1.msra.mxu0 0.0
      %678 = vmatprep.subr.mxu0 0.0
      %679 = vmatpush1.msra.mxu0 0.0
      %680 = vmatprep.subr.mxu0 0.0
      %681 = vmatpush1.msra.mxu0 0.0
      %682 = vmatprep.subr.mxu0 0.0
      %683 = vmatpush1.msra.mxu0 0.0
      %684 = vmatprep.subr.mxu0 0.0
      %685 = vmatpush1.msra.mxu0 0.0
      %686 = vmatprep.subr.mxu0 0.0
      %687 = vmatpush1.msra.mxu0 0.0
      %688 = vmatprep.subr.mxu0 0.0
      %689 = vmatpush1.msra.mxu0 0.0
      %690 = vmatprep.subr.mxu0 0.0
      %691 = vmatpush1.msra.mxu0 0.0
      %692 = vmatprep.subr.mxu0 0.0
      %693 = vmatpush1.msra.mxu0 0.0
      %694 = vmatprep.subr.mxu0 0.0
      %695 = vmatpush1.msra.mxu0 0.0
      %696 = vmatprep.subr.mxu0 0.0
      %697 = vmatpush1.msra.mxu0 0.0
      %698 = vmatprep.subr.mxu0 0.0
      %699 = vmatpush1.msra.mxu0 0.0
      %700 = vmatprep.mubr.f32.mxu0 0.0
      %701 = vmatmul.mubr.f32.gmra.mrb[0].mxu0 %v634
      %v702 = vpop.f32.mrb[0].mxu0
      %v703 = vadd.f32 0.0, %v702
      %v704 = vpop.f32.mrb[0].mxu0
      %705 = vdwg.mxu0
      %v707 = vsel %vm251, %v630, 0
      %709 = vmatprep.subr.mxu0 0.0
      %710 = vmatpush1.msra.mxu0 %v247
      %711 = vmatprep.subr.mxu0 0.0
      %712 = vmatpush1.msra.mxu0 0.0
      %713 = vmatprep.subr.mxu0 0.0
      %714 = vmatpush1.msra.mxu0 0.0
      %715 = vmatprep.subr.mxu0 0.0
      %716 = vmatpush1.msra.mxu0 0.0
      %717 = vmatprep.subr.mxu0 0.0
      %718 = vmatpush1.msra.mxu0 0.0
      %719 = vmatprep.subr.mxu0 0.0
      %720 = vmatpush1.msra.mxu0 0.0
      %721 = vmatprep.subr.mxu0 0.0
      %722 = vmatpush1.msra.mxu0 0.0
      %723 = vmatprep.subr.mxu0 0.0
      %724 = vmatpush1.msra.mxu0 0.0
      %725 = vmatprep.subr.mxu0 0.0
      %726 = vmatpush1.msra.mxu0 0.0
      %727 = vmatprep.subr.mxu0 0.0
      %728 = vmatpush1.msra.mxu0 0.0
      %729 = vmatprep.subr.mxu0 0.0
      %730 = vmatpush1.msra.mxu0 0.0
      %731 = vmatprep.subr.mxu0 0.0
      %732 = vmatpush1.msra.mxu0 0.0
      %733 = vmatprep.subr.mxu0 0.0
      %734 = vmatpush1.msra.mxu0 0.0
      %735 = vmatprep.subr.mxu0 0.0
      %736 = vmatpush1.msra.mxu0 0.0
      %737 = vmatprep.subr.mxu0 0.0
      %738 = vmatpush1.msra.mxu0 0.0
      %739 = vmatprep.subr.mxu0 0.0
      %740 = vmatpush1.msra.mxu0 0.0
      %741 = vmatprep.subr.mxu0 0.0
      %742 = vmatpush1.msra.mxu0 0.0
      %743 = vmatprep.subr.mxu0 0.0
      %744 = vmatpush1.msra.mxu0 0.0
      %745 = vmatprep.subr.mxu0 0.0
      %746 = vmatpush1.msra.mxu0 0.0
      %747 = vmatprep.subr.mxu0 0.0
      %748 = vmatpush1.msra.mxu0 0.0
      %749 = vmatprep.subr.mxu0 0.0
      %750 = vmatpush1.msra.mxu0 0.0
      %751 = vmatprep.subr.mxu0 0.0
      %752 = vmatpush1.msra.mxu0 0.0
      %753 = vmatprep.subr.mxu0 0.0
      %754 = vmatpush1.msra.mxu0 0.0
      %755 = vmatprep.subr.mxu0 0.0
      %756 = vmatpush1.msra.mxu0 0.0
      %757 = vmatprep.subr.mxu0 0.0
      %758 = vmatpush1.msra.mxu0 0.0
      %759 = vmatprep.subr.mxu0 0.0
      %760 = vmatpush1.msra.mxu0 0.0
      %761 = vmatprep.subr.mxu0 0.0
      %762 = vmatpush1.msra.mxu0 0.0
      %763 = vmatprep.subr.mxu0 0.0
      %764 = vmatpush1.msra.mxu0 0.0
      %765 = vmatprep.subr.mxu0 0.0
      %766 = vmatpush1.msra.mxu0 0.0
      %767 = vmatprep.subr.mxu0 0.0
      %768 = vmatpush1.msra.mxu0 0.0
      %769 = vmatprep.subr.mxu0 0.0
      %770 = vmatpush1.msra.mxu0 0.0
      %771 = vmatprep.subr.mxu0 0.0
      %772 = vmatpush1.msra.mxu0 0.0
      %773 = vmatprep.mubr.f32.mxu0 0.0
      %774 = vmatmul.mubr.f32.gmra.mrb[0].mxu0 %v707
      %v775 = vpop.f32.mrb[0].mxu0
      %v776 = vadd.f32 0.0, %v775
      %v777 = vpop.f32.mrb[0].mxu0
      %778 = vdwg.mxu0
      %v780 = vsel %vm251, %v631, 0
      %782 = vmatprep.subr.mxu0 0.0
      %783 = vmatpush1.msra.mxu0 %v248
      %784 = vmatprep.subr.mxu0 0.0
      %785 = vmatpush1.msra.mxu0 0.0
      %786 = vmatprep.subr.mxu0 0.0
      %787 = vmatpush1.msra.mxu0 0.0
      %788 = vmatprep.subr.mxu0 0.0
      %789 = vmatpush1.msra.mxu0 0.0
      %790 = vmatprep.subr.mxu0 0.0
      %791 = vmatpush1.msra.mxu0 0.0
      %792 = vmatprep.subr.mxu0 0.0
      %793 = vmatpush1.msra.mxu0 0.0
      %794 = vmatprep.subr.mxu0 0.0
      %795 = vmatpush1.msra.mxu0 0.0
      %796 = vmatprep.subr.mxu0 0.0
      %797 = vmatpush1.msra.mxu0 0.0
      %798 = vmatprep.subr.mxu0 0.0
      %799 = vmatpush1.msra.mxu0 0.0
      %800 = vmatprep.subr.mxu0 0.0
      %801 = vmatpush1.msra.mxu0 0.0
      %802 = vmatprep.subr.mxu0 0.0
      %803 = vmatpush1.msra.mxu0 0.0
      %804 = vmatprep.subr.mxu0 0.0
      %805 = vmatpush1.msra.mxu0 0.0
      %806 = vmatprep.subr.mxu0 0.0
      %807 = vmatpush1.msra.mxu0 0.0
      %808 = vmatprep.subr.mxu0 0.0
      %809 = vmatpush1.msra.mxu0 0.0
      %810 = vmatprep.subr.mxu0 0.0
      %811 = vmatpush1.msra.mxu0 0.0
      %812 = vmatprep.subr.mxu0 0.0
      %813 = vmatpush1.msra.mxu0 0.0
      %814 = vmatprep.subr.mxu0 0.0
      %815 = vmatpush1.msra.mxu0 0.0
      %816 = vmatprep.subr.mxu0 0.0
      %817 = vmatpush1.msra.mxu0 0.0
      %818 = vmatprep.subr.mxu0 0.0
      %819 = vmatpush1.msra.mxu0 0.0
      %820 = vmatprep.subr.mxu0 0.0
      %821 = vmatpush1.msra.mxu0 0.0
      %822 = vmatprep.subr.mxu0 0.0
      %823 = vmatpush1.msra.mxu0 0.0
      %824 = vmatprep.subr.mxu0 0.0
      %825 = vmatpush1.msra.mxu0 0.0
      %826 = vmatprep.subr.mxu0 0.0
      %827 = vmatpush1.msra.mxu0 0.0
      %828 = vmatprep.subr.mxu0 0.0
      %829 = vmatpush1.msra.mxu0 0.0
      %830 = vmatprep.subr.mxu0 0.0
      %831 = vmatpush1.msra.mxu0 0.0
      %832 = vmatprep.subr.mxu0 0.0
      %833 = vmatpush1.msra.mxu0 0.0
      %834 = vmatprep.subr.mxu0 0.0
      %835 = vmatpush1.msra.mxu0 0.0
      %836 = vmatprep.subr.mxu0 0.0
      %837 = vmatpush1.msra.mxu0 0.0
      %838 = vmatprep.subr.mxu0 0.0
      %839 = vmatpush1.msra.mxu0 0.0
      %840 = vmatprep.subr.mxu0 0.0
      %841 = vmatpush1.msra.mxu0 0.0
      %842 = vmatprep.subr.mxu0 0.0
      %843 = vmatpush1.msra.mxu0 0.0
      %844 = vmatprep.subr.mxu0 0.0
      %845 = vmatpush1.msra.mxu0 0.0
      %846 = vmatprep.mubr.f32.mxu0 0.0
      %847 = vmatmul.mubr.f32.gmra.mrb[0].mxu0 %v780
      %v848 = vpop.f32.mrb[0].mxu0
      %v849 = vadd.f32 0.0, %v848
      %v850 = vpop.f32.mrb[0].mxu0
      %851 = vdwg.mxu0
      %v853 = vsel %vm251, %v632, 0
      %855 = vmatprep.subr.mxu0 0.0
      %856 = vmatpush1.msra.mxu0 %v249
      %857 = vmatprep.subr.mxu0 0.0
      %858 = vmatpush1.msra.mxu0 0.0
      %859 = vmatprep.subr.mxu0 0.0
      %860 = vmatpush1.msra.mxu0 0.0
      %861 = vmatprep.subr.mxu0 0.0
      %862 = vmatpush1.msra.mxu0 0.0
      %863 = vmatprep.subr.mxu0 0.0
      %864 = vmatpush1.msra.mxu0 0.0
      %865 = vmatprep.subr.mxu0 0.0
      %866 = vmatpush1.msra.mxu0 0.0
      %867 = vmatprep.subr.mxu0 0.0
      %868 = vmatpush1.msra.mxu0 0.0
      %869 = vmatprep.subr.mxu0 0.0
      %870 = vmatpush1.msra.mxu0 0.0
      %871 = vmatprep.subr.mxu0 0.0
      %872 = vmatpush1.msra.mxu0 0.0
      %873 = vmatprep.subr.mxu0 0.0
      %874 = vmatpush1.msra.mxu0 0.0
      %875 = vmatprep.subr.mxu0 0.0
      %876 = vmatpush1.msra.mxu0 0.0
      %877 = vmatprep.subr.mxu0 0.0
      %878 = vmatpush1.msra.mxu0 0.0
      %879 = vmatprep.subr.mxu0 0.0
      %880 = vmatpush1.msra.mxu0 0.0
      %881 = vmatprep.subr.mxu0 0.0
      %882 = vmatpush1.msra.mxu0 0.0
      %883 = vmatprep.subr.mxu0 0.0
      %884 = vmatpush1.msra.mxu0 0.0
      %885 = vmatprep.subr.mxu0 0.0
      %886 = vmatpush1.msra.mxu0 0.0
      %887 = vmatprep.subr.mxu0 0.0
      %888 = vmatpush1.msra.mxu0 0.0
      %889 = vmatprep.subr.mxu0 0.0
      %890 = vmatpush1.msra.mxu0 0.0
      %891 = vmatprep.subr.mxu0 0.0
      %892 = vmatpush1.msra.mxu0 0.0
      %893 = vmatprep.subr.mxu0 0.0
      %894 = vmatpush1.msra.mxu0 0.0
      %895 = vmatprep.subr.mxu0 0.0
      %896 = vmatpush1.msra.mxu0 0.0
      %897 = vmatprep.subr.mxu0 0.0
      %898 = vmatpush1.msra.mxu0 0.0
      %899 = vmatprep.subr.mxu0 0.0
      %900 = vmatpush1.msra.mxu0 0.0
      %901 = vmatprep.subr.mxu0 0.0
      %902 = vmatpush1.msra.mxu0 0.0
      %903 = vmatprep.subr.mxu0 0.0
      %904 = vmatpush1.msra.mxu0 0.0
      %905 = vmatprep.subr.mxu0 0.0
      %906 = vmatpush1.msra.mxu0 0.0
      %907 = vmatprep.subr.mxu0 0.0
      %908 = vmatpush1.msra.mxu0 0.0
      %909 = vmatprep.subr.mxu0 0.0
      %910 = vmatpush1.msra.mxu0 0.0
      %911 = vmatprep.subr.mxu0 0.0
      %912 = vmatpush1.msra.mxu0 0.0
      %913 = vmatprep.subr.mxu0 0.0
      %914 = vmatpush1.msra.mxu0 0.0
      %915 = vmatprep.subr.mxu0 0.0
      %916 = vmatpush1.msra.mxu0 0.0
      %917 = vmatprep.subr.mxu0 0.0
      %918 = vmatpush1.msra.mxu0 0.0
      %919 = vmatprep.mubr.f32.mxu0 0.0
      %920 = vmatmul.mubr.f32.gmra.mrb[0].mxu0 %v853
      %v921 = vpop.f32.mrb[0].mxu0
      %v922 = vadd.f32 0.0, %v921
      %v923 = vpop.f32.mrb[0].mxu0
      %924 = vdwg.mxu0
      %925 = vst.msk [vmem:[%s237] sm:$0xff] %vm251, %v703
      %926 = vst.msk [vmem:[%s237 + $0x8] sm:$0xff] %vm251, %v776
      %927 = vst.msk [vmem:[%s237 + $0x10] sm:$0xff] %vm251, %v849
      %928 = vst.msk [vmem:[%s237 + $0x18] sm:$0xff] %vm251, %v922
      %p929 = scmp.lt.s32.totalorder %s15, 1
      %s930 = scalar_select %p929, %s15, 1
      %s931 = smul.addr %s930, 4
      %s932 = smul.addr %s931, 8
      %s933 = scalar_lea.vmem %s4, %s932
      // Predicated region
      $region37: #{decoder_forward.11} parent=35 // pred_check
        %p934 = pneg %p132
      $region38: #{decoder_forward.11} parent=35 // pred_check_branch
        %936 = sbr.rel (%p934) target = $region40
      $region39: #{decoder_forward.11} parent=35 // pred_region
        _
      $region40: #{decoder_forward.11} parent=35 // pred_fallthru
        _
    $region36: #{decoder_forward.11} parent=5 // pred_fallthru
      _
    %p937 = scmp.le.s32.totalorder 2, %s10
    // Predicated region
    $region41: #{decoder_forward.11} parent=5 // pred_check
      %p938 = pneg %p937
    $region42: #{decoder_forward.11} parent=5 // pred_check_branch
      %940 = sbr.rel (%p938) target = $region44
    $region43: #{decoder_forward.11} parent=5 // pred_region
      %s941 = ssub.s32 %s10, 2
      // Predicated region
      $region45: #{decoder_forward.11} parent=43 // pred_check
        %p942 = pneg %p138
      $region46: #{decoder_forward.11} parent=43 // pred_check_branch
        %944 = sbr.rel (%p942) target = $region48
      $region47: #{decoder_forward.11} parent=43 // pred_region
        %p945 = scmp.lt.s32.totalorder %s16, 1
        %s946 = scalar_select %p945, %s16, 1
        %s947 = smul.addr %s946, 4
        %s948 = smul.addr %s947, 8
        %s949 = scalar_lea.vmem %s4, %s948
      $region48: #{decoder_forward.11} parent=43 // pred_fallthru
        _
    $region44: #{decoder_forward.11} parent=5 // pred_fallthru
      _
  $region6: #{decoder_forward.11} parent=0 // loop_footer
    %s14 = sadd.s32 1, %s10
  $region7: #{decoder_forward.11} parent=0 // loop_footer_branch
    %9 = sbr.rel target = $region3
  $region8: #{decoder_forward.11} parent=0 // loop_exit
    _

// kernel: decoder_forward.19
$region0: #{decoder_forward.19}
  #allocation0 [shape = 'u32[]', space=smem, size = 0x4, offset = 0x4, fixed_abs, tag = 'smem constant byte address 0x4 - core index']
  #allocation1 [shape = 'u32[144,128]{1,0:T(1,128)}', space=vmem, size = 0x12000, scoped, tag = 'internal scratch']
  %s0 = inlined_call_operand.vmem [shape: f32[16,32], index: 0, kind: input, shape index: {}]
  %s1 = inlined_call_operand.vmem [shape: f32[16,32], index: 1, kind: input, shape index: {}]
  %s2 = inlined_call_operand.vmem [shape: f32[32,32], index: 2, kind: input, shape index: {}]
  %s3 = inlined_call_operand.vmem [shape: f32[1,32], index: 3, kind: input, shape index: {}]
  %s4 = inlined_call_operand.vmem [shape: f32[1,32], index: 4, kind: input, shape index: {}]
  %s5 = inlined_call_operand.vmem [shape: f32[32,64], index: 5, kind: input, shape index: {}]
  %s6 = inlined_call_operand.vmem [shape: f32[1,64], index: 6, kind: input, shape index: {}]
  %s7 = inlined_call_operand.vmem [shape: f32[64,32], index: 7, kind: input, shape index: {}]
  %s8 = inlined_call_operand.vmem [shape: f32[1,32], index: 8, kind: input, shape index: {}]
  %s9 = inlined_call_operand.hbm [shape: f32[16,32], index: 9, kind: output, shape index: {}]
  %s10 = sld [smem:[#allocation0]]
  $region46: #{decoder_forward.19} parent=0
    _
  %s12 = ssub.s32 1, %s10
  %s13 = scalar_select 0, %s12, %s10
  $region1: #{decoder_forward.19} parent=0
    #allocation2 [shape = 'u8[8192]{0}', space=vmem, size = 0x2000, scoped, tag = 'output window, operand 0, single buffered']
    #allocation3 [shape = 's32[1]{0}', space=sflag, size = 0x4, scoped, tag = 'scoped memory for decoder_forward.19']
    %14 = vsyncpa [#allocation3], 0
    // Predicated region
    $region2: #{decoder_forward.19} parent=1 // pred_check
      _
    $region3: #{decoder_forward.19} parent=1 // pred_check_branch
      %16 = sbr.rel (0) target = $region5
    $region4: #{decoder_forward.19} parent=1 // pred_region
      _
    $region5: #{decoder_forward.19} parent=1 // pred_fallthru
      _
    // Predicated region
    $region6: #{decoder_forward.19} parent=1 // pred_check
      _
    $region7: #{decoder_forward.19} parent=1 // pred_check_branch
      %18 = sbr.rel (0) target = $region9
    $region8: #{decoder_forward.19} parent=1 // pred_region
      _
    $region9: #{decoder_forward.19} parent=1 // pred_fallthru
      _
    // Predicated region
    $region10: #{decoder_forward.19} parent=1 // pred_check
      _
    $region11: #{decoder_forward.19} parent=1 // pred_check_branch
      %20 = sbr.rel (0) target = $region13
    $region12: #{decoder_forward.19} parent=1 // pred_region
      _
    $region13: #{decoder_forward.19} parent=1 // pred_fallthru
      _
    // Predicated region
    $region14: #{decoder_forward.19} parent=1 // pred_check
      _
    $region15: #{decoder_forward.19} parent=1 // pred_check_branch
      %22 = sbr.rel (0) target = $region17
    $region16: #{decoder_forward.19} parent=1 // pred_region
      _
    $region17: #{decoder_forward.19} parent=1 // pred_fallthru
      _
    // Predicated region
    $region18: #{decoder_forward.19} parent=1 // pred_check
      _
    $region19: #{decoder_forward.19} parent=1 // pred_check_branch
      %24 = sbr.rel (0) target = $region21
    $region20: #{decoder_forward.19} parent=1 // pred_region
      _
    $region21: #{decoder_forward.19} parent=1 // pred_fallthru
      _
    // Predicated region
    $region22: #{decoder_forward.19} parent=1 // pred_check
      _
    $region23: #{decoder_forward.19} parent=1 // pred_check_branch
      %26 = sbr.rel (0) target = $region25
    $region24: #{decoder_forward.19} parent=1 // pred_region
      _
    $region25: #{decoder_forward.19} parent=1 // pred_fallthru
      _
    // Predicated region
    $region26: #{decoder_forward.19} parent=1 // pred_check
      _
    $region27: #{decoder_forward.19} parent=1 // pred_check_branch
      %28 = sbr.rel (0) target = $region29
    $region28: #{decoder_forward.19} parent=1 // pred_region
      _
    $region29: #{decoder_forward.19} parent=1 // pred_fallthru
      _
    // Predicated region
    $region30: #{decoder_forward.19} parent=1 // pred_check
      _
    $region31: #{decoder_forward.19} parent=1 // pred_check_branch
      %30 = sbr.rel (0) target = $region33
    $region32: #{decoder_forward.19} parent=1 // pred_region
      _
    $region33: #{decoder_forward.19} parent=1 // pred_fallthru
      _
    // Predicated region
    $region34: #{decoder_forward.19} parent=1 // pred_check
      _
    $region35: #{decoder_forward.19} parent=1 // pred_check_branch
      %32 = sbr.rel (0) target = $region37
    $region36: #{decoder_forward.19} parent=1 // pred_region
      _
    $region37: #{decoder_forward.19} parent=1 // pred_fallthru
      _
    %v33 = vld [vmem:[%s0] sm:$0xff]
    %v34 = vld [vmem:[%s0 + $0x8] sm:$0xff]
    %v35 = vld [vmem:[%s2] sm:$0xff]
    %v36 = vld [vmem:[%s2 + $0x8] sm:$0xff]
    %v37 = vld [vmem:[%s2 + $0x10] sm:$0xff]
    %v38 = vld [vmem:[%s2 + $0x18] sm:$0xff]
    %vm39 = vcmask 261120
    %v41 = vsel %vm39, %v33, 0
    %v44 = vsel %vm39, %v34, 0
    %46 = vmatprep.subr.mxu0 0.0
    %47 = vmatpush1.msra.mxu0 %v35
    %48 = vmatprep.subr.mxu0 0.0
    %49 = vmatpush1.msra.mxu0 %v36
    %50 = vmatprep.subr.mxu0 0.0
    %51 = vmatpush1.msra.mxu0 %v37
    %52 = vmatprep.subr.mxu0 0.0
    %53 = vmatpush1.msra.mxu0 %v38
    %54 = vmatprep.subr.mxu0 0.0
    %55 = vmatpush1.msra.mxu0 0.0
    %56 = vmatprep.subr.mxu0 0.0
    %57 = vmatpush1.msra.mxu0 0.0
    %58 = vmatprep.subr.mxu0 0.0
    %59 = vmatpush1.msra.mxu0 0.0
    %60 = vmatprep.subr.mxu0 0.0
    %61 = vmatpush1.msra.mxu0 0.0
    %62 = vmatprep.subr.mxu0 0.0
    %63 = vmatpush1.msra.mxu0 0.0
    %64 = vmatprep.subr.mxu0 0.0
    %65 = vmatpush1.msra.mxu0 0.0
    %66 = vmatprep.subr.mxu0 0.0
    %67 = vmatpush1.msra.mxu0 0.0
    %68 = vmatprep.subr.mxu0 0.0
    %69 = vmatpush1.msra.mxu0 0.0
    %70 = vmatprep.subr.mxu0 0.0
    %71 = vmatpush1.msra.mxu0 0.0
    %72 = vmatprep.subr.mxu0 0.0
    %73 = vmatpush1.msra.mxu0 0.0
    %74 = vmatprep.subr.mxu0 0.0
    %75 = vmatpush1.msra.mxu0 0.0
    %76 = vmatprep.subr.mxu0 0.0
    %77 = vmatpush1.msra.mxu0 0.0
    %78 = vmatprep.subr.mxu0 0.0
    %79 = vmatpush1.msra.mxu0 0.0
    %80 = vmatprep.subr.mxu0 0.0
    %81 = vmatpush1.msra.mxu0 0.0
    %82 = vmatprep.subr.mxu0 0.0
    %83 = vmatpush1.msra.mxu0 0.0
    %84 = vmatprep.subr.mxu0 0.0
    %85 = vmatpush1.msra.mxu0 0.0
    %86 = vmatprep.subr.mxu0 0.0
    %87 = vmatpush1.msra.mxu0 0.0
    %88 = vmatprep.subr.mxu0 0.0
    %89 = vmatpush1.msra.mxu0 0.0
    %90 = vmatprep.subr.mxu0 0.0
    %91 = vmatpush1.msra.mxu0 0.0
    %92 = vmatprep.subr.mxu0 0.0
    %93 = vmatpush1.msra.mxu0 0.0
    %94 = vmatprep.subr.mxu0 0.0
    %95 = vmatpush1.msra.mxu0 0.0
    %96 = vmatprep.subr.mxu0 0.0
    %97 = vmatpush1.msra.mxu0 0.0
    %98 = vmatprep.subr.mxu0 0.0
    %99 = vmatpush1.msra.mxu0 0.0
    %100 = vmatprep.subr.mxu0 0.0
    %101 = vmatpush1.msra.mxu0 0.0
    %102 = vmatprep.subr.mxu0 0.0
    %103 = vmatpush1.msra.mxu0 0.0
    %104 = vmatprep.subr.mxu0 0.0
    %105 = vmatpush1.msra.mxu0 0.0
    %106 = vmatprep.subr.mxu0 0.0
    %107 = vmatpush1.msra.mxu0 0.0
    %108 = vmatprep.subr.mxu0 0.0
    %109 = vmatpush1.msra.mxu0 0.0
    %110 = vmatprep.mubr.f32.mxu0 0.0
    %111 = vmatmul.mubr.f32.gmra.mrb[0].mxu0 %v41
    %v112 = vpop.f32.mrb[0].mxu0
    %v113 = vadd.f32 0.0, %v112
    %v114 = vpop.f32.mrb[0].mxu0
    %115 = vmatprep.mubr.f32.mxu0 0.0
    %116 = vmatmul.mubr.f32.gmra.mrb[0].mxu0 %v44
    %v117 = vpop.f32.mrb[0].mxu0
    %v118 = vadd.f32 0.0, %v117
    %v119 = vpop.f32.mrb[0].mxu0
    %120 = vdwg.mxu0
    %v121 = vld [vmem:[%s1] sm:$0xff]
    %v122 = vld [vmem:[%s1 + $0x8] sm:$0xff]
    %v123 = vadd.f32 %v121, %v113
    %v124 = vadd.f32 %v122, %v118
    %v125 = vld [vmem:[%s3] sm:$0x1]
    %v126 = vld [vmem:[%s4] sm:$0x1]
    %v127 = vsel %vm39, %v123, 0.0
    %128 = vadd.xlane.f32.xlu0 %v127
    %v129 = vpop.xlane.xlu0 %128
    %v130 = vsel %vm39, %v124, 0.0
    %131 = vadd.xlane.f32.xlu0 %v130
    %v132 = vpop.xlane.xlu0 %131
    %v133 = vrcp.pop 32.0
    %v134 = vmul.f32 %v129, %v133
    %v135 = vmul.f32 %v132, %v133
    %v136 = vsub.f32 %v123, %v134
    %v137 = vsub.f32 %v124, %v135
    %v138 = vmul.f32 %v136, %v136
    %v139 = vmul.f32 %v137, %v137
    %v140 = vsel %vm39, %v138, 0.0
    %141 = vadd.xlane.f32.xlu0 %v140
    %v142 = vpop.xlane.xlu0 %141
    %v143 = vsel %vm39, %v139, 0.0
    %144 = vadd.xlane.f32.xlu0 %v143
    %v145 = vpop.xlane.xlu0 %144
    %v146 = vmul.f32 %v142, %v133
    %v147 = vmul.f32 %v145, %v133
    %v148 = vadd.f32 %v146, 1e-06
    %v149 = vadd.f32 %v147, 1e-06
    %v150 = vrsqrt.pop %v148
    %v151 = vrsqrt.pop %v149
    %v152 = vmul.f32 %v136, %v150
    %v153 = vmul.f32 %v137, %v151
    %v155 = vlaneseq
    %v156 = vshrl.u32 %v155, 7
    %v157 = vsub.s32 0, %v156
    %v158 = vrot.slane %v125, %v157
    %v160 = vmul.f32 %v152, %v158
    %v161 = vmul.f32 %v153, %v158
    %v163 = vlaneseq
    %v164 = vshrl.u32 %v163, 7
    %v165 = vsub.s32 0, %v164
    %v166 = vrot.slane %v126, %v165
    %v168 = vadd.f32 %v160, %v166
    %v169 = vadd.f32 %v161, %v166
    %v170 = vld [vmem:[%s5] sm:$0xff]
    %v171 = vld [vmem:[%s5 + $0x8] sm:$0xff]
    %v172 = vld [vmem:[%s5 + $0x10] sm:$0xff]
    %v173 = vld [vmem:[%s5 + $0x18] sm:$0xff]
    %v174 = vld [vmem:[%s6] sm:$0x1]
    %v176 = vlaneseq
    %v177 = vshrl.u32 %v176, 7
    %v178 = vsub.s32 0, %v177
    %v179 = vrot.slane %v174, %v178
    %v182 = vsel %vm39, %v168, 0
    %v185 = vsel %vm39, %v169, 0
    %187 = vmatprep.subr.mxu0 0.0
    %188 = vmatpush1.msra.mxu0 %v170
    %189 = vmatprep.subr.mxu0 0.0
    %190 = vmatpush1.msra.mxu0 %v171
    %191 = vmatprep.subr.mxu0 0.0
    %192 = vmatpush1.msra.mxu0 %v172
    %193 = vmatprep.subr.mxu0 0.0
    %194 = vmatpush1.msra.mxu0 %v173
    %195 = vmatprep.subr.mxu0 0.0
    %196 = vmatpush1.msra.mxu0 0.0
    %197 = vmatprep.subr.mxu0 0.0
    %198 = vmatpush1.msra.mxu0 0.0
    %199 = vmatprep.subr.mxu0 0.0
    %200 = vmatpush1.msra.mxu0 0.0
    %201 = vmatprep.subr.mxu0 0.0
    %202 = vmatpush1.msra.mxu0 0.0
    %203 = vmatprep.subr.mxu0 0.0
    %204 = vmatpush1.msra.mxu0 0.0
    %205 = vmatprep.subr.mxu0 0.0
    %206 = vmatpush1.msra.mxu0 0.0
    %207 = vmatprep.subr.mxu0 0.0
    %208 = vmatpush1.msra.mxu0 0.0
    %209 = vmatprep.subr.mxu0 0.0
    %210 = vmatpush1.msra.mxu0 0.0
    %211 = vmatprep.subr.mxu0 0.0
    %212 = vmatpush1.msra.mxu0 0.0
    %213 = vmatprep.subr.mxu0 0.0
    %214 = vmatpush1.msra.mxu0 0.0
    %215 = vmatprep.subr.mxu0 0.0
    %216 = vmatpush1.msra.mxu0 0.0
    %217 = vmatprep.subr.mxu0 0.0
    %218 = vmatpush1.msra.mxu0 0.0
    %219 = vmatprep.subr.mxu0 0.0
    %220 = vmatpush1.msra.mxu0 0.0
    %221 = vmatprep.subr.mxu0 0.0
    %222 = vmatpush1.msra.mxu0 0.0
    %223 = vmatprep.subr.mxu0 0.0
    %224 = vmatpush1.msra.mxu0 0.0
    %225 = vmatprep.subr.mxu0 0.0
    %226 = vmatpush1.msra.mxu0 0.0
    %227 = vmatprep.subr.mxu0 0.0
    %228 = vmatpush1.msra.mxu0 0.0
    %229 = vmatprep.subr.mxu0 0.0
    %230 = vmatpush1.msra.mxu0 0.0
    %231 = vmatprep.subr.mxu0 0.0
    %232 = vmatpush1.msra.mxu0 0.0
    %233 = vmatprep.subr.mxu0 0.0
    %234 = vmatpush1.msra.mxu0 0.0
    %235 = vmatprep.subr.mxu0 0.0
    %236 = vmatpush1.msra.mxu0 0.0
    %237 = vmatprep.subr.mxu0 0.0
    %238 = vmatpush1.msra.mxu0 0.0
    %239 = vmatprep.subr.mxu0 0.0
    %240 = vmatpush1.msra.mxu0 0.0
    %241 = vmatprep.subr.mxu0 0.0
    %242 = vmatpush1.msra.mxu0 0.0
    %243 = vmatprep.subr.mxu0 0.0
    %244 = vmatpush1.msra.mxu0 0.0
    %245 = vmatprep.subr.mxu0 0.0
    %246 = vmatpush1.msra.mxu0 0.0
    %247 = vmatprep.subr.mxu0 0.0
    %248 = vmatpush1.msra.mxu0 0.0
    %249 = vmatprep.subr.mxu0 0.0
    %250 = vmatpush1.msra.mxu0 0.0
    %251 = vmatprep.mubr.f32.mxu0 0.0
    %252 = vmatmul.mubr.f32.gmra.mrb[0].mxu0 %v182
    %v253 = vpop.f32.mrb[0].mxu0
    %v254 = vadd.f32 %v179, %v253
    %v255 = vpop.f32.mrb[0].mxu0
    %256 = vmatprep.mubr.f32.mxu0 0.0
    %257 = vmatmul.mubr.f32.gmra.mrb[0].mxu0 %v185
    %v258 = vpop.f32.mrb[0].mxu0
    %v259 = vadd.f32 %v179, %v258
    %v260 = vpop.f32.mrb[0].mxu0
    %261 = vdwg.mxu0
    %v262 = vmax.f32 %v254, 0.0
    %v263 = vmax.f32 %v259, 0.0
    %v264 = vld [vmem:[%s7] sm:$0xff]
    %v265 = vld [vmem:[%s7 + $0x8] sm:$0xff]
    %v266 = vld [vmem:[%s7 + $0x10] sm:$0xff]
    %v267 = vld [vmem:[%s7 + $0x18] sm:$0xff]
    %v268 = vld [vmem:[%s7 + $0x20] sm:$0xff]
    %v269 = vld [vmem:[%s7 + $0x28] sm:$0xff]
    %v270 = vld [vmem:[%s7 + $0x30] sm:$0xff]
    %v271 = vld [vmem:[%s7 + $0x38] sm:$0xff]
    %v272 = vld [vmem:[%s8] sm:$0x1]
    %v274 = vlaneseq
    %v275 = vshrl.u32 %v274, 7
    %v276 = vsub.s32 0, %v275
    %v277 = vrot.slane %v272, %v276
    %vm279 = vcmask 523264
    %v281 = vsel %vm279, %v262, 0
    %v284 = vsel %vm279, %v263, 0
    %286 = vmatprep.subr.mxu0 0.0
    %287 = vmatpush1.msra.mxu0 %v264
    %288 = vmatprep.subr.mxu0 0.0
    %289 = vmatpush1.msra.mxu0 %v265
    %290 = vmatprep.subr.mxu0 0.0
    %291 = vmatpush1.msra.mxu0 %v266
    %292 = vmatprep.subr.mxu0 0.0
    %293 = vmatpush1.msra.mxu0 %v267
    %294 = vmatprep.subr.mxu0 0.0
    %295 = vmatpush1.msra.mxu0 %v268
    %296 = vmatprep.subr.mxu0 0.0
    %297 = vmatpush1.msra.mxu0 %v269
    %298 = vmatprep.subr.mxu0 0.0
    %299 = vmatpush1.msra.mxu0 %v270
    %300 = vmatprep.subr.mxu0 0.0
    %301 = vmatpush1.msra.mxu0 %v271
    %302 = vmatprep.subr.mxu0 0.0
    %303 = vmatpush1.msra.mxu0 0.0
    %304 = vmatprep.subr.mxu0 0.0
    %305 = vmatpush1.msra.mxu0 0.0
    %306 = vmatprep.subr.mxu0 0.0
    %307 = vmatpush1.msra.mxu0 0.0
    %308 = vmatprep.subr.mxu0 0.0
    %309 = vmatpush1.msra.mxu0 0.0
    %310 = vmatprep.subr.mxu0 0.0
    %311 = vmatpush1.msra.mxu0 0.0
    %312 = vmatprep.subr.mxu0 0.0
    %313 = vmatpush1.msra.mxu0 0.0
    %314 = vmatprep.subr.mxu0 0.0
    %315 = vmatpush1.msra.mxu0 0.0
    %316 = vmatprep.subr.mxu0 0.0
    %317 = vmatpush1.msra.mxu0 0.0
    %318 = vmatprep.subr.mxu0 0.0
    %319 = vmatpush1.msra.mxu0 0.0
    %320 = vmatprep.subr.mxu0 0.0
    %321 = vmatpush1.msra.mxu0 0.0
    %322 = vmatprep.subr.mxu0 0.0
    %323 = vmatpush1.msra.mxu0 0.0
    %324 = vmatprep.subr.mxu0 0.0
    %325 = vmatpush1.msra.mxu0 0.0
    %326 = vmatprep.subr.mxu0 0.0
    %327 = vmatpush1.msra.mxu0 0.0
    %328 = vmatprep.subr.mxu0 0.0
    %329 = vmatpush1.msra.mxu0 0.0
    %330 = vmatprep.subr.mxu0 0.0
    %331 = vmatpush1.msra.mxu0 0.0
    %332 = vmatprep.subr.mxu0 0.0
    %333 = vmatpush1.msra.mxu0 0.0
    %334 = vmatprep.subr.mxu0 0.0
    %335 = vmatpush1.msra.mxu0 0.0
    %336 = vmatprep.subr.mxu0 0.0
    %337 = vmatpush1.msra.mxu0 0.0
    %338 = vmatprep.subr.mxu0 0.0
    %339 = vmatpush1.msra.mxu0 0.0
    %340 = vmatprep.subr.mxu0 0.0
    %341 = vmatpush1.msra.mxu0 0.0
    %342 = vmatprep.subr.mxu0 0.0
    %343 = vmatpush1.msra.mxu0 0.0
    %344 = vmatprep.subr.mxu0 0.0
    %345 = vmatpush1.msra.mxu0 0.0
    %346 = vmatprep.subr.mxu0 0.0
    %347 = vmatpush1.msra.mxu0 0.0
    %348 = vmatprep.subr.mxu0 0.0
    %349 = vmatpush1.msra.mxu0 0.0
    %350 = vmatprep.mubr.f32.mxu0 0.0
    %351 = vmatmul.mubr.f32.gmra.mrb[0].mxu0 %v281
    %v352 = vpop.f32.mrb[0].mxu0
    %v353 = vadd.f32 %v277, %v352
    %v354 = vpop.f32.mrb[0].mxu0
    %355 = vmatprep.mubr.f32.mxu0 0.0
    %356 = vmatmul.mubr.f32.gmra.mrb[0].mxu0 %v284
    %v357 = vpop.f32.mrb[0].mxu0
    %v358 = vadd.f32 %v277, %v357
    %v359 = vpop.f32.mrb[0].mxu0
    %360 = vdwg.mxu0
    %v361 = vadd.f32 %v168, %v353
    %v362 = vadd.f32 %v169, %v358
    %v363 = vsel %vm39, %v361, 0.0
    %364 = vadd.xlane.f32.xlu0 %v363
    %v365 = vpop.xlane.xlu0 %364
    %v366 = vsel %vm39, %v362, 0.0
    %367 = vadd.xlane.f32.xlu0 %v366
    %v368 = vpop.xlane.xlu0 %367
    %v369 = vmul.f32 %v365, %v133
    %v370 = vmul.f32 %v368, %v133
    %v371 = vsub.f32 %v361, %v369
    %v372 = vsub.f32 %v362, %v370
    %v373 = vmul.f32 %v371, %v371
    %v374 = vmul.f32 %v372, %v372
    %v375 = vsel %vm39, %v373, 0.0
    %376 = vadd.xlane.f32.xlu0 %v375
    %v377 = vpop.xlane.xlu0 %376
    %v378 = vsel %vm39, %v374, 0.0
    %379 = vadd.xlane.f32.xlu0 %v378
    %v380 = vpop.xlane.xlu0 %379
    %v381 = vmul.f32 %v377, %v133
    %v382 = vmul.f32 %v380, %v133
    %v383 = vadd.f32 %v381, 1e-06
    %v384 = vadd.f32 %v382, 1e-06
    %v385 = vrsqrt.pop %v383
    %v386 = vrsqrt.pop %v384
    %v387 = vmul.f32 %v371, %v385
    %v388 = vmul.f32 %v372, %v386
    %v389 = vmul.f32 %v387, %v158
    %v390 = vmul.f32 %v388, %v158
    %v391 = vadd.f32 %v389, %v166
    %v392 = vadd.f32 %v390, %v166
    %393 = vst.msk [vmem:[#allocation2] sm:$0xff] %vm39, %v391
    %394 = vst.msk [vmem:[#allocation2 + $0x8] sm:$0xff] %vm39, %v392
    // Predicated region
    $region38: #{decoder_forward.19} parent=1 // pred_check
      _
    $region39: #{decoder_forward.19} parent=1 // pred_check_branch
      %396 = sbr.rel (0) target = $region41
    $region40: #{decoder_forward.19} parent=1 // pred_region
      %s398 = ssub.s32 256, 256
      %399 = vsyncadd [#allocation3], %s398
      %s400 = sshll.u32 [#allocation2], 4
      %s401 = int_to_ptr.vmem [resolvable:$true] %s400
      %406 = dma.vmem_to_hbm [thread:$0]  %s401, 256, %s9, [#allocation3], 128, 128, 8
    $region41: #{decoder_forward.19} parent=1 // pred_fallthru
      _
    // Predicated region
    $region42: #{decoder_forward.19} parent=1 // pred_check
      _
    $region43: #{decoder_forward.19} parent=1 // pred_check_branch
      %408 = sbr.rel (0) target = $region45
    $region44: #{decoder_forward.19} parent=1 // pred_region
      %409 = dma.done [#allocation3], 256
    $region45: #{decoder_forward.19} parent=1 // pred_fallthru
      _
    %410 = vsyncpa [#allocation3], 1

// kernel: decoder_forward.16
$region0: #{decoder_forward.16}
  #allocation0 [shape = 'u32[]', space=smem, size = 0x4, offset = 0x4, fixed_abs, tag = 'smem constant byte address 0x4 - core index']
  #allocation1 [shape = 'u32[144,128]{1,0:T(1,128)}', space=vmem, size = 0x12000, scoped, tag = 'internal scratch']
  %s0 = inlined_call_operand.vmem [shape: f32[2,4,8,8], index: 0, kind: input, shape index: {}]
  %s1 = inlined_call_operand.vmem [shape: f32[2,4,8,8], index: 1, kind: input, shape index: {}]
  %s2 = inlined_call_operand.vmem [shape: f32[2,4,8,8], index: 2, kind: input, shape index: {}]
  %s3 = inlined_call_operand.vmem [shape: f32[1,8,8], index: 3, kind: input, shape index: {}]
  %s4 = inlined_call_operand.vmem [shape: f32[2,4,8,8], index: 4, kind: output, shape index: {0}]
  %s5 = inlined_call_operand.hbm [shape: f32[2,4,8,8], index: 5, kind: output, shape index: {1}]
  %6 = xla_tuple %s4, %s5
  %s7 = sld [smem:[#allocation0]]
  $region57: #{decoder_forward.16} parent=0
    _
  %s9 = ssub.s32 1, %s7
  %s10 = scalar_select 0, %s9, %s7
  $region1: #{decoder_forward.16} parent=0
    #allocation2 [shape = 'u8[32768]{0}', space=vmem, size = 0x8000, scoped, tag = 'output window, operand 1']
    #allocation3 [shape = 's32[2]{0}', space=sflag, size = 0x8, scoped, tag = 'scoped memory for decoder_forward.16']
    %11 = vsyncpa [#allocation3], 0
    %s12 = scalar_lea.sflag [#allocation3], 1
    %13 = vsyncpa %s12, 0
    loop: start=0, step=1, limit=4
    $region2: #{decoder_forward.16} parent=1 // loop_pre_header
      _
    $region3: #{decoder_forward.16} parent=1 // loop_header
      %s15 = sphi 0, %s19
      %p16 = scmp.ge.s32.totalorder %s15, 4
      %s25 = sphi 0, %s27
      %s28 = sphi 0, %s25
      %s29 = sphi 0, %s28
      %s45 = sphi 0, %s29
      %s51 = sphi 0, %s53
      %s54 = sphi 0, %s51
      %s55 = sphi 0, %s54
      %s71 = sphi 0, %s55
      %s77 = sphi 0, %s79
      %s80 = sphi 0, %s77
      %s81 = sphi 0, %s80
      %s97 = sphi 0, %s81
      %s101 = sphi 0, %s101
      %s103 = sphi 0, %s101
      %s104 = sphi 0, %s103
      %s118 = sphi 0, %s104
      %s124 = sphi 0, %s126
      %s127 = sphi 0, %s124
      %s128 = sphi 0, %s127
      %s144 = sphi 0, %s128
      %s150 = sphi 0, %s152
      %s153 = sphi 0, %s150
      %s154 = sphi 0, %s153
      %s170 = sphi 0, %s154
    $region4: #{decoder_forward.16} parent=1 // loop_header_branch
      %18 = sbr.rel (%p16) target = $region8
    $region5: #{decoder_forward.16} parent=1 // loop_body
      %s20 = ssub.s32 %s15, 1
      %s21 = ssub.s32 %s15, 2
      %s22 = sadd.s32 %s15, 1
      %s23 = ssub.s32 %s15, %s22
      %p24 = scmp.eq.s32.totalorder %s23, 0
      %s26 = sadd.s32 %s25, 1
      %s27 = scalar_select %p24, %s25, %s26
      %p30 = pneg %p24
      %p31 = scmp.eq.s32.totalorder %s15, 1
      %p32 = por %p30, %p31
      %p33 = scmp.ne.s32.totalorder %s25, %s28
      %p34 = scmp.eq.s32.totalorder %s15, 0
      %p35 = por %p33, %p34
      %p36 = scmp.ne.s32.totalorder %s25, %s28
      %p37 = scmp.eq.s32.totalorder %s20, 1
      %p38 = por %p36, %p37
      %p39 = scmp.ne.s32.totalorder %s28, %s29
      %p40 = scmp.eq.s32.totalorder %s20, 0
      %p41 = por %p39, %p40
      %p42 = scmp.ne.s32.totalorder %s28, %s29
      %p43 = scmp.eq.s32.totalorder %s21, 1
      %p44 = por %p42, %p43
      %p46 = scmp.ne.s32.totalorder %s29, %s45
      %p47 = scmp.eq.s32.totalorder %s21, 0
      %p48 = por %p46, %p47
      %s49 = ssub.s32 %s15, %s22
      %p50 = scmp.eq.s32.totalorder %s49, 0
      %s52 = sadd.s32 %s51, 1
      %s53 = scalar_select %p50, %s51, %s52
      %p56 = pneg %p50
      %p57 = scmp.eq.s32.totalorder %s15, 1
      %p58 = por %p56, %p57
      %p59 = scmp.ne.s32.totalorder %s51, %s54
      %p60 = scmp.eq.s32.totalorder %s15, 0
      %p61 = por %p59, %p60
      %p62 = scmp.ne.s32.totalorder %s51, %s54
      %p63 = scmp.eq.s32.totalorder %s20, 1
      %p64 = por %p62, %p63
      %p65 = scmp.ne.s32.totalorder %s54, %s55
      %p66 = scmp.eq.s32.totalorder %s20, 0
      %p67 = por %p65, %p66
      %p68 = scmp.ne.s32.totalorder %s54, %s55
      %p69 = scmp.eq.s32.totalorder %s21, 1
      %p70 = por %p68, %p69
      %p72 = scmp.ne.s32.totalorder %s55, %s71
      %p73 = scmp.eq.s32.totalorder %s21, 0
      %p74 = por %p72, %p73
      %s75 = ssub.s32 %s15, %s22
      %p76 = scmp.eq.s32.totalorder %s75, 0
      %s78 = sadd.s32 %s77, 1
      %s79 = scalar_select %p76, %s77, %s78
      %p82 = pneg %p76
      %p83 = scmp.eq.s32.totalorder %s15, 1
      %p84 = por %p82, %p83
      %p85 = scmp.ne.s32.totalorder %s77, %s80
      %p86 = scmp.eq.s32.totalorder %s15, 0
      %p87 = por %p85, %p86
      %p88 = scmp.ne.s32.totalorder %s77, %s80
      %p89 = scmp.eq.s32.totalorder %s20, 1
      %p90 = por %p88, %p89
      %p91 = scmp.ne.s32.totalorder %s80, %s81
      %p92 = scmp.eq.s32.totalorder %s20, 0
      %p93 = por %p91, %p92
      %p94 = scmp.ne.s32.totalorder %s80, %s81
      %p95 = scmp.eq.s32.totalorder %s21, 1
      %p96 = por %p94, %p95
      %p98 = scmp.ne.s32.totalorder %s81, %s97
      %p99 = scmp.eq.s32.totalorder %s21, 0
      %p100 = por %p98, %p99
      %s102 = sadd.s32 %s101, 1
      %p105 = scmp.eq.s32.totalorder %s15, 1
      %p106 = scmp.ne.s32.totalorder %s101, %s103
      %p107 = scmp.eq.s32.totalorder %s15, 0
      %p108 = por %p106, %p107
      %p109 = scmp.ne.s32.totalorder %s101, %s103
      %p110 = scmp.eq.s32.totalorder %s20, 1
      %p111 = por %p109, %p110
      %p112 = scmp.ne.s32.totalorder %s103, %s104
      %p113 = scmp.eq.s32.totalorder %s20, 0
      %p114 = por %p112, %p113
      %p115 = scmp.ne.s32.totalorder %s103, %s104
      %p116 = scmp.eq.s32.totalorder %s21, 1
      %p117 = por %p115, %p116
      %p119 = scmp.ne.s32.totalorder %s104, %s118
      %p120 = scmp.eq.s32.totalorder %s21, 0
      %p121 = por %p119, %p120
      %s122 = ssub.s32 %s15, %s22
      %p123 = scmp.eq.s32.totalorder %s122, 0
      %s125 = sadd.s32 %s124, 1
      %s126 = scalar_select %p123, %s124, %s125
      %p129 = pneg %p123
      %p130 = scmp.eq.s32.totalorder %s15, 1
      %p131 = por %p129, %p130
      %p132 = scmp.ne.s32.totalorder %s124, %s127
      %p133 = scmp.eq.s32.totalorder %s15, 0
      %p134 = por %p132, %p133
      %p135 = scmp.ne.s32.totalorder %s124, %s127
      %p136 = scmp.eq.s32.totalorder %s20, 1
      %p137 = por %p135, %p136
      %p138 = scmp.ne.s32.totalorder %s127, %s128
      %p139 = scmp.eq.s32.totalorder %s20, 0
      %p140 = por %p138, %p139
      %p141 = scmp.ne.s32.totalorder %s127, %s128
      %p142 = scmp.eq.s32.totalorder %s21, 1
      %p143 = por %p141, %p142
      %p145 = scmp.ne.s32.totalorder %s128, %s144
      %p146 = scmp.eq.s32.totalorder %s21, 0
      %p147 = por %p145, %p146
      %s148 = ssub.s32 %s15, %s22
      %p149 = scmp.eq.s32.totalorder %s148, 0
      %s151 = sadd.s32 %s150, 1
      %s152 = scalar_select %p149, %s150, %s151
      %p155 = pneg %p149
      %p156 = scmp.eq.s32.totalorder %s15, 1
      %p157 = por %p155, %p156
      %p158 = scmp.ne.s32.totalorder %s150, %s153
      %p159 = scmp.eq.s32.totalorder %s15, 0
      %p160 = por %p158, %p159
      %p161 = scmp.ne.s32.totalorder %s150, %s153
      %p162 = scmp.eq.s32.totalorder %s20, 1
      %p163 = por %p161, %p162
      %p164 = scmp.ne.s32.totalorder %s153, %s154
      %p165 = scmp.eq.s32.totalorder %s20, 0
      %p166 = por %p164, %p165
      %p167 = scmp.ne.s32.totalorder %s153, %s154
      %p168 = scmp.eq.s32.totalorder %s21, 1
      %p169 = por %p167, %p168
      %p171 = scmp.ne.s32.totalorder %s154, %s170
      %p172 = scmp.eq.s32.totalorder %s21, 0
      %p173 = por %p171, %p172
      %p174 = scmp.le.s32.totalorder 1, %s15
      %p175 = scmp.lt.s32.totalorder %s15, 3
      %p176 = pnand %p174, %p175
      %p177 = pneg %p176
      // Predicated region
      $region9: #{decoder_forward.16} parent=5 // pred_check
        _
      $region10: #{decoder_forward.16} parent=5 // pred_check_branch
        %179 = sbr.rel (%p176) target = $region12
      $region11: #{decoder_forward.16} parent=5 // pred_region
        %s180 = ssub.s32 %s15, 1
        // Predicated region
        $region13: #{decoder_forward.16} parent=11 // pred_check
          %p181 = pneg %p114
        $region14: #{decoder_forward.16} parent=11 // pred_check_branch
          %183 = sbr.rel (%p181) target = $region16
        $region15: #{decoder_forward.16} parent=11 // pred_region
          _
        $region16: #{decoder_forward.16} parent=11 // pred_fallthru
          _
      $region12: #{decoder_forward.16} parent=5 // pred_fallthru
        _
      %p184 = scmp.lt.s32.totalorder %s15, 2
      // Predicated region
      $region17: #{decoder_forward.16} parent=5 // pred_check
        %p185 = pneg %p184
      $region18: #{decoder_forward.16} parent=5 // pred_check_branch
        %187 = sbr.rel (%p185) target = $region20
      $region19: #{decoder_forward.16} parent=5 // pred_region
        // Predicated region
        $region21: #{decoder_forward.16} parent=19 // pred_check
          %p188 = pneg %p35
        $region22: #{decoder_forward.16} parent=19 // pred_check_branch
          %190 = sbr.rel (%p188) target = $region24
        $region23: #{decoder_forward.16} parent=19 // pred_region
          %p191 = scmp.lt.s32.totalorder %s15, 1
          %s192 = scalar_select %p191, %s15, 1
          %s193 = smul.addr %s192, 4
          %s194 = smul.addr %s193, 8
          %s195 = scalar_lea.vmem %s0, %s194
        $region24: #{decoder_forward.16} parent=19 // pred_fallthru
          _
        // Predicated region
        $region25: #{decoder_forward.16} parent=19 // pred_check
          %p196 = pneg %p61
        $region26: #{decoder_forward.16} parent=19 // pred_check_branch
          %198 = sbr.rel (%p196) target = $region28
        $region27: #{decoder_forward.16} parent=19 // pred_region
          %p199 = scmp.lt.s32.totalorder %s15, 1
          %s200 = scalar_select %p199, %s15, 1
          %s201 = smul.addr %s200, 4
          %s202 = smul.addr %s201, 8
          %s203 = scalar_lea.vmem %s1, %s202
        $region28: #{decoder_forward.16} parent=19 // pred_fallthru
          _
        // Predicated region
        $region29: #{decoder_forward.16} parent=19 // pred_check
          %p204 = pneg %p87
        $region30: #{decoder_forward.16} parent=19 // pred_check_branch
          %206 = sbr.rel (%p204) target = $region32
        $region31: #{decoder_forward.16} parent=19 // pred_region
          %p207 = scmp.lt.s32.totalorder %s15, 1
          %s208 = scalar_select %p207, %s15, 1
          %s209 = smul.addr %s208, 4
          %s210 = smul.addr %s209, 8
          %s211 = scalar_lea.vmem %s2, %s210
        $region32: #{decoder_forward.16} parent=19 // pred_fallthru
          _
      $region20: #{decoder_forward.16} parent=5 // pred_fallthru
        _
      %p212 = scmp.le.s32.totalorder 1, %s15
      %p213 = scmp.lt.s32.totalorder %s15, 3
      %p214 = pnand %p212, %p213
      %p215 = pneg %p214
      // Predicated region
      $region33: #{decoder_forward.16} parent=5 // pred_check
        _
      $region34: #{decoder_forward.16} parent=5 // pred_check_branch
        %217 = sbr.rel (%p214) target = $region36
      $region35: #{decoder_forward.16} parent=5 // pred_region
        %s218 = ssub.s32 %s15, 1
        %p219 = scmp.lt.s32.totalorder %s20, 1
        %s220 = scalar_select %p219, %s20, 1
        %s221 = smul.addr %s220, 4
        %s222 = smul.addr %s221, 8
        %s223 = scalar_lea.vmem %s0, %s222
        %p224 = pneg %p41
        %p225 = pneg %p38
        %p226 = scmp.lt.s32.totalorder %s20, 1
        %s227 = scalar_select %p226, %s20, 1
        %s228 = smul.addr %s227, 4
        %s229 = smul.addr %s228, 8
        %s230 = scalar_lea.vmem %s1, %s229
        %p231 = pneg %p67
        %p232 = pneg %p64
        %p233 = scmp.lt.s32.totalorder %s20, 1
        %s234 = scalar_select %p233, %s20, 1
        %s235 = smul.addr %s234, 4
        %s236 = smul.addr %s235, 8
        %s237 = scalar_lea.vmem %s2, %s236
        %p238 = pneg %p93
        %p239 = pneg %p90
        %p240 = pneg %p114
        %p241 = pneg %p111
        %p242 = pneg %p140
        %p243 = pneg %p137
        %p244 = scmp.lt.s32.totalorder %s20, 1
        %s245 = scalar_select %p244, %s20, 1
        %s246 = smul.addr %s245, 4
        %s247 = smul.addr %s246, 8
        %s248 = scalar_lea.vmem %s4, %s247
        %p249 = pneg %p166
        %p250 = pneg %p163
        %s251 = sand.u32 %s153, 1
        %s252 = scalar_lea.sflag [#allocation3], %s251
        %s253 = sand.u32 %s153, 1
        %s254 = smul.addr %s253, 32
        %s255 = scalar_lea.vmem [#allocation2], %s254
        %p256 = scmp.lt.s32.totalorder %s20, 1
        %s257 = scalar_select %p256, %s20, 1
        %s258 = smul.addr %s257, 4
        %s259 = smul.addr %s258, 8
        %s260 = scalar_lea.vmem %s0, %s259
        %p261 = scmp.lt.s32.totalorder %s20, 1
        %s262 = scalar_select %p261, %s20, 1
        %s263 = smul.addr %s262, 4
        %s264 = smul.addr %s263, 8
        %s265 = scalar_lea.vmem %s1, %s264
        %p266 = scmp.lt.s32.totalorder %s20, 1
        %s267 = scalar_select %p266, %s20, 1
        %s268 = smul.addr %s267, 4
        %s269 = smul.addr %s268, 8
        %s270 = scalar_lea.vmem %s2, %s269
        %p271 = scmp.lt.s32.totalorder %s20, 1
        %s272 = scalar_select %p271, %s20, 1
        %s273 = smul.addr %s272, 4
        %s274 = smul.addr %s273, 8
        %s275 = scalar_lea.vmem %s4, %s274
        %v276 = vld [vmem:[%s260] sm:$0xff]
        %v277 = vld [vmem:[%s260 + $0x8] sm:$0xff]
        %v278 = vld [vmem:[%s260 + $0x10] sm:$0xff]
        %v279 = vld [vmem:[%s260 + $0x18] sm:$0xff]
        %v280 = vld [vmem:[%s265] sm:$0xff]
        %v281 = vld [vmem:[%s265 + $0x8] sm:$0xff]
        %v282 = vld [vmem:[%s265 + $0x10] sm:$0xff]
        %v283 = vld [vmem:[%s265 + $0x18] sm:$0xff]
        %v284 = vld [vmem:[%s270] sm:$0xff]
        %v285 = vld [vmem:[%s270 + $0x8] sm:$0xff]
        %v286 = vld [vmem:[%s270 + $0x10] sm:$0xff]
        %v287 = vld [vmem:[%s270 + $0x18] sm:$0xff]
        %v288 = vld [vmem:[%s3] sm:$0xff]
        %vm289 = vcmask 64512
        %v291 = vsel %vm289, %v276, 0
        %v294 = vsel %vm289, %v280, 0
        %296 = vmatprep.subr.mxu0 0.0
        %297 = vmatpush1.xpose.msra.mxu0 %v294
        %298 = vmatprep.subr.mxu0 0.0
        %299 = vmatpush1.xpose.msra.mxu0 0.0
        %300 = vmatprep.subr.mxu0 0.0
        %301 = vmatpush1.xpose.msra.mxu0 0.0
        %302 = vmatprep.subr.mxu0 0.0
        %303 = vmatpush1.xpose.msra.mxu0 0.0
        %304 = vmatprep.subr.mxu0 0.0
        %305 = vmatpush1.xpose.msra.mxu0 0.0
        %306 = vmatprep.subr.mxu0 0.0
        %307 = vmatpush1.xpose.msra.mxu0 0.0
        %308 = vmatprep.subr.mxu0 0.0
        %309 = vmatpush1.xpose.msra.mxu0 0.0
        %310 = vmatprep.subr.mxu0 0.0
        %311 = vmatpush1.xpose.msra.mxu0 0.0
        %312 = vmatprep.subr.mxu0 0.0
        %313 = vmatpush1.xpose.msra.mxu0 0.0
        %314 = vmatprep.subr.mxu0 0.0
        %315 = vmatpush1.xpose.msra.mxu0 0.0
        %316 = vmatprep.subr.mxu0 0.0
        %317 = vmatpush1.xpose.msra.mxu0 0.0
        %318 = vmatprep.subr.mxu0 0.0
        %319 = vmatpush1.xpose.msra.mxu0 0.0
        %320 = vmatprep.subr.mxu0 0.0
        %321 = vmatpush1.xpose.msra.mxu0 0.0
        %322 = vmatprep.subr.mxu0 0.0
        %323 = vmatpush1.xpose.msra.mxu0 0.0
        %324 = vmatprep.subr.mxu0 0.0
        %325 = vmatpush1.xpose.msra.mxu0 0.0
        %326 = vmatprep.subr.mxu0 0.0
        %327 = vmatpush1.xpose.msra.mxu0 0.0
        %328 = vmatprep.subr.mxu0 0.0
        %329 = vmatpush1.xpose.msra.mxu0 0.0
        %330 = vmatprep.subr.mxu0 0.0
        %331 = vmatpush1.xpose.msra.mxu0 0.0
        %332 = vmatprep.subr.mxu0 0.0
        %333 = vmatpush1.xpose.msra.mxu0 0.0
        %334 = vmatprep.subr.mxu0 0.0
        %335 = vmatpush1.xpose.msra.mxu0 0.0
        %336 = vmatprep.subr.mxu0 0.0
        %337 = vmatpush1.xpose.msra.mxu0 0.0
        %338 = vmatprep.subr.mxu0 0.0
        %339 = vmatpush1.xpose.msra.mxu0 0.0
        %340 = vmatprep.subr.mxu0 0.0
        %341 = vmatpush1.xpose.msra.mxu0 0.0
        %342 = vmatprep.subr.mxu0 0.0
        %343 = vmatpush1.xpose.msra.mxu0 0.0
        %344 = vmatprep.subr.mxu0 0.0
        %345 = vmatpush1.xpose.msra.mxu0 0.0
        %346 = vmatprep.subr.mxu0 0.0
        %347 = vmatpush1.xpose.msra.mxu0 0.0
        %348 = vmatprep.subr.mxu0 0.0
        %349 = vmatpush1.xpose.msra.mxu0 0.0
        %350 = vmatprep.subr.mxu0 0.0
        %351 = vmatpush1.xpose.msra.mxu0 0.0
        %352 = vmatprep.subr.mxu0 0.0
        %353 = vmatpush1.xpose.msra.mxu0 0.0
        %354 = vmatprep.subr.mxu0 0.0
        %355 = vmatpush1.xpose.msra.mxu0 0.0
        %356 = vmatprep.subr.mxu0 0.0
        %357 = vmatpush1.xpose.msra.mxu0 0.0
        %358 = vmatprep.subr.mxu0 0.0
        %359 = vmatpush1.xpose.msra.mxu0 0.0
        %360 = vmatprep.mubr.f32.mxu0 0.0
        %361 = vmatmul.mubr.f32.gmra.mrb[0].mxu0 %v291
        %v362 = vpop.f32.mrb[0].mxu0
        %v363 = vadd.f32 0.0, %v362
        %v364 = vpop.f32.mrb[0].mxu0
        %365 = vdwg.mxu0
        %v367 = vsel %vm289, %v277, 0
        %v370 = vsel %vm289, %v281, 0
        %372 = vmatprep.subr.mxu0 0.0
        %373 = vmatpush1.xpose.msra.mxu0 %v370
        %374 = vmatprep.subr.mxu0 0.0
        %375 = vmatpush1.xpose.msra.mxu0 0.0
        %376 = vmatprep.subr.mxu0 0.0
        %377 = vmatpush1.xpose.msra.mxu0 0.0
        %378 = vmatprep.subr.mxu0 0.0
        %379 = vmatpush1.xpose.msra.mxu0 0.0
        %380 = vmatprep.subr.mxu0 0.0
        %381 = vmatpush1.xpose.msra.mxu0 0.0
        %382 = vmatprep.subr.mxu0 0.0
        %383 = vmatpush1.xpose.msra.mxu0 0.0
        %384 = vmatprep.subr.mxu0 0.0
        %385 = vmatpush1.xpose.msra.mxu0 0.0
        %386 = vmatprep.subr.mxu0 0.0
        %387 = vmatpush1.xpose.msra.mxu0 0.0
        %388 = vmatprep.subr.mxu0 0.0
        %389 = vmatpush1.xpose.msra.mxu0 0.0
        %390 = vmatprep.subr.mxu0 0.0
        %391 = vmatpush1.xpose.msra.mxu0 0.0
        %392 = vmatprep.subr.mxu0 0.0
        %393 = vmatpush1.xpose.msra.mxu0 0.0
        %394 = vmatprep.subr.mxu0 0.0
        %395 = vmatpush1.xpose.msra.mxu0 0.0
        %396 = vmatprep.subr.mxu0 0.0
        %397 = vmatpush1.xpose.msra.mxu0 0.0
        %398 = vmatprep.subr.mxu0 0.0
        %399 = vmatpush1.xpose.msra.mxu0 0.0
        %400 = vmatprep.subr.mxu0 0.0
        %401 = vmatpush1.xpose.msra.mxu0 0.0
        %402 = vmatprep.subr.mxu0 0.0
        %403 = vmatpush1.xpose.msra.mxu0 0.0
        %404 = vmatprep.subr.mxu0 0.0
        %405 = vmatpush1.xpose.msra.mxu0 0.0
        %406 = vmatprep.subr.mxu0 0.0
        %407 = vmatpush1.xpose.msra.mxu0 0.0
        %408 = vmatprep.subr.mxu0 0.0
        %409 = vmatpush1.xpose.msra.mxu0 0.0
        %410 = vmatprep.subr.mxu0 0.0
        %411 = vmatpush1.xpose.msra.mxu0 0.0
        %412 = vmatprep.subr.mxu0 0.0
        %413 = vmatpush1.xpose.msra.mxu0 0.0
        %414 = vmatprep.subr.mxu0 0.0
        %415 = vmatpush1.xpose.msra.mxu0 0.0
        %416 = vmatprep.subr.mxu0 0.0
        %417 = vmatpush1.xpose.msra.mxu0 0.0
        %418 = vmatprep.subr.mxu0 0.0
        %419 = vmatpush1.xpose.msra.mxu0 0.0
        %420 = vmatprep.subr.mxu0 0.0
        %421 = vmatpush1.xpose.msra.mxu0 0.0
        %422 = vmatprep.subr.mxu0 0.0
        %423 = vmatpush1.xpose.msra.mxu0 0.0
        %424 = vmatprep.subr.mxu0 0.0
        %425 = vmatpush1.xpose.msra.mxu0 0.0
        %426 = vmatprep.subr.mxu0 0.0
        %427 = vmatpush1.xpose.msra.mxu0 0.0
        %428 = vmatprep.subr.mxu0 0.0
        %429 = vmatpush1.xpose.msra.mxu0 0.0
        %430 = vmatprep.subr.mxu0 0.0
        %431 = vmatpush1.xpose.msra.mxu0 0.0
        %432 = vmatprep.subr.mxu0 0.0
        %433 = vmatpush1.xpose.msra.mxu0 0.0
        %434 = vmatprep.subr.mxu0 0.0
        %435 = vmatpush1.xpose.msra.mxu0 0.0
        %436 = vmatprep.mubr.f32.mxu0 0.0
        %437 = vmatmul.mubr.f32.gmra.mrb[0].mxu0 %v367
        %v438 = vpop.f32.mrb[0].mxu0
        %v439 = vadd.f32 0.0, %v438
        %v440 = vpop.f32.mrb[0].mxu0
        %441 = vdwg.mxu0
        %v443 = vsel %vm289, %v278, 0
        %v446 = vsel %vm289, %v282, 0
        %448 = vmatprep.subr.mxu0 0.0
        %449 = vmatpush1.xpose.msra.mxu0 %v446
        %450 = vmatprep.subr.mxu0 0.0
        %451 = vmatpush1.xpose.msra.mxu0 0.0
        %452 = vmatprep.subr.mxu0 0.0
        %453 = vmatpush1.xpose.msra.mxu0 0.0
        %454 = vmatprep.subr.mxu0 0.0
        %455 = vmatpush1.xpose.msra.mxu0 0.0
        %456 = vmatprep.subr.mxu0 0.0
        %457 = vmatpush1.xpose.msra.mxu0 0.0
        %458 = vmatprep.subr.mxu0 0.0
        %459 = vmatpush1.xpose.msra.mxu0 0.0
        %460 = vmatprep.subr.mxu0 0.0
        %461 = vmatpush1.xpose.msra.mxu0 0.0
        %462 = vmatprep.subr.mxu0 0.0
        %463 = vmatpush1.xpose.msra.mxu0 0.0
        %464 = vmatprep.subr.mxu0 0.0
        %465 = vmatpush1.xpose.msra.mxu0 0.0
        %466 = vmatprep.subr.mxu0 0.0
        %467 = vmatpush1.xpose.msra.mxu0 0.0
        %468 = vmatprep.subr.mxu0 0.0
        %469 = vmatpush1.xpose.msra.mxu0 0.0
        %470 = vmatprep.subr.mxu0 0.0
        %471 = vmatpush1.xpose.msra.mxu0 0.0
        %472 = vmatprep.subr.mxu0 0.0
        %473 = vmatpush1.xpose.msra.mxu0 0.0
        %474 = vmatprep.subr.mxu0 0.0
        %475 = vmatpush1.xpose.msra.mxu0 0.0
        %476 = vmatprep.subr.mxu0 0.0
        %477 = vmatpush1.xpose.msra.mxu0 0.0
        %478 = vmatprep.subr.mxu0 0.0
        %479 = vmatpush1.xpose.msra.mxu0 0.0
        %480 = vmatprep.subr.mxu0 0.0
        %481 = vmatpush1.xpose.msra.mxu0 0.0
        %482 = vmatprep.subr.mxu0 0.0
        %483 = vmatpush1.xpose.msra.mxu0 0.0
        %484 = vmatprep.subr.mxu0 0.0
        %485 = vmatpush1.xpose.msra.mxu0 0.0
        %486 = vmatprep.subr.mxu0 0.0
        %487 = vmatpush1.xpose.msra.mxu0 0.0
        %488 = vmatprep.subr.mxu0 0.0
        %489 = vmatpush1.xpose.msra.mxu0 0.0
        %490 = vmatprep.subr.mxu0 0.0
        %491 = vmatpush1.xpose.msra.mxu0 0.0
        %492 = vmatprep.subr.mxu0 0.0
        %493 = vmatpush1.xpose.msra.mxu0 0.0
        %494 = vmatprep.subr.mxu0 0.0
        %495 = vmatpush1.xpose.msra.mxu0 0.0
        %496 = vmatprep.subr.mxu0 0.0
        %497 = vmatpush1.xpose.msra.mxu0 0.0
        %498 = vmatprep.subr.mxu0 0.0
        %499 = vmatpush1.xpose.msra.mxu0 0.0
        %500 = vmatprep.subr.mxu0 0.0
        %501 = vmatpush1.xpose.msra.mxu0 0.0
        %502 = vmatprep.subr.mxu0 0.0
        %503 = vmatpush1.xpose.msra.mxu0 0.0
        %504 = vmatprep.subr.mxu0 0.0
        %505 = vmatpush1.xpose.msra.mxu0 0.0
        %506 = vmatprep.subr.mxu0 0.0
        %507 = vmatpush1.xpose.msra.mxu0 0.0
        %508 = vmatprep.subr.mxu0 0.0
        %509 = vmatpush1.xpose.msra.mxu0 0.0
        %510 = vmatprep.subr.mxu0 0.0
        %511 = vmatpush1.xpose.msra.mxu0 0.0
        %512 = vmatprep.mubr.f32.mxu0 0.0
        %513 = vmatmul.mubr.f32.gmra.mrb[0].mxu0 %v443
        %v514 = vpop.f32.mrb[0].mxu0
        %v515 = vadd.f32 0.0, %v514
        %v516 = vpop.f32.mrb[0].mxu0
        %517 = vdwg.mxu0
        %v519 = vsel %vm289, %v279, 0
        %v522 = vsel %vm289, %v283, 0
        %524 = vmatprep.subr.mxu0 0.0
        %525 = vmatpush1.xpose.msra.mxu0 %v522
        %526 = vmatprep.subr.mxu0 0.0
        %527 = vmatpush1.xpose.msra.mxu0 0.0
        %528 = vmatprep.subr.mxu0 0.0
        %529 = vmatpush1.xpose.msra.mxu0 0.0
        %530 = vmatprep.subr.mxu0 0.0
        %531 = vmatpush1.xpose.msra.mxu0 0.0
        %532 = vmatprep.subr.mxu0 0.0
        %533 = vmatpush1.xpose.msra.mxu0 0.0
        %534 = vmatprep.subr.mxu0 0.0
        %535 = vmatpush1.xpose.msra.mxu0 0.0
        %536 = vmatprep.subr.mxu0 0.0
        %537 = vmatpush1.xpose.msra.mxu0 0.0
        %538 = vmatprep.subr.mxu0 0.0
        %539 = vmatpush1.xpose.msra.mxu0 0.0
        %540 = vmatprep.subr.mxu0 0.0
        %541 = vmatpush1.xpose.msra.mxu0 0.0
        %542 = vmatprep.subr.mxu0 0.0
        %543 = vmatpush1.xpose.msra.mxu0 0.0
        %544 = vmatprep.subr.mxu0 0.0
        %545 = vmatpush1.xpose.msra.mxu0 0.0
        %546 = vmatprep.subr.mxu0 0.0
        %547 = vmatpush1.xpose.msra.mxu0 0.0
        %548 = vmatprep.subr.mxu0 0.0
        %549 = vmatpush1.xpose.msra.mxu0 0.0
        %550 = vmatprep.subr.mxu0 0.0
        %551 = vmatpush1.xpose.msra.mxu0 0.0
        %552 = vmatprep.subr.mxu0 0.0
        %553 = vmatpush1.xpose.msra.mxu0 0.0
        %554 = vmatprep.subr.mxu0 0.0
        %555 = vmatpush1.xpose.msra.mxu0 0.0
        %556 = vmatprep.subr.mxu0 0.0
        %557 = vmatpush1.xpose.msra.mxu0 0.0
        %558 = vmatprep.subr.mxu0 0.0
        %559 = vmatpush1.xpose.msra.mxu0 0.0
        %560 = vmatprep.subr.mxu0 0.0
        %561 = vmatpush1.xpose.msra.mxu0 0.0
        %562 = vmatprep.subr.mxu0 0.0
        %563 = vmatpush1.xpose.msra.mxu0 0.0
        %564 = vmatprep.subr.mxu0 0.0
        %565 = vmatpush1.xpose.msra.mxu0 0.0
        %566 = vmatprep.subr.mxu0 0.0
        %567 = vmatpush1.xpose.msra.mxu0 0.0
        %568 = vmatprep.subr.mxu0 0.0
        %569 = vmatpush1.xpose.msra.mxu0 0.0
        %570 = vmatprep.subr.mxu0 0.0
        %571 = vmatpush1.xpose.msra.mxu0 0.0
        %572 = vmatprep.subr.mxu0 0.0
        %573 = vmatpush1.xpose.msra.mxu0 0.0
        %574 = vmatprep.subr.mxu0 0.0
        %575 = vmatpush1.xpose.msra.mxu0 0.0
        %576 = vmatprep.subr.mxu0 0.0
        %577 = vmatpush1.xpose.msra.mxu0 0.0
        %578 = vmatprep.subr.mxu0 0.0
        %579 = vmatpush1.xpose.msra.mxu0 0.0
        %580 = vmatprep.subr.mxu0 0.0
        %581 = vmatpush1.xpose.msra.mxu0 0.0
        %582 = vmatprep.subr.mxu0 0.0
        %583 = vmatpush1.xpose.msra.mxu0 0.0
        %584 = vmatprep.subr.mxu0 0.0
        %585 = vmatpush1.xpose.msra.mxu0 0.0
        %586 = vmatprep.subr.mxu0 0.0
        %587 = vmatpush1.xpose.msra.mxu0 0.0
        %588 = vmatprep.mubr.f32.mxu0 0.0
        %589 = vmatmul.mubr.f32.gmra.mrb[0].mxu0 %v519
        %v590 = vpop.f32.mrb[0].mxu0
        %v591 = vadd.f32 0.0, %v590
        %v592 = vpop.f32.mrb[0].mxu0
        %593 = vdwg.mxu0
        %v594 = vrsqrt.pop %v363
        %v595 = vmul.f32 %v363, %v594
        %vm596 = vcmp.eq.f32.partialorder %v363, inf
        %v597 = vsel %vm596, %v363, %v595
        %vm598 = vcmp.eq.f32.partialorder %v363, 0.0
        %v599 = vand.u32 %v363, 2147483648
        %v600 = vsel %vm598, %v599, %v597
        %v601 = vrsqrt.pop %v439
        %v602 = vmul.f32 %v439, %v601
        %vm603 = vcmp.eq.f32.partialorder %v439, inf
        %v604 = vsel %vm603, %v439, %v602
        %vm605 = vcmp.eq.f32.partialorder %v439, 0.0
        %v606 = vand.u32 %v439, 2147483648
        %v607 = vsel %vm605, %v606, %v604
        %v608 = vrsqrt.pop %v515
        %v609 = vmul.f32 %v515, %v608
        %vm610 = vcmp.eq.f32.partialorder %v515, inf
        %v611 = vsel %vm610, %v515, %v609
        %vm612 = vcmp.eq.f32.partialorder %v515, 0.0
        %v613 = vand.u32 %v515, 2147483648
        %v614 = vsel %vm612, %v613, %v611
        %v615 = vrsqrt.pop %v591
        %v616 = vmul.f32 %v591, %v615
        %vm617 = vcmp.eq.f32.partialorder %v591, inf
        %v618 = vsel %vm617, %v591, %v616
        %vm619 = vcmp.eq.f32.partialorder %v591, 0.0
        %v620 = vand.u32 %v591, 2147483648
        %v621 = vsel %vm619, %v620, %v618
        %v622 = vmul.f32 %v288, -1e+09
        %v623 = vadd.f32 %v600, %v622
        %v624 = vadd.f32 %v607, %v622
        %v625 = vadd.f32 %v614, %v622
        %v626 = vadd.f32 %v621, %v622
        %v627 = vsel %vm289, %v623, -inf
        %628 = vmax.xlane.f32.xlu0 %v627
        %v629 = vpop.xlane.xlu0 %628
        %v630 = vsel %vm289, %v624, -inf
        %631 = vmax.xlane.f32.xlu0 %v630
        %v632 = vpop.xlane.xlu0 %631
        %v633 = vsel %vm289, %v625, -inf
        %634 = vmax.xlane.f32.xlu0 %v633
        %v635 = vpop.xlane.xlu0 %634
        %v636 = vsel %vm289, %v626, -inf
        %637 = vmax.xlane.f32.xlu0 %v636
        %v638 = vpop.xlane.xlu0 %637
        %v639 = vsub.f32 %v623, %v629
        %v640 = vsub.f32 %v624, %v632
        %v641 = vsub.f32 %v625, %v635
        %v642 = vsub.f32 %v626, %v638
        %v643 = vmul.f32 %v639, 1.442695
        %v644 = vpow.pop %v643
        %v645 = vmul.f32 %v640, 1.442695
        %v646 = vpow.pop %v645
        %v647 = vmul.f32 %v641, 1.442695
        %v648 = vpow.pop %v647
        %v649 = vmul.f32 %v642, 1.442695
        %v650 = vpow.pop %v649
        %v651 = vsel %vm289, %v644, 0.0
        %652 = vadd.xlane.f32.xlu0 %v651
        %v653 = vpop.xlane.xlu0 %652
        %v654 = vsel %vm289, %v646, 0.0
        %655 = vadd.xlane.f32.xlu0 %v654
        %v656 = vpop.xlane.xlu0 %655
        %v657 = vsel %vm289, %v648, 0.0
        %658 = vadd.xlane.f32.xlu0 %v657
        %v659 = vpop.xlane.xlu0 %658
        %v660 = vsel %vm289, %v650, 0.0
        %661 = vadd.xlane.f32.xlu0 %v660
        %v662 = vpop.xlane.xlu0 %661
        %v663 = vrcp.pop %v653
        %v664 = vrcp.pop %v656
        %v665 = vrcp.pop %v659
        %v666 = vrcp.pop %v662
        %v667 = vmul.f32 %v644, %v663
        %v668 = vmul.f32 %v646, %v664
        %v669 = vmul.f32 %v648, %v665
        %v670 = vmul.f32 %v650, %v666
        %v672 = vsel %vm289, %v667, 0
        %674 = vmatprep.subr.mxu0 0.0
        %675 = vmatpush1.msra.mxu0 %v284
        %676 = vmatprep.subr.mxu0 0.0
        %677 = vmatpush1.msra.mxu0 0.0
        %678 = vmatprep.subr.mxu0 0.0
        %679 = vmatpush1.msra.mxu0 0.0
        %680 = vmatprep.subr.mxu0 0.0
        %681 = vmatpush1.msra.mxu0 0.0
        %682 = vmatprep.subr.mxu0 0.0
        %683 = vmatpush1.msra.mxu0 0.0
        %684 = vmatprep.subr.mxu0 0.0
        %685 = vmatpush1.msra.mxu0 0.0
        %686 = vmatprep.subr.mxu0 0.0
        %687 = vmatpush1.msra.mxu0 0.0
        %688 = vmatprep.subr.mxu0 0.0
        %689 = vmatpush1.msra.mxu0 0.0
        %690 = vmatprep.subr.mxu0 0.0
        %691 = vmatpush1.msra.mxu0 0.0
        %692 = vmatprep.subr.mxu0 0.0
        %693 = vmatpush1.msra.mxu0 0.0
        %694 = vmatprep.subr.mxu0 0.0
        %695 = vmatpush1.msra.mxu0 0.0
        %696 = vmatprep.subr.mxu0 0.0
        %697 = vmatpush1.msra.mxu0 0.0
        %698 = vmatprep.subr.mxu0 0.0
        %699 = vmatpush1.msra.mxu0 0.0
        %700 = vmatprep.subr.mxu0 0.0
        %701 = vmatpush1.msra.mxu0 0.0
        %702 = vmatprep.subr.mxu0 0.0
        %703 = vmatpush1.msra.mxu0 0.0
        %704 = vmatprep.subr.mxu0 0.0
        %705 = vmatpush1.msra.mxu0 0.0
        %706 = vmatprep.subr.mxu0 0.0
        %707 = vmatpush1.msra.mxu0 0.0
        %708 = vmatprep.subr.mxu0 0.0
        %709 = vmatpush1.msra.mxu0 0.0
        %710 = vmatprep.subr.mxu0 0.0
        %711 = vmatpush1.msra.mxu0 0.0
        %712 = vmatprep.subr.mxu0 0.0
        %713 = vmatpush1.msra.mxu0 0.0
        %714 = vmatprep.subr.mxu0 0.0
        %715 = vmatpush1.msra.mxu0 0.0
        %716 = vmatprep.subr.mxu0 0.0
        %717 = vmatpush1.msra.mxu0 0.0
        %718 = vmatprep.subr.mxu0 0.0
        %719 = vmatpush1.msra.mxu0 0.0
        %720 = vmatprep.subr.mxu0 0.0
        %721 = vmatpush1.msra.mxu0 0.0
        %722 = vmatprep.subr.mxu0 0.0
        %723 = vmatpush1.msra.mxu0 0.0
        %724 = vmatprep.subr.mxu0 0.0
        %725 = vmatpush1.msra.mxu0 0.0
        %726 = vmatprep.subr.mxu0 0.0
        %727 = vmatpush1.msra.mxu0 0.0
        %728 = vmatprep.subr.mxu0 0.0
        %729 = vmatpush1.msra.mxu0 0.0
        %730 = vmatprep.subr.mxu0 0.0
        %731 = vmatpush1.msra.mxu0 0.0
        %732 = vmatprep.subr.mxu0 0.0
        %733 = vmatpush1.msra.mxu0 0.0
        %734 = vmatprep.subr.mxu0 0.0
        %735 = vmatpush1.msra.mxu0 0.0
        %736 = vmatprep.subr.mxu0 0.0
        %737 = vmatpush1.msra.mxu0 0.0
        %738 = vmatprep.mubr.f32.mxu0 0.0
        %739 = vmatmul.mubr.f32.gmra.mrb[0].mxu0 %v672
        %v740 = vpop.f32.mrb[0].mxu0
        %v741 = vadd.f32 0.0, %v740
        %v742 = vpop.f32.mrb[0].mxu0
        %743 = vdwg.mxu0
        %v745 = vsel %vm289, %v668, 0
        %747 = vmatprep.subr.mxu0 0.0
        %748 = vmatpush1.msra.mxu0 %v285
        %749 = vmatprep.subr.mxu0 0.0
        %750 = vmatpush1.msra.mxu0 0.0
        %751 = vmatprep.subr.mxu0 0.0
        %752 = vmatpush1.msra.mxu0 0.0
        %753 = vmatprep.subr.mxu0 0.0
        %754 = vmatpush1.msra.mxu0 0.0
        %755 = vmatprep.subr.mxu0 0.0
        %756 = vmatpush1.msra.mxu0 0.0
        %757 = vmatprep.subr.mxu0 0.0
        %758 = vmatpush1.msra.mxu0 0.0
        %759 = vmatprep.subr.mxu0 0.0
        %760 = vmatpush1.msra.mxu0 0.0
        %761 = vmatprep.subr.mxu0 0.0
        %762 = vmatpush1.msra.mxu0 0.0
        %763 = vmatprep.subr.mxu0 0.0
        %764 = vmatpush1.msra.mxu0 0.0
        %765 = vmatprep.subr.mxu0 0.0
        %766 = vmatpush1.msra.mxu0 0.0
        %767 = vmatprep.subr.mxu0 0.0
        %768 = vmatpush1.msra.mxu0 0.0
        %769 = vmatprep.subr.mxu0 0.0
        %770 = vmatpush1.msra.mxu0 0.0
        %771 = vmatprep.subr.mxu0 0.0
        %772 = vmatpush1.msra.mxu0 0.0
        %773 = vmatprep.subr.mxu0 0.0
        %774 = vmatpush1.msra.mxu0 0.0
        %775 = vmatprep.subr.mxu0 0.0
        %776 = vmatpush1.msra.mxu0 0.0
        %777 = vmatprep.subr.mxu0 0.0
        %778 = vmatpush1.msra.mxu0 0.0
        %779 = vmatprep.subr.mxu0 0.0
        %780 = vmatpush1.msra.mxu0 0.0
        %781 = vmatprep.subr.mxu0 0.0
        %782 = vmatpush1.msra.mxu0 0.0
        %783 = vmatprep.subr.mxu0 0.0
        %784 = vmatpush1.msra.mxu0 0.0
        %785 = vmatprep.subr.mxu0 0.0
        %786 = vmatpush1.msra.mxu0 0.0
        %787 = vmatprep.subr.mxu0 0.0
        %788 = vmatpush1.msra.mxu0 0.0
        %789 = vmatprep.subr.mxu0 0.0
        %790 = vmatpush1.msra.mxu0 0.0
        %791 = vmatprep.subr.mxu0 0.0
        %792 = vmatpush1.msra.mxu0 0.0
        %793 = vmatprep.subr.mxu0 0.0
        %794 = vmatpush1.msra.mxu0 0.0
        %795 = vmatprep.subr.mxu0 0.0
        %796 = vmatpush1.msra.mxu0 0.0
        %797 = vmatprep.subr.mxu0 0.0
        %798 = vmatpush1.msra.mxu0 0.0
        %799 = vmatprep.subr.mxu0 0.0
        %800 = vmatpush1.msra.mxu0 0.0
        %801 = vmatprep.subr.mxu0 0.0
        %802 = vmatpush1.msra.mxu0 0.0
        %803 = vmatprep.subr.mxu0 0.0
        %804 = vmatpush1.msra.mxu0 0.0
        %805 = vmatprep.subr.mxu0 0.0
        %806 = vmatpush1.msra.mxu0 0.0
        %807 = vmatprep.subr.mxu0 0.0
        %808 = vmatpush1.msra.mxu0 0.0
        %809 = vmatprep.subr.mxu0 0.0
        %810 = vmatpush1.msra.mxu0 0.0
        %811 = vmatprep.mubr.f32.mxu0 0.0
        %812 = vmatmul.mubr.f32.gmra.mrb[0].mxu0 %v745
        %v813 = vpop.f32.mrb[0].mxu0
        %v814 = vadd.f32 0.0, %v813
        %v815 = vpop.f32.mrb[0].mxu0
        %816 = vdwg.mxu0
        %v818 = vsel %vm289, %v669, 0
        %820 = vmatprep.subr.mxu0 0.0
        %821 = vmatpush1.msra.mxu0 %v286
        %822 = vmatprep.subr.mxu0 0.0
        %823 = vmatpush1.msra.mxu0 0.0
        %824 = vmatprep.subr.mxu0 0.0
        %825 = vmatpush1.msra.mxu0 0.0
        %826 = vmatprep.subr.mxu0 0.0
        %827 = vmatpush1.msra.mxu0 0.0
        %828 = vmatprep.subr.mxu0 0.0
        %829 = vmatpush1.msra.mxu0 0.0
        %830 = vmatprep.subr.mxu0 0.0
        %831 = vmatpush1.msra.mxu0 0.0
        %832 = vmatprep.subr.mxu0 0.0
        %833 = vmatpush1.msra.mxu0 0.0
        %834 = vmatprep.subr.mxu0 0.0
        %835 = vmatpush1.msra.mxu0 0.0
        %836 = vmatprep.subr.mxu0 0.0
        %837 = vmatpush1.msra.mxu0 0.0
        %838 = vmatprep.subr.mxu0 0.0
        %839 = vmatpush1.msra.mxu0 0.0
        %840 = vmatprep.subr.mxu0 0.0
        %841 = vmatpush1.msra.mxu0 0.0
        %842 = vmatprep.subr.mxu0 0.0
        %843 = vmatpush1.msra.mxu0 0.0
        %844 = vmatprep.subr.mxu0 0.0
        %845 = vmatpush1.msra.mxu0 0.0
        %846 = vmatprep.subr.mxu0 0.0
        %847 = vmatpush1.msra.mxu0 0.0
        %848 = vmatprep.subr.mxu0 0.0
        %849 = vmatpush1.msra.mxu0 0.0
        %850 = vmatprep.subr.mxu0 0.0
        %851 = vmatpush1.msra.mxu0 0.0
        %852 = vmatprep.subr.mxu0 0.0
        %853 = vmatpush1.msra.mxu0 0.0
        %854 = vmatprep.subr.mxu0 0.0
        %855 = vmatpush1.msra.mxu0 0.0
        %856 = vmatprep.subr.mxu0 0.0
        %857 = vmatpush1.msra.mxu0 0.0
        %858 = vmatprep.subr.mxu0 0.0
        %859 = vmatpush1.msra.mxu0 0.0
        %860 = vmatprep.subr.mxu0 0.0
        %861 = vmatpush1.msra.mxu0 0.0
        %862 = vmatprep.subr.mxu0 0.0
        %863 = vmatpush1.msra.mxu0 0.0
        %864 = vmatprep.subr.mxu0 0.0
        %865 = vmatpush1.msra.mxu0 0.0
        %866 = vmatprep.subr.mxu0 0.0
        %867 = vmatpush1.msra.mxu0 0.0
        %868 = vmatprep.subr.mxu0 0.0
        %869 = vmatpush1.msra.mxu0 0.0
        %870 = vmatprep.subr.mxu0 0.0
        %871 = vmatpush1.msra.mxu0 0.0
        %872 = vmatprep.subr.mxu0 0.0
        %873 = vmatpush1.msra.mxu0 0.0
        %874 = vmatprep.subr.mxu0 0.0
        %875 = vmatpush1.msra.mxu0 0.0
        %876 = vmatprep.subr.mxu0 0.0
        %877 = vmatpush1.msra.mxu0 0.0
        %878 = vmatprep.subr.mxu0 0.0
        %879 = vmatpush1.msra.mxu0 0.0
        %880 = vmatprep.subr.mxu0 0.0
        %881 = vmatpush1.msra.mxu0 0.0
        %882 = vmatprep.subr.mxu0 0.0
        %883 = vmatpush1.msra.mxu0 0.0
        %884 = vmatprep.mubr.f32.mxu0 0.0
        %885 = vmatmul.mubr.f32.gmra.mrb[0].mxu0 %v818
        %v886 = vpop.f32.mrb[0].mxu0
        %v887 = vadd.f32 0.0, %v886
        %v888 = vpop.f32.mrb[0].mxu0
        %889 = vdwg.mxu0
        %v891 = vsel %vm289, %v670, 0
        %893 = vmatprep.subr.mxu0 0.0
        %894 = vmatpush1.msra.mxu0 %v287
        %895 = vmatprep.subr.mxu0 0.0
        %896 = vmatpush1.msra.mxu0 0.0
        %897 = vmatprep.subr.mxu0 0.0
        %898 = vmatpush1.msra.mxu0 0.0
        %899 = vmatprep.subr.mxu0 0.0
        %900 = vmatpush1.msra.mxu0 0.0
        %901 = vmatprep.subr.mxu0 0.0
        %902 = vmatpush1.msra.mxu0 0.0
        %903 = vmatprep.subr.mxu0 0.0
        %904 = vmatpush1.msra.mxu0 0.0
        %905 = vmatprep.subr.mxu0 0.0
        %906 = vmatpush1.msra.mxu0 0.0
        %907 = vmatprep.subr.mxu0 0.0
        %908 = vmatpush1.msra.mxu0 0.0
        %909 = vmatprep.subr.mxu0 0.0
        %910 = vmatpush1.msra.mxu0 0.0
        %911 = vmatprep.subr.mxu0 0.0
        %912 = vmatpush1.msra.mxu0 0.0
        %913 = vmatprep.subr.mxu0 0.0
        %914 = vmatpush1.msra.mxu0 0.0
        %915 = vmatprep.subr.mxu0 0.0
        %916 = vmatpush1.msra.mxu0 0.0
        %917 = vmatprep.subr.mxu0 0.0
        %918 = vmatpush1.msra.mxu0 0.0
        %919 = vmatprep.subr.mxu0 0.0
        %920 = vmatpush1.msra.mxu0 0.0
        %921 = vmatprep.subr.mxu0 0.0
        %922 = vmatpush1.msra.mxu0 0.0
        %923 = vmatprep.subr.mxu0 0.0
        %924 = vmatpush1.msra.mxu0 0.0
        %925 = vmatprep.subr.mxu0 0.0
        %926 = vmatpush1.msra.mxu0 0.0
        %927 = vmatprep.subr.mxu0 0.0
        %928 = vmatpush1.msra.mxu0 0.0
        %929 = vmatprep.subr.mxu0 0.0
        %930 = vmatpush1.msra.mxu0 0.0
        %931 = vmatprep.subr.mxu0 0.0
        %932 = vmatpush1.msra.mxu0 0.0
        %933 = vmatprep.subr.mxu0 0.0
        %934 = vmatpush1.msra.mxu0 0.0
        %935 = vmatprep.subr.mxu0 0.0
        %936 = vmatpush1.msra.mxu0 0.0
        %937 = vmatprep.subr.mxu0 0.0
        %938 = vmatpush1.msra.mxu0 0.0
        %939 = vmatprep.subr.mxu0 0.0
        %940 = vmatpush1.msra.mxu0 0.0
        %941 = vmatprep.subr.mxu0 0.0
        %942 = vmatpush1.msra.mxu0 0.0
        %943 = vmatprep.subr.mxu0 0.0
        %944 = vmatpush1.msra.mxu0 0.0
        %945 = vmatprep.subr.mxu0 0.0
        %946 = vmatpush1.msra.mxu0 0.0
        %947 = vmatprep.subr.mxu0 0.0
        %948 = vmatpush1.msra.mxu0 0.0
        %949 = vmatprep.subr.mxu0 0.0
        %950 = vmatpush1.msra.mxu0 0.0
        %951 = vmatprep.subr.mxu0 0.0
        %952 = vmatpush1.msra.mxu0 0.0
        %953 = vmatprep.subr.mxu0 0.0
        %954 = vmatpush1.msra.mxu0 0.0
        %955 = vmatprep.subr.mxu0 0.0
        %956 = vmatpush1.msra.mxu0 0.0
        %957 = vmatprep.mubr.f32.mxu0 0.0
        %958 = vmatmul.mubr.f32.gmra.mrb[0].mxu0 %v891
        %v959 = vpop.f32.mrb[0].mxu0
        %v960 = vadd.f32 0.0, %v959
        %v961 = vpop.f32.mrb[0].mxu0
        %962 = vdwg.mxu0
        %963 = vst.msk [vmem:[%s275] sm:$0xff] %vm289, %v741
        %964 = vst.msk [vmem:[%s275 + $0x8] sm:$0xff] %vm289, %v814
        %965 = vst.msk [vmem:[%s275 + $0x10] sm:$0xff] %vm289, %v887
        %966 = vst.msk [vmem:[%s275 + $0x18] sm:$0xff] %vm289, %v960
        %967 = vst.msk [vmem:[%s255] sm:$0xff] %vm289, %v667
        %968 = vst.msk [vmem:[%s255 + $0x8] sm:$0xff] %vm289, %v668
        %969 = vst.msk [vmem:[%s255 + $0x10] sm:$0xff] %vm289, %v669
        %970 = vst.msk [vmem:[%s255 + $0x18] sm:$0xff] %vm289, %v670
        %p971 = scmp.lt.s32.totalorder %s20, 1
        %s972 = scalar_select %p971, %s20, 1
        %s973 = smul.addr %s972, 4
        %s974 = smul.addr %s973, 8
        %s975 = scalar_lea.vmem %s4, %s974
        %s976 = sand.u32 %s153, 1
        %s977 = scalar_lea.sflag [#allocation3], %s976
        %s978 = sand.u32 %s153, 1
        %s979 = smul.addr %s978, 32
        %s980 = scalar_lea.vmem [#allocation2], %s979
        // Predicated region
        $region37: #{decoder_forward.16} parent=35 // pred_check
          %p981 = pneg %p137
        $region38: #{decoder_forward.16} parent=35 // pred_check_branch
          %983 = sbr.rel (%p981) target = $region40
        $region39: #{decoder_forward.16} parent=35 // pred_region
          _
        $region40: #{decoder_forward.16} parent=35 // pred_fallthru
          _
        // Predicated region
        $region41: #{decoder_forward.16} parent=35 // pred_check
          %p984 = pneg %p163
        $region42: #{decoder_forward.16} parent=35 // pred_check_branch
          %986 = sbr.rel (%p984) target = $region44
        $region43: #{decoder_forward.16} parent=35 // pred_region
          %s988 = ssub.s32 512, 512
          %989 = vsyncadd %s977, %s988
          %s990 = smul.addr %s20, 4
          %s991 = smul.addr %s990, 128
          %s992 = scalar_lea.hbm %s5, %s991
          %s993 = sshll.u32 %s980, 4
          %s994 = int_to_ptr.vmem [resolvable:$true] %s993
          %999 = dma.vmem_to_hbm [thread:$0]  %s994, 512, %s992, %s977, 128, 128, 8
        $region44: #{decoder_forward.16} parent=35 // pred_fallthru
          _
      $region36: #{decoder_forward.16} parent=5 // pred_fallthru
        _
      %p1000 = scmp.le.s32.totalorder 2, %s15
      // Predicated region
      $region45: #{decoder_forward.16} parent=5 // pred_check
        %p1001 = pneg %p1000
      $region46: #{decoder_forward.16} parent=5 // pred_check_branch
        %1003 = sbr.rel (%p1001) target = $region48
      $region47: #{decoder_forward.16} parent=5 // pred_region
        %s1004 = ssub.s32 %s15, 2
        // Predicated region
        $region49: #{decoder_forward.16} parent=47 // pred_check
          %p1005 = pneg %p143
        $region50: #{decoder_forward.16} parent=47 // pred_check_branch
          %1007 = sbr.rel (%p1005) target = $region52
        $region51: #{decoder_forward.16} parent=47 // pred_region
          %p1008 = scmp.lt.s32.totalorder %s21, 1
          %s1009 = scalar_select %p1008, %s21, 1
          %s1010 = smul.addr %s1009, 4
          %s1011 = smul.addr %s1010, 8
          %s1012 = scalar_lea.vmem %s4, %s1011
        $region52: #{decoder_forward.16} parent=47 // pred_fallthru
          _
        // Predicated region
        $region53: #{decoder_forward.16} parent=47 // pred_check
          %p1013 = pneg %p169
        $region54: #{decoder_forward.16} parent=47 // pred_check_branch
          %1015 = sbr.rel (%p1013) target = $region56
        $region55: #{decoder_forward.16} parent=47 // pred_region
          %s1016 = sand.u32 %s154, 1
          %s1017 = scalar_lea.sflag [#allocation3], %s1016
          %s1018 = sand.u32 %s154, 1
          %s1019 = smul.addr %s1018, 32
          %s1020 = scalar_lea.vmem [#allocation2], %s1019
          %1021 = dma.done %s1017, 512
        $region56: #{decoder_forward.16} parent=47 // pred_fallthru
          _
      $region48: #{decoder_forward.16} parent=5 // pred_fallthru
        _
    $region6: #{decoder_forward.16} parent=1 // loop_footer
      %s19 = sadd.s32 1, %s15
    $region7: #{decoder_forward.16} parent=1 // loop_footer_branch
      %14 = sbr.rel target = $region3
    $region8: #{decoder_forward.16} parent=1 // loop_exit
      _
    %1022 = vsyncpa [#allocation3], 1
    %s1023 = scalar_lea.sflag [#allocation3], 1
    %1024 = vsyncpa %s1023, 1

// kernel: decoder_forward.18
$region0: #{decoder_forward.18}
  #allocation0 [shape = 'u32[]', space=smem, size = 0x4, offset = 0x4, fixed_abs, tag = 'smem constant byte address 0x4 - core index']
  #allocation1 [shape = 'u32[144,128]{1,0:T(1,128)}', space=vmem, size = 0x12000, scoped, tag = 'internal scratch']
  %s0 = inlined_call_operand.vmem [shape: f32[2,4,8,8], index: 0, kind: input, shape index: {}]
  %s1 = inlined_call_operand.vmem [shape: f32[2,4,8,8], index: 1, kind: input, shape index: {}]
  %s2 = inlined_call_operand.vmem [shape: f32[2,4,8,8], index: 2, kind: input, shape index: {}]
  %s3 = inlined_call_operand.vmem [shape: f32[2,1,8], index: 3, kind: input, shape index: {}]
  %s4 = inlined_call_operand.vmem [shape: f32[2,4,8,8], index: 4, kind: output, shape index: {0}]
  %s5 = inlined_call_operand.hbm [shape: f32[2,4,8,8], index: 5, kind: output, shape index: {1}]
  %6 = xla_tuple %s4, %s5
  %s7 = sld [smem:[#allocation0]]
  $region57: #{decoder_forward.18} parent=0
    _
  %s9 = ssub.s32 1, %s7
  %s10 = scalar_select 0, %s9, %s7
  $region1: #{decoder_forward.18} parent=0
    #allocation2 [shape = 'u8[32768]{0}', space=vmem, size = 0x8000, scoped, tag = 'output window, operand 1']
    #allocation3 [shape = 's32[2]{0}', space=sflag, size = 0x8, scoped, tag = 'scoped memory for decoder_forward.18']
    %11 = vsyncpa [#allocation3], 0
    %s12 = scalar_lea.sflag [#allocation3], 1
    %13 = vsyncpa %s12, 0
    loop: start=0, step=1, limit=4
    $region2: #{decoder_forward.18} parent=1 // loop_pre_header
      _
    $region3: #{decoder_forward.18} parent=1 // loop_header
      %s15 = sphi 0, %s19
      %p16 = scmp.ge.s32.totalorder %s15, 4
      %s25 = sphi 0, %s27
      %s28 = sphi 0, %s25
      %s29 = sphi 0, %s28
      %s45 = sphi 0, %s29
      %s51 = sphi 0, %s53
      %s54 = sphi 0, %s51
      %s55 = sphi 0, %s54
      %s71 = sphi 0, %s55
      %s77 = sphi 0, %s79
      %s80 = sphi 0, %s77
      %s81 = sphi 0, %s80
      %s97 = sphi 0, %s81
      %s103 = sphi 0, %s105
      %s106 = sphi 0, %s103
      %s107 = sphi 0, %s106
      %s123 = sphi 0, %s107
      %s129 = sphi 0, %s131
      %s132 = sphi 0, %s129
      %s133 = sphi 0, %s132
      %s149 = sphi 0, %s133
      %s155 = sphi 0, %s157
      %s158 = sphi 0, %s155
      %s159 = sphi 0, %s158
      %s175 = sphi 0, %s159
    $region4: #{decoder_forward.18} parent=1 // loop_header_branch
      %18 = sbr.rel (%p16) target = $region8
    $region5: #{decoder_forward.18} parent=1 // loop_body
      %s20 = ssub.s32 %s15, 1
      %s21 = ssub.s32 %s15, 2
      %s22 = sadd.s32 %s15, 1
      %s23 = ssub.s32 %s15, %s22
      %p24 = scmp.eq.s32.totalorder %s23, 0
      %s26 = sadd.s32 %s25, 1
      %s27 = scalar_select %p24, %s25, %s26
      %p30 = pneg %p24
      %p31 = scmp.eq.s32.totalorder %s15, 1
      %p32 = por %p30, %p31
      %p33 = scmp.ne.s32.totalorder %s25, %s28
      %p34 = scmp.eq.s32.totalorder %s15, 0
      %p35 = por %p33, %p34
      %p36 = scmp.ne.s32.totalorder %s25, %s28
      %p37 = scmp.eq.s32.totalorder %s20, 1
      %p38 = por %p36, %p37
      %p39 = scmp.ne.s32.totalorder %s28, %s29
      %p40 = scmp.eq.s32.totalorder %s20, 0
      %p41 = por %p39, %p40
      %p42 = scmp.ne.s32.totalorder %s28, %s29
      %p43 = scmp.eq.s32.totalorder %s21, 1
      %p44 = por %p42, %p43
      %p46 = scmp.ne.s32.totalorder %s29, %s45
      %p47 = scmp.eq.s32.totalorder %s21, 0
      %p48 = por %p46, %p47
      %s49 = ssub.s32 %s15, %s22
      %p50 = scmp.eq.s32.totalorder %s49, 0
      %s52 = sadd.s32 %s51, 1
      %s53 = scalar_select %p50, %s51, %s52
      %p56 = pneg %p50
      %p57 = scmp.eq.s32.totalorder %s15, 1
      %p58 = por %p56, %p57
      %p59 = scmp.ne.s32.totalorder %s51, %s54
      %p60 = scmp.eq.s32.totalorder %s15, 0
      %p61 = por %p59, %p60
      %p62 = scmp.ne.s32.totalorder %s51, %s54
      %p63 = scmp.eq.s32.totalorder %s20, 1
      %p64 = por %p62, %p63
      %p65 = scmp.ne.s32.totalorder %s54, %s55
      %p66 = scmp.eq.s32.totalorder %s20, 0
      %p67 = por %p65, %p66
      %p68 = scmp.ne.s32.totalorder %s54, %s55
      %p69 = scmp.eq.s32.totalorder %s21, 1
      %p70 = por %p68, %p69
      %p72 = scmp.ne.s32.totalorder %s55, %s71
      %p73 = scmp.eq.s32.totalorder %s21, 0
      %p74 = por %p72, %p73
      %s75 = ssub.s32 %s15, %s22
      %p76 = scmp.eq.s32.totalorder %s75, 0
      %s78 = sadd.s32 %s77, 1
      %s79 = scalar_select %p76, %s77, %s78
      %p82 = pneg %p76
      %p83 = scmp.eq.s32.totalorder %s15, 1
      %p84 = por %p82, %p83
      %p85 = scmp.ne.s32.totalorder %s77, %s80
      %p86 = scmp.eq.s32.totalorder %s15, 0
      %p87 = por %p85, %p86
      %p88 = scmp.ne.s32.totalorder %s77, %s80
      %p89 = scmp.eq.s32.totalorder %s20, 1
      %p90 = por %p88, %p89
      %p91 = scmp.ne.s32.totalorder %s80, %s81
      %p92 = scmp.eq.s32.totalorder %s20, 0
      %p93 = por %p91, %p92
      %p94 = scmp.ne.s32.totalorder %s80, %s81
      %p95 = scmp.eq.s32.totalorder %s21, 1
      %p96 = por %p94, %p95
      %p98 = scmp.ne.s32.totalorder %s81, %s97
      %p99 = scmp.eq.s32.totalorder %s21, 0
      %p100 = por %p98, %p99
      %s101 = ssub.s32 %s15, %s22
      %p102 = scmp.eq.s32.totalorder %s101, 0
      %s104 = sadd.s32 %s103, 1
      %s105 = scalar_select %p102, %s103, %s104
      %p108 = pneg %p102
      %p109 = scmp.eq.s32.totalorder %s15, 1
      %p110 = por %p108, %p109
      %p111 = scmp.ne.s32.totalorder %s103, %s106
      %p112 = scmp.eq.s32.totalorder %s15, 0
      %p113 = por %p111, %p112
      %p114 = scmp.ne.s32.totalorder %s103, %s106
      %p115 = scmp.eq.s32.totalorder %s20, 1
      %p116 = por %p114, %p115
      %p117 = scmp.ne.s32.totalorder %s106, %s107
      %p118 = scmp.eq.s32.totalorder %s20, 0
      %p119 = por %p117, %p118
      %p120 = scmp.ne.s32.totalorder %s106, %s107
      %p121 = scmp.eq.s32.totalorder %s21, 1
      %p122 = por %p120, %p121
      %p124 = scmp.ne.s32.totalorder %s107, %s123
      %p125 = scmp.eq.s32.totalorder %s21, 0
      %p126 = por %p124, %p125
      %s127 = ssub.s32 %s15, %s22
      %p128 = scmp.eq.s32.totalorder %s127, 0
      %s130 = sadd.s32 %s129, 1
      %s131 = scalar_select %p128, %s129, %s130
      %p134 = pneg %p128
      %p135 = scmp.eq.s32.totalorder %s15, 1
      %p136 = por %p134, %p135
      %p137 = scmp.ne.s32.totalorder %s129, %s132
      %p138 = scmp.eq.s32.totalorder %s15, 0
      %p139 = por %p137, %p138
      %p140 = scmp.ne.s32.totalorder %s129, %s132
      %p141 = scmp.eq.s32.totalorder %s20, 1
      %p142 = por %p140, %p141
      %p143 = scmp.ne.s32.totalorder %s132, %s133
      %p144 = scmp.eq.s32.totalorder %s20, 0
      %p145 = por %p143, %p144
      %p146 = scmp.ne.s32.totalorder %s132, %s133
      %p147 = scmp.eq.s32.totalorder %s21, 1
      %p148 = por %p146, %p147
      %p150 = scmp.ne.s32.totalorder %s133, %s149
      %p151 = scmp.eq.s32.totalorder %s21, 0
      %p152 = por %p150, %p151
      %s153 = ssub.s32 %s15, %s22
      %p154 = scmp.eq.s32.totalorder %s153, 0
      %s156 = sadd.s32 %s155, 1
      %s157 = scalar_select %p154, %s155, %s156
      %p160 = pneg %p154
      %p161 = scmp.eq.s32.totalorder %s15, 1
      %p162 = por %p160, %p161
      %p163 = scmp.ne.s32.totalorder %s155, %s158
      %p164 = scmp.eq.s32.totalorder %s15, 0
      %p165 = por %p163, %p164
      %p166 = scmp.ne.s32.totalorder %s155, %s158
      %p167 = scmp.eq.s32.totalorder %s20, 1
      %p168 = por %p166, %p167
      %p169 = scmp.ne.s32.totalorder %s158, %s159
      %p170 = scmp.eq.s32.totalorder %s20, 0
      %p171 = por %p169, %p170
      %p172 = scmp.ne.s32.totalorder %s158, %s159
      %p173 = scmp.eq.s32.totalorder %s21, 1
      %p174 = por %p172, %p173
      %p176 = scmp.ne.s32.totalorder %s159, %s175
      %p177 = scmp.eq.s32.totalorder %s21, 0
      %p178 = por %p176, %p177
      %p179 = scmp.le.s32.totalorder 1, %s15
      %p180 = scmp.lt.s32.totalorder %s15, 3
      %p181 = pnand %p179, %p180
      %p182 = pneg %p181
      // Predicated region
      $region9: #{decoder_forward.18} parent=5 // pred_check
        _
      $region10: #{decoder_forward.18} parent=5 // pred_check_branch
        %184 = sbr.rel (%p181) target = $region12
      $region11: #{decoder_forward.18} parent=5 // pred_region
        %s185 = ssub.s32 %s15, 1
      $region12: #{decoder_forward.18} parent=5 // pred_fallthru
        _
      %p186 = scmp.lt.s32.totalorder %s15, 2
      // Predicated region
      $region13: #{decoder_forward.18} parent=5 // pred_check
        %p187 = pneg %p186
      $region14: #{decoder_forward.18} parent=5 // pred_check_branch
        %189 = sbr.rel (%p187) target = $region16
      $region15: #{decoder_forward.18} parent=5 // pred_region
        // Predicated region
        $region17: #{decoder_forward.18} parent=15 // pred_check
          %p190 = pneg %p35
        $region18: #{decoder_forward.18} parent=15 // pred_check_branch
          %192 = sbr.rel (%p190) target = $region20
        $region19: #{decoder_forward.18} parent=15 // pred_region
          %p193 = scmp.lt.s32.totalorder %s15, 1
          %s194 = scalar_select %p193, %s15, 1
          %s195 = smul.addr %s194, 4
          %s196 = smul.addr %s195, 8
          %s197 = scalar_lea.vmem %s0, %s196
        $region20: #{decoder_forward.18} parent=15 // pred_fallthru
          _
        // Predicated region
        $region21: #{decoder_forward.18} parent=15 // pred_check
          %p198 = pneg %p61
        $region22: #{decoder_forward.18} parent=15 // pred_check_branch
          %200 = sbr.rel (%p198) target = $region24
        $region23: #{decoder_forward.18} parent=15 // pred_region
          %p201 = scmp.lt.s32.totalorder %s15, 1
          %s202 = scalar_select %p201, %s15, 1
          %s203 = smul.addr %s202, 4
          %s204 = smul.addr %s203, 8
          %s205 = scalar_lea.vmem %s1, %s204
        $region24: #{decoder_forward.18} parent=15 // pred_fallthru
          _
        // Predicated region
        $region25: #{decoder_forward.18} parent=15 // pred_check
          %p206 = pneg %p87
        $region26: #{decoder_forward.18} parent=15 // pred_check_branch
          %208 = sbr.rel (%p206) target = $region28
        $region27: #{decoder_forward.18} parent=15 // pred_region
          %p209 = scmp.lt.s32.totalorder %s15, 1
          %s210 = scalar_select %p209, %s15, 1
          %s211 = smul.addr %s210, 4
          %s212 = smul.addr %s211, 8
          %s213 = scalar_lea.vmem %s2, %s212
        $region28: #{decoder_forward.18} parent=15 // pred_fallthru
          _
        // Predicated region
        $region29: #{decoder_forward.18} parent=15 // pred_check
          %p214 = pneg %p113
        $region30: #{decoder_forward.18} parent=15 // pred_check_branch
          %216 = sbr.rel (%p214) target = $region32
        $region31: #{decoder_forward.18} parent=15 // pred_region
          %p217 = scmp.lt.s32.totalorder %s15, 1
          %s218 = scalar_select %p217, %s15, 1
          %s219 = scalar_lea.vmem %s3, %s218
        $region32: #{decoder_forward.18} parent=15 // pred_fallthru
          _
      $region16: #{decoder_forward.18} parent=5 // pred_fallthru
        _
      %p220 = scmp.le.s32.totalorder 1, %s15
      %p221 = scmp.lt.s32.totalorder %s15, 3
      %p222 = pnand %p220, %p221
      %p223 = pneg %p222
      // Predicated region
      $region33: #{decoder_forward.18} parent=5 // pred_check
        _
      $region34: #{decoder_forward.18} parent=5 // pred_check_branch
        %225 = sbr.rel (%p222) target = $region36
      $region35: #{decoder_forward.18} parent=5 // pred_region
        %s226 = ssub.s32 %s15, 1
        %p227 = scmp.lt.s32.totalorder %s20, 1
        %s228 = scalar_select %p227, %s20, 1
        %s229 = smul.addr %s228, 4
        %s230 = smul.addr %s229, 8
        %s231 = scalar_lea.vmem %s0, %s230
        %p232 = pneg %p41
        %p233 = pneg %p38
        %p234 = scmp.lt.s32.totalorder %s20, 1
        %s235 = scalar_select %p234, %s20, 1
        %s236 = smul.addr %s235, 4
        %s237 = smul.addr %s236, 8
        %s238 = scalar_lea.vmem %s1, %s237
        %p239 = pneg %p67
        %p240 = pneg %p64
        %p241 = scmp.lt.s32.totalorder %s20, 1
        %s242 = scalar_select %p241, %s20, 1
        %s243 = smul.addr %s242, 4
        %s244 = smul.addr %s243, 8
        %s245 = scalar_lea.vmem %s2, %s244
        %p246 = pneg %p93
        %p247 = pneg %p90
        %p248 = scmp.lt.s32.totalorder %s20, 1
        %s249 = scalar_select %p248, %s20, 1
        %s250 = scalar_lea.vmem %s3, %s249
        %p251 = pneg %p119
        %p252 = pneg %p116
        %p253 = pneg %p145
        %p254 = pneg %p142
        %p255 = scmp.lt.s32.totalorder %s20, 1
        %s256 = scalar_select %p255, %s20, 1
        %s257 = smul.addr %s256, 4
        %s258 = smul.addr %s257, 8
        %s259 = scalar_lea.vmem %s4, %s258
        %p260 = pneg %p171
        %p261 = pneg %p168
        %s262 = sand.u32 %s158, 1
        %s263 = scalar_lea.sflag [#allocation3], %s262
        %s264 = sand.u32 %s158, 1
        %s265 = smul.addr %s264, 32
        %s266 = scalar_lea.vmem [#allocation2], %s265
        %p267 = scmp.lt.s32.totalorder %s20, 1
        %s268 = scalar_select %p267, %s20, 1
        %s269 = smul.addr %s268, 4
        %s270 = smul.addr %s269, 8
        %s271 = scalar_lea.vmem %s0, %s270
        %p272 = scmp.lt.s32.totalorder %s20, 1
        %s273 = scalar_select %p272, %s20, 1
        %s274 = smul.addr %s273, 4
        %s275 = smul.addr %s274, 8
        %s276 = scalar_lea.vmem %s1, %s275
        %p277 = scmp.lt.s32.totalorder %s20, 1
        %s278 = scalar_select %p277, %s20, 1
        %s279 = smul.addr %s278, 4
        %s280 = smul.addr %s279, 8
        %s281 = scalar_lea.vmem %s2, %s280
        %p282 = scmp.lt.s32.totalorder %s20, 1
        %s283 = scalar_select %p282, %s20, 1
        %s284 = scalar_lea.vmem %s3, %s283
        %p285 = scmp.lt.s32.totalorder %s20, 1
        %s286 = scalar_select %p285, %s20, 1
        %s287 = smul.addr %s286, 4
        %s288 = smul.addr %s287, 8
        %s289 = scalar_lea.vmem %s4, %s288
        %v290 = vld [vmem:[%s271] sm:$0xff]
        %v291 = vld [vmem:[%s271 + $0x8] sm:$0xff]
        %v292 = vld [vmem:[%s271 + $0x10] sm:$0xff]
        %v293 = vld [vmem:[%s271 + $0x18] sm:$0xff]
        %v294 = vld [vmem:[%s276] sm:$0xff]
        %v295 = vld [vmem:[%s276 + $0x8] sm:$0xff]
        %v296 = vld [vmem:[%s276 + $0x10] sm:$0xff]
        %v297 = vld [vmem:[%s276 + $0x18] sm:$0xff]
        %v298 = vld [vmem:[%s281] sm:$0xff]
        %v299 = vld [vmem:[%s281 + $0x8] sm:$0xff]
        %v300 = vld [vmem:[%s281 + $0x10] sm:$0xff]
        %v301 = vld [vmem:[%s281 + $0x18] sm:$0xff]
        %v302 = vld [vmem:[%s284] sm:$0x1]
        %vm303 = vcmask 64512
        %v305 = vsel %vm303, %v290, 0
        %v308 = vsel %vm303, %v294, 0
        %310 = vmatprep.subr.mxu0 0.0
        %311 = vmatpush1.xpose.msra.mxu0 %v308
        %312 = vmatprep.subr.mxu0 0.0
        %313 = vmatpush1.xpose.msra.mxu0 0.0
        %314 = vmatprep.subr.mxu0 0.0
        %315 = vmatpush1.xpose.msra.mxu0 0.0
        %316 = vmatprep.subr.mxu0 0.0
        %317 = vmatpush1.xpose.msra.mxu0 0.0
        %318 = vmatprep.subr.mxu0 0.0
        %319 = vmatpush1.xpose.msra.mxu0 0.0
        %320 = vmatprep.subr.mxu0 0.0
        %321 = vmatpush1.xpose.msra.mxu0 0.0
        %322 = vmatprep.subr.mxu0 0.0
        %323 = vmatpush1.xpose.msra.mxu0 0.0
        %324 = vmatprep.subr.mxu0 0.0
        %325 = vmatpush1.xpose.msra.mxu0 0.0
        %326 = vmatprep.subr.mxu0 0.0
        %327 = vmatpush1.xpose.msra.mxu0 0.0
        %328 = vmatprep.subr.mxu0 0.0
        %329 = vmatpush1.xpose.msra.mxu0 0.0
        %330 = vmatprep.subr.mxu0 0.0
        %331 = vmatpush1.xpose.msra.mxu0 0.0
        %332 = vmatprep.subr.mxu0 0.0
        %333 = vmatpush1.xpose.msra.mxu0 0.0
        %334 = vmatprep.subr.mxu0 0.0
        %335 = vmatpush1.xpose.msra.mxu0 0.0
        %336 = vmatprep.subr.mxu0 0.0
        %337 = vmatpush1.xpose.msra.mxu0 0.0
        %338 = vmatprep.subr.mxu0 0.0
        %339 = vmatpush1.xpose.msra.mxu0 0.0
        %340 = vmatprep.subr.mxu0 0.0
        %341 = vmatpush1.xpose.msra.mxu0 0.0
        %342 = vmatprep.subr.mxu0 0.0
        %343 = vmatpush1.xpose.msra.mxu0 0.0
        %344 = vmatprep.subr.mxu0 0.0
        %345 = vmatpush1.xpose.msra.mxu0 0.0
        %346 = vmatprep.subr.mxu0 0.0
        %347 = vmatpush1.xpose.msra.mxu0 0.0
        %348 = vmatprep.subr.mxu0 0.0
        %349 = vmatpush1.xpose.msra.mxu0 0.0
        %350 = vmatprep.subr.mxu0 0.0
        %351 = vmatpush1.xpose.msra.mxu0 0.0
        %352 = vmatprep.subr.mxu0 0.0
        %353 = vmatpush1.xpose.msra.mxu0 0.0
        %354 = vmatprep.subr.mxu0 0.0
        %355 = vmatpush1.xpose.msra.mxu0 0.0
        %356 = vmatprep.subr.mxu0 0.0
        %357 = vmatpush1.xpose.msra.mxu0 0.0
        %358 = vmatprep.subr.mxu0 0.0
        %359 = vmatpush1.xpose.msra.mxu0 0.0
        %360 = vmatprep.subr.mxu0 0.0
        %361 = vmatpush1.xpose.msra.mxu0 0.0
        %362 = vmatprep.subr.mxu0 0.0
        %363 = vmatpush1.xpose.msra.mxu0 0.0
        %364 = vmatprep.subr.mxu0 0.0
        %365 = vmatpush1.xpose.msra.mxu0 0.0
        %366 = vmatprep.subr.mxu0 0.0
        %367 = vmatpush1.xpose.msra.mxu0 0.0
        %368 = vmatprep.subr.mxu0 0.0
        %369 = vmatpush1.xpose.msra.mxu0 0.0
        %370 = vmatprep.subr.mxu0 0.0
        %371 = vmatpush1.xpose.msra.mxu0 0.0
        %372 = vmatprep.subr.mxu0 0.0
        %373 = vmatpush1.xpose.msra.mxu0 0.0
        %374 = vmatprep.mubr.f32.mxu0 0.0
        %375 = vmatmul.mubr.f32.gmra.mrb[0].mxu0 %v305
        %v376 = vpop.f32.mrb[0].mxu0
        %v377 = vadd.f32 0.0, %v376
        %v378 = vpop.f32.mrb[0].mxu0
        %379 = vdwg.mxu0
        %v381 = vsel %vm303, %v291, 0
        %v384 = vsel %vm303, %v295, 0
        %386 = vmatprep.subr.mxu0 0.0
        %387 = vmatpush1.xpose.msra.mxu0 %v384
        %388 = vmatprep.subr.mxu0 0.0
        %389 = vmatpush1.xpose.msra.mxu0 0.0
        %390 = vmatprep.subr.mxu0 0.0
        %391 = vmatpush1.xpose.msra.mxu0 0.0
        %392 = vmatprep.subr.mxu0 0.0
        %393 = vmatpush1.xpose.msra.mxu0 0.0
        %394 = vmatprep.subr.mxu0 0.0
        %395 = vmatpush1.xpose.msra.mxu0 0.0
        %396 = vmatprep.subr.mxu0 0.0
        %397 = vmatpush1.xpose.msra.mxu0 0.0
        %398 = vmatprep.subr.mxu0 0.0
        %399 = vmatpush1.xpose.msra.mxu0 0.0
        %400 = vmatprep.subr.mxu0 0.0
        %401 = vmatpush1.xpose.msra.mxu0 0.0
        %402 = vmatprep.subr.mxu0 0.0
        %403 = vmatpush1.xpose.msra.mxu0 0.0
        %404 = vmatprep.subr.mxu0 0.0
        %405 = vmatpush1.xpose.msra.mxu0 0.0
        %406 = vmatprep.subr.mxu0 0.0
        %407 = vmatpush1.xpose.msra.mxu0 0.0
        %408 = vmatprep.subr.mxu0 0.0
        %409 = vmatpush1.xpose.msra.mxu0 0.0
        %410 = vmatprep.subr.mxu0 0.0
        %411 = vmatpush1.xpose.msra.mxu0 0.0
        %412 = vmatprep.subr.mxu0 0.0
        %413 = vmatpush1.xpose.msra.mxu0 0.0
        %414 = vmatprep.subr.mxu0 0.0
        %415 = vmatpush1.xpose.msra.mxu0 0.0
        %416 = vmatprep.subr.mxu0 0.0
        %417 = vmatpush1.xpose.msra.mxu0 0.0
        %418 = vmatprep.subr.mxu0 0.0
        %419 = vmatpush1.xpose.msra.mxu0 0.0
        %420 = vmatprep.subr.mxu0 0.0
        %421 = vmatpush1.xpose.msra.mxu0 0.0
        %422 = vmatprep.subr.mxu0 0.0
        %423 = vmatpush1.xpose.msra.mxu0 0.0
        %424 = vmatprep.subr.mxu0 0.0
        %425 = vmatpush1.xpose.msra.mxu0 0.0
        %426 = vmatprep.subr.mxu0 0.0
        %427 = vmatpush1.xpose.msra.mxu0 0.0
        %428 = vmatprep.subr.mxu0 0.0
        %429 = vmatpush1.xpose.msra.mxu0 0.0
        %430 = vmatprep.subr.mxu0 0.0
        %431 = vmatpush1.xpose.msra.mxu0 0.0
        %432 = vmatprep.subr.mxu0 0.0
        %433 = vmatpush1.xpose.msra.mxu0 0.0
        %434 = vmatprep.subr.mxu0 0.0
        %435 = vmatpush1.xpose.msra.mxu0 0.0
        %436 = vmatprep.subr.mxu0 0.0
        %437 = vmatpush1.xpose.msra.mxu0 0.0
        %438 = vmatprep.subr.mxu0 0.0
        %439 = vmatpush1.xpose.msra.mxu0 0.0
        %440 = vmatprep.subr.mxu0 0.0
        %441 = vmatpush1.xpose.msra.mxu0 0.0
        %442 = vmatprep.subr.mxu0 0.0
        %443 = vmatpush1.xpose.msra.mxu0 0.0
        %444 = vmatprep.subr.mxu0 0.0
        %445 = vmatpush1.xpose.msra.mxu0 0.0
        %446 = vmatprep.subr.mxu0 0.0
        %447 = vmatpush1.xpose.msra.mxu0 0.0
        %448 = vmatprep.subr.mxu0 0.0
        %449 = vmatpush1.xpose.msra.mxu0 0.0
        %450 = vmatprep.mubr.f32.mxu0 0.0
        %451 = vmatmul.mubr.f32.gmra.mrb[0].mxu0 %v381
        %v452 = vpop.f32.mrb[0].mxu0
        %v453 = vadd.f32 0.0, %v452
        %v454 = vpop.f32.mrb[0].mxu0
        %455 = vdwg.mxu0
        %v457 = vsel %vm303, %v292, 0
        %v460 = vsel %vm303, %v296, 0
        %462 = vmatprep.subr.mxu0 0.0
        %463 = vmatpush1.xpose.msra.mxu0 %v460
        %464 = vmatprep.subr.mxu0 0.0
        %465 = vmatpush1.xpose.msra.mxu0 0.0
        %466 = vmatprep.subr.mxu0 0.0
        %467 = vmatpush1.xpose.msra.mxu0 0.0
        %468 = vmatprep.subr.mxu0 0.0
        %469 = vmatpush1.xpose.msra.mxu0 0.0
        %470 = vmatprep.subr.mxu0 0.0
        %471 = vmatpush1.xpose.msra.mxu0 0.0
        %472 = vmatprep.subr.mxu0 0.0
        %473 = vmatpush1.xpose.msra.mxu0 0.0
        %474 = vmatprep.subr.mxu0 0.0
        %475 = vmatpush1.xpose.msra.mxu0 0.0
        %476 = vmatprep.subr.mxu0 0.0
        %477 = vmatpush1.xpose.msra.mxu0 0.0
        %478 = vmatprep.subr.mxu0 0.0
        %479 = vmatpush1.xpose.msra.mxu0 0.0
        %480 = vmatprep.subr.mxu0 0.0
        %481 = vmatpush1.xpose.msra.mxu0 0.0
        %482 = vmatprep.subr.mxu0 0.0
        %483 = vmatpush1.xpose.msra.mxu0 0.0
        %484 = vmatprep.subr.mxu0 0.0
        %485 = vmatpush1.xpose.msra.mxu0 0.0
        %486 = vmatprep.subr.mxu0 0.0
        %487 = vmatpush1.xpose.msra.mxu0 0.0
        %488 = vmatprep.subr.mxu0 0.0
        %489 = vmatpush1.xpose.msra.mxu0 0.0
        %490 = vmatprep.subr.mxu0 0.0
        %491 = vmatpush1.xpose.msra.mxu0 0.0
        %492 = vmatprep.subr.mxu0 0.0
        %493 = vmatpush1.xpose.msra.mxu0 0.0
        %494 = vmatprep.subr.mxu0 0.0
        %495 = vmatpush1.xpose.msra.mxu0 0.0
        %496 = vmatprep.subr.mxu0 0.0
        %497 = vmatpush1.xpose.msra.mxu0 0.0
        %498 = vmatprep.subr.mxu0 0.0
        %499 = vmatpush1.xpose.msra.mxu0 0.0
        %500 = vmatprep.subr.mxu0 0.0
        %501 = vmatpush1.xpose.msra.mxu0 0.0
        %502 = vmatprep.subr.mxu0 0.0
        %503 = vmatpush1.xpose.msra.mxu0 0.0
        %504 = vmatprep.subr.mxu0 0.0
        %505 = vmatpush1.xpose.msra.mxu0 0.0
        %506 = vmatprep.subr.mxu0 0.0
        %507 = vmatpush1.xpose.msra.mxu0 0.0
        %508 = vmatprep.subr.mxu0 0.0
        %509 = vmatpush1.xpose.msra.mxu0 0.0
        %510 = vmatprep.subr.mxu0 0.0
        %511 = vmatpush1.xpose.msra.mxu0 0.0
        %512 = vmatprep.subr.mxu0 0.0
        %513 = vmatpush1.xpose.msra.mxu0 0.0
        %514 = vmatprep.subr.mxu0 0.0
        %515 = vmatpush1.xpose.msra.mxu0 0.0
        %516 = vmatprep.subr.mxu0 0.0
        %517 = vmatpush1.xpose.msra.mxu0 0.0
        %518 = vmatprep.subr.mxu0 0.0
        %519 = vmatpush1.xpose.msra.mxu0 0.0
        %520 = vmatprep.subr.mxu0 0.0
        %521 = vmatpush1.xpose.msra.mxu0 0.0
        %522 = vmatprep.subr.mxu0 0.0
        %523 = vmatpush1.xpose.msra.mxu0 0.0
        %524 = vmatprep.subr.mxu0 0.0
        %525 = vmatpush1.xpose.msra.mxu0 0.0
        %526 = vmatprep.mubr.f32.mxu0 0.0
        %527 = vmatmul.mubr.f32.gmra.mrb[0].mxu0 %v457
        %v528 = vpop.f32.mrb[0].mxu0
        %v529 = vadd.f32 0.0, %v528
        %v530 = vpop.f32.mrb[0].mxu0
        %531 = vdwg.mxu0
        %v533 = vsel %vm303, %v293, 0
        %v536 = vsel %vm303, %v297, 0
        %538 = vmatprep.subr.mxu0 0.0
        %539 = vmatpush1.xpose.msra.mxu0 %v536
        %540 = vmatprep.subr.mxu0 0.0
        %541 = vmatpush1.xpose.msra.mxu0 0.0
        %542 = vmatprep.subr.mxu0 0.0
        %543 = vmatpush1.xpose.msra.mxu0 0.0
        %544 = vmatprep.subr.mxu0 0.0
        %545 = vmatpush1.xpose.msra.mxu0 0.0
        %546 = vmatprep.subr.mxu0 0.0
        %547 = vmatpush1.xpose.msra.mxu0 0.0
        %548 = vmatprep.subr.mxu0 0.0
        %549 = vmatpush1.xpose.msra.mxu0 0.0
        %550 = vmatprep.subr.mxu0 0.0
        %551 = vmatpush1.xpose.msra.mxu0 0.0
        %552 = vmatprep.subr.mxu0 0.0
        %553 = vmatpush1.xpose.msra.mxu0 0.0
        %554 = vmatprep.subr.mxu0 0.0
        %555 = vmatpush1.xpose.msra.mxu0 0.0
        %556 = vmatprep.subr.mxu0 0.0
        %557 = vmatpush1.xpose.msra.mxu0 0.0
        %558 = vmatprep.subr.mxu0 0.0
        %559 = vmatpush1.xpose.msra.mxu0 0.0
        %560 = vmatprep.subr.mxu0 0.0
        %561 = vmatpush1.xpose.msra.mxu0 0.0
        %562 = vmatprep.subr.mxu0 0.0
        %563 = vmatpush1.xpose.msra.mxu0 0.0
        %564 = vmatprep.subr.mxu0 0.0
        %565 = vmatpush1.xpose.msra.mxu0 0.0
        %566 = vmatprep.subr.mxu0 0.0
        %567 = vmatpush1.xpose.msra.mxu0 0.0
        %568 = vmatprep.subr.mxu0 0.0
        %569 = vmatpush1.xpose.msra.mxu0 0.0
        %570 = vmatprep.subr.mxu0 0.0
        %571 = vmatpush1.xpose.msra.mxu0 0.0
        %572 = vmatprep.subr.mxu0 0.0
        %573 = vmatpush1.xpose.msra.mxu0 0.0
        %574 = vmatprep.subr.mxu0 0.0
        %575 = vmatpush1.xpose.msra.mxu0 0.0
        %576 = vmatprep.subr.mxu0 0.0
        %577 = vmatpush1.xpose.msra.mxu0 0.0
        %578 = vmatprep.subr.mxu0 0.0
        %579 = vmatpush1.xpose.msra.mxu0 0.0
        %580 = vmatprep.subr.mxu0 0.0
        %581 = vmatpush1.xpose.msra.mxu0 0.0
        %582 = vmatprep.subr.mxu0 0.0
        %583 = vmatpush1.xpose.msra.mxu0 0.0
        %584 = vmatprep.subr.mxu0 0.0
        %585 = vmatpush1.xpose.msra.mxu0 0.0
        %586 = vmatprep.subr.mxu0 0.0
        %587 = vmatpush1.xpose.msra.mxu0 0.0
        %588 = vmatprep.subr.mxu0 0.0
        %589 = vmatpush1.xpose.msra.mxu0 0.0
        %590 = vmatprep.subr.mxu0 0.0
        %591 = vmatpush1.xpose.msra.mxu0 0.0
        %592 = vmatprep.subr.mxu0 0.0
        %593 = vmatpush1.xpose.msra.mxu0 0.0
        %594 = vmatprep.subr.mxu0 0.0
        %595 = vmatpush1.xpose.msra.mxu0 0.0
        %596 = vmatprep.subr.mxu0 0.0
        %597 = vmatpush1.xpose.msra.mxu0 0.0
        %598 = vmatprep.subr.mxu0 0.0
        %599 = vmatpush1.xpose.msra.mxu0 0.0
        %600 = vmatprep.subr.mxu0 0.0
        %601 = vmatpush1.xpose.msra.mxu0 0.0
        %602 = vmatprep.mubr.f32.mxu0 0.0
        %603 = vmatmul.mubr.f32.gmra.mrb[0].mxu0 %v533
        %v604 = vpop.f32.mrb[0].mxu0
        %v605 = vadd.f32 0.0, %v604
        %v606 = vpop.f32.mrb[0].mxu0
        %607 = vdwg.mxu0
        %v608 = vrsqrt.pop %v377
        %v609 = vmul.f32 %v377, %v608
        %vm610 = vcmp.eq.f32.partialorder %v377, inf
        %v611 = vsel %vm610, %v377, %v609
        %vm612 = vcmp.eq.f32.partialorder %v377, 0.0
        %v613 = vand.u32 %v377, 2147483648
        %v614 = vsel %vm612, %v613, %v611
        %v615 = vrsqrt.pop %v453
        %v616 = vmul.f32 %v453, %v615
        %vm617 = vcmp.eq.f32.partialorder %v453, inf
        %v618 = vsel %vm617, %v453, %v616
        %vm619 = vcmp.eq.f32.partialorder %v453, 0.0
        %v620 = vand.u32 %v453, 2147483648
        %v621 = vsel %vm619, %v620, %v618
        %v622 = vrsqrt.pop %v529
        %v623 = vmul.f32 %v529, %v622
        %vm624 = vcmp.eq.f32.partialorder %v529, inf
        %v625 = vsel %vm624, %v529, %v623
        %vm626 = vcmp.eq.f32.partialorder %v529, 0.0
        %v627 = vand.u32 %v529, 2147483648
        %v628 = vsel %vm626, %v627, %v625
        %v629 = vrsqrt.pop %v605
        %v630 = vmul.f32 %v605, %v629
        %vm631 = vcmp.eq.f32.partialorder %v605, inf
        %v632 = vsel %vm631, %v605, %v630
        %vm633 = vcmp.eq.f32.partialorder %v605, 0.0
        %v634 = vand.u32 %v605, 2147483648
        %v635 = vsel %vm633, %v634, %v632
        %v636 = vmul.f32 %v302, -1e+09
        %v638 = vlaneseq
        %v639 = vshrl.u32 %v638, 7
        %v640 = vsub.s32 0, %v639
        %v641 = vrot.slane %v636, %v640
        %v643 = vadd.f32 %v614, %v641
        %v644 = vadd.f32 %v621, %v641
        %v645 = vadd.f32 %v628, %v641
        %v646 = vadd.f32 %v635, %v641
        %v647 = vsel %vm303, %v643, -inf
        %648 = vmax.xlane.f32.xlu0 %v647
        %v649 = vpop.xlane.xlu0 %648
        %v650 = vsel %vm303, %v644, -inf
        %651 = vmax.xlane.f32.xlu0 %v650
        %v652 = vpop.xlane.xlu0 %651
        %v653 = vsel %vm303, %v645, -inf
        %654 = vmax.xlane.f32.xlu0 %v653
        %v655 = vpop.xlane.xlu0 %654
        %v656 = vsel %vm303, %v646, -inf
        %657 = vmax.xlane.f32.xlu0 %v656
        %v658 = vpop.xlane.xlu0 %657
        %v659 = vsub.f32 %v643, %v649
        %v660 = vsub.f32 %v644, %v652
        %v661 = vsub.f32 %v645, %v655
        %v662 = vsub.f32 %v646, %v658
        %v663 = vmul.f32 %v659, 1.442695
        %v664 = vpow.pop %v663
        %v665 = vmul.f32 %v660, 1.442695
        %v666 = vpow.pop %v665
        %v667 = vmul.f32 %v661, 1.442695
        %v668 = vpow.pop %v667
        %v669 = vmul.f32 %v662, 1.442695
        %v670 = vpow.pop %v669
        %v671 = vsel %vm303, %v664, 0.0
        %672 = vadd.xlane.f32.xlu0 %v671
        %v673 = vpop.xlane.xlu0 %672
        %v674 = vsel %vm303, %v666, 0.0
        %675 = vadd.xlane.f32.xlu0 %v674
        %v676 = vpop.xlane.xlu0 %675
        %v677 = vsel %vm303, %v668, 0.0
        %678 = vadd.xlane.f32.xlu0 %v677
        %v679 = vpop.xlane.xlu0 %678
        %v680 = vsel %vm303, %v670, 0.0
        %681 = vadd.xlane.f32.xlu0 %v680
        %v682 = vpop.xlane.xlu0 %681
        %v683 = vrcp.pop %v673
        %v684 = vrcp.pop %v676
        %v685 = vrcp.pop %v679
        %v686 = vrcp.pop %v682
        %v687 = vmul.f32 %v664, %v683
        %v688 = vmul.f32 %v666, %v684
        %v689 = vmul.f32 %v668, %v685
        %v690 = vmul.f32 %v670, %v686
        %v692 = vsel %vm303, %v687, 0
        %694 = vmatprep.subr.mxu0 0.0
        %695 = vmatpush1.msra.mxu0 %v298
        %696 = vmatprep.subr.mxu0 0.0
        %697 = vmatpush1.msra.mxu0 0.0
        %698 = vmatprep.subr.mxu0 0.0
        %699 = vmatpush1.msra.mxu0 0.0
        %700 = vmatprep.subr.mxu0 0.0
        %701 = vmatpush1.msra.mxu0 0.0
        %702 = vmatprep.subr.mxu0 0.0
        %703 = vmatpush1.msra.mxu0 0.0
        %704 = vmatprep.subr.mxu0 0.0
        %705 = vmatpush1.msra.mxu0 0.0
        %706 = vmatprep.subr.mxu0 0.0
        %707 = vmatpush1.msra.mxu0 0.0
        %708 = vmatprep.subr.mxu0 0.0
        %709 = vmatpush1.msra.mxu0 0.0
        %710 = vmatprep.subr.mxu0 0.0
        %711 = vmatpush1.msra.mxu0 0.0
        %712 = vmatprep.subr.mxu0 0.0
        %713 = vmatpush1.msra.mxu0 0.0
        %714 = vmatprep.subr.mxu0 0.0
        %715 = vmatpush1.msra.mxu0 0.0
        %716 = vmatprep.subr.mxu0 0.0
        %717 = vmatpush1.msra.mxu0 0.0
        %718 = vmatprep.subr.mxu0 0.0
        %719 = vmatpush1.msra.mxu0 0.0
        %720 = vmatprep.subr.mxu0 0.0
        %721 = vmatpush1.msra.mxu0 0.0
        %722 = vmatprep.subr.mxu0 0.0
        %723 = vmatpush1.msra.mxu0 0.0
        %724 = vmatprep.subr.mxu0 0.0
        %725 = vmatpush1.msra.mxu0 0.0
        %726 = vmatprep.subr.mxu0 0.0
        %727 = vmatpush1.msra.mxu0 0.0
        %728 = vmatprep.subr.mxu0 0.0
        %729 = vmatpush1.msra.mxu0 0.0
        %730 = vmatprep.subr.mxu0 0.0
        %731 = vmatpush1.msra.mxu0 0.0
        %732 = vmatprep.subr.mxu0 0.0
        %733 = vmatpush1.msra.mxu0 0.0
        %734 = vmatprep.subr.mxu0 0.0
        %735 = vmatpush1.msra.mxu0 0.0
        %736 = vmatprep.subr.mxu0 0.0
        %737 = vmatpush1.msra.mxu0 0.0
        %738 = vmatprep.subr.mxu0 0.0
        %739 = vmatpush1.msra.mxu0 0.0
        %740 = vmatprep.subr.mxu0 0.0
        %741 = vmatpush1.msra.mxu0 0.0
        %742 = vmatprep.subr.mxu0 0.0
        %743 = vmatpush1.msra.mxu0 0.0
        %744 = vmatprep.subr.mxu0 0.0
        %745 = vmatpush1.msra.mxu0 0.0
        %746 = vmatprep.subr.mxu0 0.0
        %747 = vmatpush1.msra.mxu0 0.0
        %748 = vmatprep.subr.mxu0 0.0
        %749 = vmatpush1.msra.mxu0 0.0
        %750 = vmatprep.subr.mxu0 0.0
        %751 = vmatpush1.msra.mxu0 0.0
        %752 = vmatprep.subr.mxu0 0.0
        %753 = vmatpush1.msra.mxu0 0.0
        %754 = vmatprep.subr.mxu0 0.0
        %755 = vmatpush1.msra.mxu0 0.0
        %756 = vmatprep.subr.mxu0 0.0
        %757 = vmatpush1.msra.mxu0 0.0
        %758 = vmatprep.mubr.f32.mxu0 0.0
        %759 = vmatmul.mubr.f32.gmra.mrb[0].mxu0 %v692
        %v760 = vpop.f32.mrb[0].mxu0
        %v761 = vadd.f32 0.0, %v760
        %v762 = vpop.f32.mrb[0].mxu0
        %763 = vdwg.mxu0
        %v765 = vsel %vm303, %v688, 0
        %767 = vmatprep.subr.mxu0 0.0
        %768 = vmatpush1.msra.mxu0 %v299
        %769 = vmatprep.subr.mxu0 0.0
        %770 = vmatpush1.msra.mxu0 0.0
        %771 = vmatprep.subr.mxu0 0.0
        %772 = vmatpush1.msra.mxu0 0.0
        %773 = vmatprep.subr.mxu0 0.0
        %774 = vmatpush1.msra.mxu0 0.0
        %775 = vmatprep.subr.mxu0 0.0
        %776 = vmatpush1.msra.mxu0 0.0
        %777 = vmatprep.subr.mxu0 0.0
        %778 = vmatpush1.msra.mxu0 0.0
        %779 = vmatprep.subr.mxu0 0.0
        %780 = vmatpush1.msra.mxu0 0.0
        %781 = vmatprep.subr.mxu0 0.0
        %782 = vmatpush1.msra.mxu0 0.0
        %783 = vmatprep.subr.mxu0 0.0
        %784 = vmatpush1.msra.mxu0 0.0
        %785 = vmatprep.subr.mxu0 0.0
        %786 = vmatpush1.msra.mxu0 0.0
        %787 = vmatprep.subr.mxu0 0.0
        %788 = vmatpush1.msra.mxu0 0.0
        %789 = vmatprep.subr.mxu0 0.0
        %790 = vmatpush1.msra.mxu0 0.0
        %791 = vmatprep.subr.mxu0 0.0
        %792 = vmatpush1.msra.mxu0 0.0
        %793 = vmatprep.subr.mxu0 0.0
        %794 = vmatpush1.msra.mxu0 0.0
        %795 = vmatprep.subr.mxu0 0.0
        %796 = vmatpush1.msra.mxu0 0.0
        %797 = vmatprep.subr.mxu0 0.0
        %798 = vmatpush1.msra.mxu0 0.0
        %799 = vmatprep.subr.mxu0 0.0
        %800 = vmatpush1.msra.mxu0 0.0
        %801 = vmatprep.subr.mxu0 0.0
        %802 = vmatpush1.msra.mxu0 0.0
        %803 = vmatprep.subr.mxu0 0.0
        %804 = vmatpush1.msra.mxu0 0.0
        %805 = vmatprep.subr.mxu0 0.0
        %806 = vmatpush1.msra.mxu0 0.0
        %807 = vmatprep.subr.mxu0 0.0
        %808 = vmatpush1.msra.mxu0 0.0
        %809 = vmatprep.subr.mxu0 0.0
        %810 = vmatpush1.msra.mxu0 0.0
        %811 = vmatprep.subr.mxu0 0.0
        %812 = vmatpush1.msra.mxu0 0.0
        %813 = vmatprep.subr.mxu0 0.0
        %814 = vmatpush1.msra.mxu0 0.0
        %815 = vmatprep.subr.mxu0 0.0
        %816 = vmatpush1.msra.mxu0 0.0
        %817 = vmatprep.subr.mxu0 0.0
        %818 = vmatpush1.msra.mxu0 0.0
        %819 = vmatprep.subr.mxu0 0.0
        %820 = vmatpush1.msra.mxu0 0.0
        %821 = vmatprep.subr.mxu0 0.0
        %822 = vmatpush1.msra.mxu0 0.0
        %823 = vmatprep.subr.mxu0 0.0
        %824 = vmatpush1.msra.mxu0 0.0
        %825 = vmatprep.subr.mxu0 0.0
        %826 = vmatpush1.msra.mxu0 0.0
        %827 = vmatprep.subr.mxu0 0.0
        %828 = vmatpush1.msra.mxu0 0.0
        %829 = vmatprep.subr.mxu0 0.0
        %830 = vmatpush1.msra.mxu0 0.0
        %831 = vmatprep.mubr.f32.mxu0 0.0
        %832 = vmatmul.mubr.f32.gmra.mrb[0].mxu0 %v765
        %v833 = vpop.f32.mrb[0].mxu0
        %v834 = vadd.f32 0.0, %v833
        %v835 = vpop.f32.mrb[0].mxu0
        %836 = vdwg.mxu0
        %v838 = vsel %vm303, %v689, 0
        %840 = vmatprep.subr.mxu0 0.0
        %841 = vmatpush1.msra.mxu0 %v300
        %842 = vmatprep.subr.mxu0 0.0
        %843 = vmatpush1.msra.mxu0 0.0
        %844 = vmatprep.subr.mxu0 0.0
        %845 = vmatpush1.msra.mxu0 0.0
        %846 = vmatprep.subr.mxu0 0.0
        %847 = vmatpush1.msra.mxu0 0.0
        %848 = vmatprep.subr.mxu0 0.0
        %849 = vmatpush1.msra.mxu0 0.0
        %850 = vmatprep.subr.mxu0 0.0
        %851 = vmatpush1.msra.mxu0 0.0
        %852 = vmatprep.subr.mxu0 0.0
        %853 = vmatpush1.msra.mxu0 0.0
        %854 = vmatprep.subr.mxu0 0.0
        %855 = vmatpush1.msra.mxu0 0.0
        %856 = vmatprep.subr.mxu0 0.0
        %857 = vmatpush1.msra.mxu0 0.0
        %858 = vmatprep.subr.mxu0 0.0
        %859 = vmatpush1.msra.mxu0 0.0
        %860 = vmatprep.subr.mxu0 0.0
        %861 = vmatpush1.msra.mxu0 0.0
        %862 = vmatprep.subr.mxu0 0.0
        %863 = vmatpush1.msra.mxu0 0.0
        %864 = vmatprep.subr.mxu0 0.0
        %865 = vmatpush1.msra.mxu0 0.0
        %866 = vmatprep.subr.mxu0 0.0
        %867 = vmatpush1.msra.mxu0 0.0
        %868 = vmatprep.subr.mxu0 0.0
        %869 = vmatpush1.msra.mxu0 0.0
        %870 = vmatprep.subr.mxu0 0.0
        %871 = vmatpush1.msra.mxu0 0.0
        %872 = vmatprep.subr.mxu0 0.0
        %873 = vmatpush1.msra.mxu0 0.0
        %874 = vmatprep.subr.mxu0 0.0
        %875 = vmatpush1.msra.mxu0 0.0
        %876 = vmatprep.subr.mxu0 0.0
        %877 = vmatpush1.msra.mxu0 0.0
        %878 = vmatprep.subr.mxu0 0.0
        %879 = vmatpush1.msra.mxu0 0.0
        %880 = vmatprep.subr.mxu0 0.0
        %881 = vmatpush1.msra.mxu0 0.0
        %882 = vmatprep.subr.mxu0 0.0
        %883 = vmatpush1.msra.mxu0 0.0
        %884 = vmatprep.subr.mxu0 0.0
        %885 = vmatpush1.msra.mxu0 0.0
        %886 = vmatprep.subr.mxu0 0.0
        %887 = vmatpush1.msra.mxu0 0.0
        %888 = vmatprep.subr.mxu0 0.0
        %889 = vmatpush1.msra.mxu0 0.0
        %890 = vmatprep.subr.mxu0 0.0
        %891 = vmatpush1.msra.mxu0 0.0
        %892 = vmatprep.subr.mxu0 0.0
        %893 = vmatpush1.msra.mxu0 0.0
        %894 = vmatprep.subr.mxu0 0.0
        %895 = vmatpush1.msra.mxu0 0.0
        %896 = vmatprep.subr.mxu0 0.0
        %897 = vmatpush1.msra.mxu0 0.0
        %898 = vmatprep.subr.mxu0 0.0
        %899 = vmatpush1.msra.mxu0 0.0
        %900 = vmatprep.subr.mxu0 0.0
        %901 = vmatpush1.msra.mxu0 0.0
        %902 = vmatprep.subr.mxu0 0.0
        %903 = vmatpush1.msra.mxu0 0.0
        %904 = vmatprep.mubr.f32.mxu0 0.0
        %905 = vmatmul.mubr.f32.gmra.mrb[0].mxu0 %v838
        %v906 = vpop.f32.mrb[0].mxu0
        %v907 = vadd.f32 0.0, %v906
        %v908 = vpop.f32.mrb[0].mxu0
        %909 = vdwg.mxu0
        %v911 = vsel %vm303, %v690, 0
        %913 = vmatprep.subr.mxu0 0.0
        %914 = vmatpush1.msra.mxu0 %v301
        %915 = vmatprep.subr.mxu0 0.0
        %916 = vmatpush1.msra.mxu0 0.0
        %917 = vmatprep.subr.mxu0 0.0
        %918 = vmatpush1.msra.mxu0 0.0
        %919 = vmatprep.subr.mxu0 0.0
        %920 = vmatpush1.msra.mxu0 0.0
        %921 = vmatprep.subr.mxu0 0.0
        %922 = vmatpush1.msra.mxu0 0.0
        %923 = vmatprep.subr.mxu0 0.0
        %924 = vmatpush1.msra.mxu0 0.0
        %925 = vmatprep.subr.mxu0 0.0
        %926 = vmatpush1.msra.mxu0 0.0
        %927 = vmatprep.subr.mxu0 0.0
        %928 = vmatpush1.msra.mxu0 0.0
        %929 = vmatprep.subr.mxu0 0.0
        %930 = vmatpush1.msra.mxu0 0.0
        %931 = vmatprep.subr.mxu0 0.0
        %932 = vmatpush1.msra.mxu0 0.0
        %933 = vmatprep.subr.mxu0 0.0
        %934 = vmatpush1.msra.mxu0 0.0
        %935 = vmatprep.subr.mxu0 0.0
        %936 = vmatpush1.msra.mxu0 0.0
        %937 = vmatprep.subr.mxu0 0.0
        %938 = vmatpush1.msra.mxu0 0.0
        %939 = vmatprep.subr.mxu0 0.0
        %940 = vmatpush1.msra.mxu0 0.0
        %941 = vmatprep.subr.mxu0 0.0
        %942 = vmatpush1.msra.mxu0 0.0
        %943 = vmatprep.subr.mxu0 0.0
        %944 = vmatpush1.msra.mxu0 0.0
        %945 = vmatprep.subr.mxu0 0.0
        %946 = vmatpush1.msra.mxu0 0.0
        %947 = vmatprep.subr.mxu0 0.0
        %948 = vmatpush1.msra.mxu0 0.0
        %949 = vmatprep.subr.mxu0 0.0
        %950 = vmatpush1.msra.mxu0 0.0
        %951 = vmatprep.subr.mxu0 0.0
        %952 = vmatpush1.msra.mxu0 0.0
        %953 = vmatprep.subr.mxu0 0.0
        %954 = vmatpush1.msra.mxu0 0.0
        %955 = vmatprep.subr.mxu0 0.0
        %956 = vmatpush1.msra.mxu0 0.0
        %957 = vmatprep.subr.mxu0 0.0
        %958 = vmatpush1.msra.mxu0 0.0
        %959 = vmatprep.subr.mxu0 0.0
        %960 = vmatpush1.msra.mxu0 0.0
        %961 = vmatprep.subr.mxu0 0.0
        %962 = vmatpush1.msra.mxu0 0.0
        %963 = vmatprep.subr.mxu0 0.0
        %964 = vmatpush1.msra.mxu0 0.0
        %965 = vmatprep.subr.mxu0 0.0
        %966 = vmatpush1.msra.mxu0 0.0
        %967 = vmatprep.subr.mxu0 0.0
        %968 = vmatpush1.msra.mxu0 0.0
        %969 = vmatprep.subr.mxu0 0.0
        %970 = vmatpush1.msra.mxu0 0.0
        %971 = vmatprep.subr.mxu0 0.0
        %972 = vmatpush1.msra.mxu0 0.0
        %973 = vmatprep.subr.mxu0 0.0
        %974 = vmatpush1.msra.mxu0 0.0
        %975 = vmatprep.subr.mxu0 0.0
        %976 = vmatpush1.msra.mxu0 0.0
        %977 = vmatprep.mubr.f32.mxu0 0.0
        %978 = vmatmul.mubr.f32.gmra.mrb[0].mxu0 %v911
        %v979 = vpop.f32.mrb[0].mxu0
        %v980 = vadd.f32 0.0, %v979
        %v981 = vpop.f32.mrb[0].mxu0
        %982 = vdwg.mxu0
        %983 = vst.msk [vmem:[%s289] sm:$0xff] %vm303, %v761
        %984 = vst.msk [vmem:[%s289 + $0x8] sm:$0xff] %vm303, %v834
        %985 = vst.msk [vmem:[%s289 + $0x10] sm:$0xff] %vm303, %v907
        %986 = vst.msk [vmem:[%s289 + $0x18] sm:$0xff] %vm303, %v980
        %987 = vst.msk [vmem:[%s266] sm:$0xff] %vm303, %v687
        %988 = vst.msk [vmem:[%s266 + $0x8] sm:$0xff] %vm303, %v688
        %989 = vst.msk [vmem:[%s266 + $0x10] sm:$0xff] %vm303, %v689
        %990 = vst.msk [vmem:[%s266 + $0x18] sm:$0xff] %vm303, %v690
        %p991 = scmp.lt.s32.totalorder %s20, 1
        %s992 = scalar_select %p991, %s20, 1
        %s993 = smul.addr %s992, 4
        %s994 = smul.addr %s993, 8
        %s995 = scalar_lea.vmem %s4, %s994
        %s996 = sand.u32 %s158, 1
        %s997 = scalar_lea.sflag [#allocation3], %s996
        %s998 = sand.u32 %s158, 1
        %s999 = smul.addr %s998, 32
        %s1000 = scalar_lea.vmem [#allocation2], %s999
        // Predicated region
        $region37: #{decoder_forward.18} parent=35 // pred_check
          %p1001 = pneg %p142
        $region38: #{decoder_forward.18} parent=35 // pred_check_branch
          %1003 = sbr.rel (%p1001) target = $region40
        $region39: #{decoder_forward.18} parent=35 // pred_region
          _
        $region40: #{decoder_forward.18} parent=35 // pred_fallthru
          _
        // Predicated region
        $region41: #{decoder_forward.18} parent=35 // pred_check
          %p1004 = pneg %p168
        $region42: #{decoder_forward.18} parent=35 // pred_check_branch
          %1006 = sbr.rel (%p1004) target = $region44
        $region43: #{decoder_forward.18} parent=35 // pred_region
          %s1008 = ssub.s32 512, 512
          %1009 = vsyncadd %s997, %s1008
          %s1010 = smul.addr %s20, 4
          %s1011 = smul.addr %s1010, 128
          %s1012 = scalar_lea.hbm %s5, %s1011
          %s1013 = sshll.u32 %s1000, 4
          %s1014 = int_to_ptr.vmem [resolvable:$true] %s1013
          %1019 = dma.vmem_to_hbm [thread:$0]  %s1014, 512, %s1012, %s997, 128, 128, 8
        $region44: #{decoder_forward.18} parent=35 // pred_fallthru
          _
      $region36: #{decoder_forward.18} parent=5 // pred_fallthru
        _
      %p1020 = scmp.le.s32.totalorder 2, %s15
      // Predicated region
      $region45: #{decoder_forward.18} parent=5 // pred_check
        %p1021 = pneg %p1020
      $region46: #{decoder_forward.18} parent=5 // pred_check_branch
        %1023 = sbr.rel (%p1021) target = $region48
      $region47: #{decoder_forward.18} parent=5 // pred_region
        %s1024 = ssub.s32 %s15, 2
        // Predicated region
        $region49: #{decoder_forward.18} parent=47 // pred_check
          %p1025 = pneg %p148
        $region50: #{decoder_forward.18} parent=47 // pred_check_branch
          %1027 = sbr.rel (%p1025) target = $region52
        $region51: #{decoder_forward.18} parent=47 // pred_region
          %p1028 = scmp.lt.s32.totalorder %s21, 1
          %s1029 = scalar_select %p1028, %s21, 1
          %s1030 = smul.addr %s1029, 4
          %s1031 = smul.addr %s1030, 8
          %s1032 = scalar_lea.vmem %s4, %s1031
        $region52: #{decoder_forward.18} parent=47 // pred_fallthru
          _
        // Predicated region
        $region53: #{decoder_forward.18} parent=47 // pred_check
          %p1033 = pneg %p174
        $region54: #{decoder_forward.18} parent=47 // pred_check_branch
          %1035 = sbr.rel (%p1033) target = $region56
        $region55: #{decoder_forward.18} parent=47 // pred_region
          %s1036 = sand.u32 %s159, 1
          %s1037 = scalar_lea.sflag [#allocation3], %s1036
          %s1038 = sand.u32 %s159, 1
          %s1039 = smul.addr %s1038, 32
          %s1040 = scalar_lea.vmem [#allocation2], %s1039
          %1041 = dma.done %s1037, 512
        $region56: #{decoder_forward.18} parent=47 // pred_fallthru
          _
      $region48: #{decoder_forward.18} parent=5 // pred_fallthru
        _
    $region6: #{decoder_forward.18} parent=1 // loop_footer
      %s19 = sadd.s32 1, %s15
    $region7: #{decoder_forward.18} parent=1 // loop_footer_branch
      %14 = sbr.rel target = $region3
    $region8: #{decoder_forward.18} parent=1 // loop_exit
      _
    %1042 = vsyncpa [#allocation3], 1
    %s1043 = scalar_lea.sflag [#allocation3], 1
    %1044 = vsyncpa %s1043, 1

// kernel: decoder_forward.14
$region0: #{decoder_forward.14}
  #allocation0 [shape = 'u32[]', space=smem, size = 0x4, offset = 0x4, fixed_abs, tag = 'smem constant byte address 0x4 - core index']
  #allocation1 [shape = 'u32[144,128]{1,0:T(1,128)}', space=vmem, size = 0x12000, scoped, tag = 'internal scratch']
  %s0 = inlined_call_operand.vmem [shape: f32[16,32], index: 0, kind: input, shape index: {}]
  %s1 = inlined_call_operand.vmem [shape: f32[16,32], index: 1, kind: input, shape index: {}]
  %s2 = inlined_call_operand.vmem [shape: f32[32,32], index: 2, kind: input, shape index: {}]
  %s3 = inlined_call_operand.vmem [shape: f32[1,32], index: 3, kind: input, shape index: {}]
  %s4 = inlined_call_operand.vmem [shape: f32[1,32], index: 4, kind: input, shape index: {}]
  %s5 = inlined_call_operand.vmem [shape: f32[32,64], index: 5, kind: input, shape index: {}]
  %s6 = inlined_call_operand.vmem [shape: f32[1,64], index: 6, kind: input, shape index: {}]
  %s7 = inlined_call_operand.vmem [shape: f32[64,32], index: 7, kind: input, shape index: {}]
  %s8 = inlined_call_operand.vmem [shape: f32[1,32], index: 8, kind: input, shape index: {}]
  %s9 = inlined_call_operand.vmem [shape: f32[16,32], index: 9, kind: output, shape index: {}]
  %s10 = sld [smem:[#allocation0]]
  $region46: #{decoder_forward.14} parent=0
    _
  %s12 = ssub.s32 1, %s10
  %s13 = scalar_select 0, %s12, %s10
  // Predicated region
  $region2: #{decoder_forward.14} parent=0 // pred_check
    _
  $region3: #{decoder_forward.14} parent=0 // pred_check_branch
    %15 = sbr.rel (0) target = $region5
  $region4: #{decoder_forward.14} parent=0 // pred_region
    _
  $region5: #{decoder_forward.14} parent=0 // pred_fallthru
    _
  // Predicated region
  $region6: #{decoder_forward.14} parent=0 // pred_check
    _
  $region7: #{decoder_forward.14} parent=0 // pred_check_branch
    %17 = sbr.rel (0) target = $region9
  $region8: #{decoder_forward.14} parent=0 // pred_region
    _
  $region9: #{decoder_forward.14} parent=0 // pred_fallthru
    _
  // Predicated region
  $region10: #{decoder_forward.14} parent=0 // pred_check
    _
  $region11: #{decoder_forward.14} parent=0 // pred_check_branch
    %19 = sbr.rel (0) target = $region13
  $region12: #{decoder_forward.14} parent=0 // pred_region
    _
  $region13: #{decoder_forward.14} parent=0 // pred_fallthru
    _
  // Predicated region
  $region14: #{decoder_forward.14} parent=0 // pred_check
    _
  $region15: #{decoder_forward.14} parent=0 // pred_check_branch
    %21 = sbr.rel (0) target = $region17
  $region16: #{decoder_forward.14} parent=0 // pred_region
    _
  $region17: #{decoder_forward.14} parent=0 // pred_fallthru
    _
  // Predicated region
  $region18: #{decoder_forward.14} parent=0 // pred_check
    _
  $region19: #{decoder_forward.14} parent=0 // pred_check_branch
    %23 = sbr.rel (0) target = $region21
  $region20: #{decoder_forward.14} parent=0 // pred_region
    _
  $region21: #{decoder_forward.14} parent=0 // pred_fallthru
    _
  // Predicated region
  $region22: #{decoder_forward.14} parent=0 // pred_check
    _
  $region23: #{decoder_forward.14} parent=0 // pred_check_branch
    %25 = sbr.rel (0) target = $region25
  $region24: #{decoder_forward.14} parent=0 // pred_region
    _
  $region25: #{decoder_forward.14} parent=0 // pred_fallthru
    _
  // Predicated region
  $region26: #{decoder_forward.14} parent=0 // pred_check
    _
  $region27: #{decoder_forward.14} parent=0 // pred_check_branch
    %27 = sbr.rel (0) target = $region29
  $region28: #{decoder_forward.14} parent=0 // pred_region
    _
  $region29: #{decoder_forward.14} parent=0 // pred_fallthru
    _
  // Predicated region
  $region30: #{decoder_forward.14} parent=0 // pred_check
    _
  $region31: #{decoder_forward.14} parent=0 // pred_check_branch
    %29 = sbr.rel (0) target = $region33
  $region32: #{decoder_forward.14} parent=0 // pred_region
    _
  $region33: #{decoder_forward.14} parent=0 // pred_fallthru
    _
  // Predicated region
  $region34: #{decoder_forward.14} parent=0 // pred_check
    _
  $region35: #{decoder_forward.14} parent=0 // pred_check_branch
    %31 = sbr.rel (0) target = $region37
  $region36: #{decoder_forward.14} parent=0 // pred_region
    _
  $region37: #{decoder_forward.14} parent=0 // pred_fallthru
    _
  %v32 = vld [vmem:[%s0] sm:$0xff]
  %v33 = vld [vmem:[%s0 + $0x8] sm:$0xff]
  %v34 = vld [vmem:[%s2] sm:$0xff]
  %v35 = vld [vmem:[%s2 + $0x8] sm:$0xff]
  %v36 = vld [vmem:[%s2 + $0x10] sm:$0xff]
  %v37 = vld [vmem:[%s2 + $0x18] sm:$0xff]
  %vm38 = vcmask 261120
  %v40 = vsel %vm38, %v32, 0
  %v43 = vsel %vm38, %v33, 0
  %45 = vmatprep.subr.mxu0 0.0
  %46 = vmatpush1.msra.mxu0 %v34
  %47 = vmatprep.subr.mxu0 0.0
  %48 = vmatpush1.msra.mxu0 %v35
  %49 = vmatprep.subr.mxu0 0.0
  %50 = vmatpush1.msra.mxu0 %v36
  %51 = vmatprep.subr.mxu0 0.0
  %52 = vmatpush1.msra.mxu0 %v37
  %53 = vmatprep.subr.mxu0 0.0
  %54 = vmatpush1.msra.mxu0 0.0
  %55 = vmatprep.subr.mxu0 0.0
  %56 = vmatpush1.msra.mxu0 0.0
  %57 = vmatprep.subr.mxu0 0.0
  %58 = vmatpush1.msra.mxu0 0.0
  %59 = vmatprep.subr.mxu0 0.0
  %60 = vmatpush1.msra.mxu0 0.0
  %61 = vmatprep.subr.mxu0 0.0
  %62 = vmatpush1.msra.mxu0 0.0
  %63 = vmatprep.subr.mxu0 0.0
  %64 = vmatpush1.msra.mxu0 0.0
  %65 = vmatprep.subr.mxu0 0.0
  %66 = vmatpush1.msra.mxu0 0.0
  %67 = vmatprep.subr.mxu0 0.0
  %68 = vmatpush1.msra.mxu0 0.0
  %69 = vmatprep.subr.mxu0 0.0
  %70 = vmatpush1.msra.mxu0 0.0
  %71 = vmatprep.subr.mxu0 0.0
  %72 = vmatpush1.msra.mxu0 0.0
  %73 = vmatprep.subr.mxu0 0.0
  %74 = vmatpush1.msra.mxu0 0.0
  %75 = vmatprep.subr.mxu0 0.0
  %76 = vmatpush1.msra.mxu0 0.0
  %77 = vmatprep.subr.mxu0 0.0
  %78 = vmatpush1.msra.mxu0 0.0
  %79 = vmatprep.subr.mxu0 0.0
  %80 = vmatpush1.msra.mxu0 0.0
  %81 = vmatprep.subr.mxu0 0.0
  %82 = vmatpush1.msra.mxu0 0.0
  %83 = vmatprep.subr.mxu0 0.0
  %84 = vmatpush1.msra.mxu0 0.0
  %85 = vmatprep.subr.mxu0 0.0
  %86 = vmatpush1.msra.mxu0 0.0
  %87 = vmatprep.subr.mxu0 0.0
  %88 = vmatpush1.msra.mxu0 0.0
  %89 = vmatprep.subr.mxu0 0.0
  %90 = vmatpush1.msra.mxu0 0.0
  %91 = vmatprep.subr.mxu0 0.0
  %92 = vmatpush1.msra.mxu0 0.0
  %93 = vmatprep.subr.mxu0 0.0
  %94 = vmatpush1.msra.mxu0 0.0
  %95 = vmatprep.subr.mxu0 0.0
  %96 = vmatpush1.msra.mxu0 0.0
  %97 = vmatprep.subr.mxu0 0.0
  %98 = vmatpush1.msra.mxu0 0.0
  %99 = vmatprep.subr.mxu0 0.0
  %100 = vmatpush1.msra.mxu0 0.0
  %101 = vmatprep.subr.mxu0 0.0
  %102 = vmatpush1.msra.mxu0 0.0
  %103 = vmatprep.subr.mxu0 0.0
  %104 = vmatpush1.msra.mxu0 0.0
  %105 = vmatprep.subr.mxu0 0.0
  %106 = vmatpush1.msra.mxu0 0.0
  %107 = vmatprep.subr.mxu0 0.0
  %108 = vmatpush1.msra.mxu0 0.0
  %109 = vmatprep.mubr.f32.mxu0 0.0
  %110 = vmatmul.mubr.f32.gmra.mrb[0].mxu0 %v40
  %v111 = vpop.f32.mrb[0].mxu0
  %v112 = vadd.f32 0.0, %v111
  %v113 = vpop.f32.mrb[0].mxu0
  %114 = vmatprep.mubr.f32.mxu0 0.0
  %115 = vmatmul.mubr.f32.gmra.mrb[0].mxu0 %v43
  %v116 = vpop.f32.mrb[0].mxu0
  %v117 = vadd.f32 0.0, %v116
  %v118 = vpop.f32.mrb[0].mxu0
  %119 = vdwg.mxu0
  %v120 = vld [vmem:[%s1] sm:$0xff]
  %v121 = vld [vmem:[%s1 + $0x8] sm:$0xff]
  %v122 = vadd.f32 %v120, %v112
  %v123 = vadd.f32 %v121, %v117
  %v124 = vld [vmem:[%s3] sm:$0x1]
  %v125 = vld [vmem:[%s4] sm:$0x1]
  %v126 = vsel %vm38, %v122, 0.0
  %127 = vadd.xlane.f32.xlu0 %v126
  %v128 = vpop.xlane.xlu0 %127
  %v129 = vsel %vm38, %v123, 0.0
  %130 = vadd.xlane.f32.xlu0 %v129
  %v131 = vpop.xlane.xlu0 %130
  %v132 = vrcp.pop 32.0
  %v133 = vmul.f32 %v128, %v132
  %v134 = vmul.f32 %v131, %v132
  %v135 = vsub.f32 %v122, %v133
  %v136 = vsub.f32 %v123, %v134
  %v137 = vmul.f32 %v135, %v135
  %v138 = vmul.f32 %v136, %v136
  %v139 = vsel %vm38, %v137, 0.0
  %140 = vadd.xlane.f32.xlu0 %v139
  %v141 = vpop.xlane.xlu0 %140
  %v142 = vsel %vm38, %v138, 0.0
  %143 = vadd.xlane.f32.xlu0 %v142
  %v144 = vpop.xlane.xlu0 %143
  %v145 = vmul.f32 %v141, %v132
  %v146 = vmul.f32 %v144, %v132
  %v147 = vadd.f32 %v145, 1e-06
  %v148 = vadd.f32 %v146, 1e-06
  %v149 = vrsqrt.pop %v147
  %v150 = vrsqrt.pop %v148
  %v151 = vmul.f32 %v135, %v149
  %v152 = vmul.f32 %v136, %v150
  %v154 = vlaneseq
  %v155 = vshrl.u32 %v154, 7
  %v156 = vsub.s32 0, %v155
  %v157 = vrot.slane %v124, %v156
  %v159 = vmul.f32 %v151, %v157
  %v160 = vmul.f32 %v152, %v157
  %v162 = vlaneseq
  %v163 = vshrl.u32 %v162, 7
  %v164 = vsub.s32 0, %v163
  %v165 = vrot.slane %v125, %v164
  %v167 = vadd.f32 %v159, %v165
  %v168 = vadd.f32 %v160, %v165
  %v169 = vld [vmem:[%s5] sm:$0xff]
  %v170 = vld [vmem:[%s5 + $0x8] sm:$0xff]
  %v171 = vld [vmem:[%s5 + $0x10] sm:$0xff]
  %v172 = vld [vmem:[%s5 + $0x18] sm:$0xff]
  %v173 = vld [vmem:[%s6] sm:$0x1]
  %v175 = vlaneseq
  %v176 = vshrl.u32 %v175, 7
  %v177 = vsub.s32 0, %v176
  %v178 = vrot.slane %v173, %v177
  %v181 = vsel %vm38, %v167, 0
  %v184 = vsel %vm38, %v168, 0
  %186 = vmatprep.subr.mxu0 0.0
  %187 = vmatpush1.msra.mxu0 %v169
  %188 = vmatprep.subr.mxu0 0.0
  %189 = vmatpush1.msra.mxu0 %v170
  %190 = vmatprep.subr.mxu0 0.0
  %191 = vmatpush1.msra.mxu0 %v171
  %192 = vmatprep.subr.mxu0 0.0
  %193 = vmatpush1.msra.mxu0 %v172
  %194 = vmatprep.subr.mxu0 0.0
  %195 = vmatpush1.msra.mxu0 0.0
  %196 = vmatprep.subr.mxu0 0.0
  %197 = vmatpush1.msra.mxu0 0.0
  %198 = vmatprep.subr.mxu0 0.0
  %199 = vmatpush1.msra.mxu0 0.0
  %200 = vmatprep.subr.mxu0 0.0
  %201 = vmatpush1.msra.mxu0 0.0
  %202 = vmatprep.subr.mxu0 0.0
  %203 = vmatpush1.msra.mxu0 0.0
  %204 = vmatprep.subr.mxu0 0.0
  %205 = vmatpush1.msra.mxu0 0.0
  %206 = vmatprep.subr.mxu0 0.0
  %207 = vmatpush1.msra.mxu0 0.0
  %208 = vmatprep.subr.mxu0 0.0
  %209 = vmatpush1.msra.mxu0 0.0
  %210 = vmatprep.subr.mxu0 0.0
  %211 = vmatpush1.msra.mxu0 0.0
  %212 = vmatprep.subr.mxu0 0.0
  %213 = vmatpush1.msra.mxu0 0.0
  %214 = vmatprep.subr.mxu0 0.0
  %215 = vmatpush1.msra.mxu0 0.0
  %216 = vmatprep.subr.mxu0 0.0
  %217 = vmatpush1.msra.mxu0 0.0
  %218 = vmatprep.subr.mxu0 0.0
  %219 = vmatpush1.msra.mxu0 0.0
  %220 = vmatprep.subr.mxu0 0.0
  %221 = vmatpush1.msra.mxu0 0.0
  %222 = vmatprep.subr.mxu0 0.0
  %223 = vmatpush1.msra.mxu0 0.0
  %224 = vmatprep.subr.mxu0 0.0
  %225 = vmatpush1.msra.mxu0 0.0
  %226 = vmatprep.subr.mxu0 0.0
  %227 = vmatpush1.msra.mxu0 0.0
  %228 = vmatprep.subr.mxu0 0.0
  %229 = vmatpush1.msra.mxu0 0.0
  %230 = vmatprep.subr.mxu0 0.0
  %231 = vmatpush1.msra.mxu0 0.0
  %232 = vmatprep.subr.mxu0 0.0
  %233 = vmatpush1.msra.mxu0 0.0
  %234 = vmatprep.subr.mxu0 0.0
  %235 = vmatpush1.msra.mxu0 0.0
  %236 = vmatprep.subr.mxu0 0.0
  %237 = vmatpush1.msra.mxu0 0.0
  %238 = vmatprep.subr.mxu0 0.0
  %239 = vmatpush1.msra.mxu0 0.0
  %240 = vmatprep.subr.mxu0 0.0
  %241 = vmatpush1.msra.mxu0 0.0
  %242 = vmatprep.subr.mxu0 0.0
  %243 = vmatpush1.msra.mxu0 0.0
  %244 = vmatprep.subr.mxu0 0.0
  %245 = vmatpush1.msra.mxu0 0.0
  %246 = vmatprep.subr.mxu0 0.0
  %247 = vmatpush1.msra.mxu0 0.0
  %248 = vmatprep.subr.mxu0 0.0
  %249 = vmatpush1.msra.mxu0 0.0
  %250 = vmatprep.mubr.f32.mxu0 0.0
  %251 = vmatmul.mubr.f32.gmra.mrb[0].mxu0 %v181
  %v252 = vpop.f32.mrb[0].mxu0
  %v253 = vadd.f32 %v178, %v252
  %v254 = vpop.f32.mrb[0].mxu0
  %255 = vmatprep.mubr.f32.mxu0 0.0
  %256 = vmatmul.mubr.f32.gmra.mrb[0].mxu0 %v184
  %v257 = vpop.f32.mrb[0].mxu0
  %v258 = vadd.f32 %v178, %v257
  %v259 = vpop.f32.mrb[0].mxu0
  %260 = vdwg.mxu0
  %v261 = vmax.f32 %v253, 0.0
  %v262 = vmax.f32 %v258, 0.0
  %v263 = vld [vmem:[%s7] sm:$0xff]
  %v264 = vld [vmem:[%s7 + $0x8] sm:$0xff]
  %v265 = vld [vmem:[%s7 + $0x10] sm:$0xff]
  %v266 = vld [vmem:[%s7 + $0x18] sm:$0xff]
  %v267 = vld [vmem:[%s7 + $0x20] sm:$0xff]
  %v268 = vld [vmem:[%s7 + $0x28] sm:$0xff]
  %v269 = vld [vmem:[%s7 + $0x30] sm:$0xff]
  %v270 = vld [vmem:[%s7 + $0x38] sm:$0xff]
  %v271 = vld [vmem:[%s8] sm:$0x1]
  %v273 = vlaneseq
  %v274 = vshrl.u32 %v273, 7
  %v275 = vsub.s32 0, %v274
  %v276 = vrot.slane %v271, %v275
  %vm278 = vcmask 523264
  %v280 = vsel %vm278, %v261, 0
  %v283 = vsel %vm278, %v262, 0
  %285 = vmatprep.subr.mxu0 0.0
  %286 = vmatpush1.msra.mxu0 %v263
  %287 = vmatprep.subr.mxu0 0.0
  %288 = vmatpush1.msra.mxu0 %v264
  %289 = vmatprep.subr.mxu0 0.0
  %290 = vmatpush1.msra.mxu0 %v265
  %291 = vmatprep.subr.mxu0 0.0
  %292 = vmatpush1.msra.mxu0 %v266
  %293 = vmatprep.subr.mxu0 0.0
  %294 = vmatpush1.msra.mxu0 %v267
  %295 = vmatprep.subr.mxu0 0.0
  %296 = vmatpush1.msra.mxu0 %v268
  %297 = vmatprep.subr.mxu0 0.0
  %298 = vmatpush1.msra.mxu0 %v269
  %299 = vmatprep.subr.mxu0 0.0
  %300 = vmatpush1.msra.mxu0 %v270
  %301 = vmatprep.subr.mxu0 0.0
  %302 = vmatpush1.msra.mxu0 0.0
  %303 = vmatprep.subr.mxu0 0.0
  %304 = vmatpush1.msra.mxu0 0.0
  %305 = vmatprep.subr.mxu0 0.0
  %306 = vmatpush1.msra.mxu0 0.0
  %307 = vmatprep.subr.mxu0 0.0
  %308 = vmatpush1.msra.mxu0 0.0
  %309 = vmatprep.subr.mxu0 0.0
  %310 = vmatpush1.msra.mxu0 0.0
  %311 = vmatprep.subr.mxu0 0.0
  %312 = vmatpush1.msra.mxu0 0.0
  %313 = vmatprep.subr.mxu0 0.0
  %314 = vmatpush1.msra.mxu0 0.0
  %315 = vmatprep.subr.mxu0 0.0
  %316 = vmatpush1.msra.mxu0 0.0
  %317 = vmatprep.subr.mxu0 0.0
  %318 = vmatpush1.msra.mxu0 0.0
  %319 = vmatprep.subr.mxu0 0.0
  %320 = vmatpush1.msra.mxu0 0.0
  %321 = vmatprep.subr.mxu0 0.0
  %322 = vmatpush1.msra.mxu0 0.0
  %323 = vmatprep.subr.mxu0 0.0
  %324 = vmatpush1.msra.mxu0 0.0
  %325 = vmatprep.subr.mxu0 0.0
  %326 = vmatpush1.msra.mxu0 0.0
  %327 = vmatprep.subr.mxu0 0.0
  %328 = vmatpush1.msra.mxu0 0.0
  %329 = vmatprep.subr.mxu0 0.0
  %330 = vmatpush1.msra.mxu0 0.0
  %331 = vmatprep.subr.mxu0 0.0
  %332 = vmatpush1.msra.mxu0 0.0
  %333 = vmatprep.subr.mxu0 0.0
  %334 = vmatpush1.msra.mxu0 0.0
  %335 = vmatprep.subr.mxu0 0.0
  %336 = vmatpush1.msra.mxu0 0.0
  %337 = vmatprep.subr.mxu0 0.0
  %338 = vmatpush1.msra.mxu0 0.0
  %339 = vmatprep.subr.mxu0 0.0
  %340 = vmatpush1.msra.mxu0 0.0
  %341 = vmatprep.subr.mxu0 0.0
  %342 = vmatpush1.msra.mxu0 0.0
  %343 = vmatprep.subr.mxu0 0.0
  %344 = vmatpush1.msra.mxu0 0.0
  %345 = vmatprep.subr.mxu0 0.0
  %346 = vmatpush1.msra.mxu0 0.0
  %347 = vmatprep.subr.mxu0 0.0
  %348 = vmatpush1.msra.mxu0 0.0
  %349 = vmatprep.mubr.f32.mxu0 0.0
  %350 = vmatmul.mubr.f32.gmra.mrb[0].mxu0 %v280
  %v351 = vpop.f32.mrb[0].mxu0
  %v352 = vadd.f32 %v276, %v351
  %v353 = vpop.f32.mrb[0].mxu0
  %354 = vmatprep.mubr.f32.mxu0 0.0
  %355 = vmatmul.mubr.f32.gmra.mrb[0].mxu0 %v283
  %v356 = vpop.f32.mrb[0].mxu0
  %v357 = vadd.f32 %v276, %v356
  %v358 = vpop.f32.mrb[0].mxu0
  %359 = vdwg.mxu0
  %v360 = vadd.f32 %v167, %v352
  %v361 = vadd.f32 %v168, %v357
  %v362 = vsel %vm38, %v360, 0.0
  %363 = vadd.xlane.f32.xlu0 %v362
  %v364 = vpop.xlane.xlu0 %363
  %v365 = vsel %vm38, %v361, 0.0
  %366 = vadd.xlane.f32.xlu0 %v365
  %v367 = vpop.xlane.xlu0 %366
  %v368 = vmul.f32 %v364, %v132
  %v369 = vmul.f32 %v367, %v132
  %v370 = vsub.f32 %v360, %v368
  %v371 = vsub.f32 %v361, %v369
  %v372 = vmul.f32 %v370, %v370
  %v373 = vmul.f32 %v371, %v371
  %v374 = vsel %vm38, %v372, 0.0
  %375 = vadd.xlane.f32.xlu0 %v374
  %v376 = vpop.xlane.xlu0 %375
  %v377 = vsel %vm38, %v373, 0.0
  %378 = vadd.xlane.f32.xlu0 %v377
  %v379 = vpop.xlane.xlu0 %378
  %v380 = vmul.f32 %v376, %v132
  %v381 = vmul.f32 %v379, %v132
  %v382 = vadd.f32 %v380, 1e-06
  %v383 = vadd.f32 %v381, 1e-06
  %v384 = vrsqrt.pop %v382
  %v385 = vrsqrt.pop %v383
  %v386 = vmul.f32 %v370, %v384
  %v387 = vmul.f32 %v371, %v385
  %v388 = vmul.f32 %v386, %v157
  %v389 = vmul.f32 %v387, %v157
  %v390 = vadd.f32 %v388, %v165
  %v391 = vadd.f32 %v389, %v165
  %392 = vst.msk [vmem:[%s9] sm:$0xff] %vm38, %v390
  %393 = vst.msk [vmem:[%s9 + $0x8] sm:$0xff] %vm38, %v391
  // Predicated region
  $region38: #{decoder_forward.14} parent=0 // pred_check
    _
  $region39: #{decoder_forward.14} parent=0 // pred_check_branch
    %395 = sbr.rel (0) target = $region41
  $region40: #{decoder_forward.14} parent=0 // pred_region
    _
  $region41: #{decoder_forward.14} parent=0 // pred_fallthru
    _
  // Predicated region
  $region42: #{decoder_forward.14} parent=0 // pred_check
    _
  $region43: #{decoder_forward.14} parent=0 // pred_check_branch
    %397 = sbr.rel (0) target = $region45
  $region44: #{decoder_forward.14} parent=0 // pred_region
    _
  $region45: #{decoder_forward.14} parent=0 // pred_fallthru
    _

</llo_original>
